<compile_context>
chip_gen: v7x
topology: tpu7x:2x2x1
jax: 0.10.0
libtpu: 0.0.40
codegen_flags: <defaults>
</compile_context>

<pallas_src>
import functools

import jax
import jax.numpy as jnp
from jax import lax
from jax.experimental import pallas as pl
from jax.experimental.pallas import tpu as pltpu


def _layernorm(x, g, b, eps=1e-5):
    mu = jnp.mean(x, axis=-1, keepdims=True)
    var = jnp.mean((x - mu) ** 2, axis=-1, keepdims=True)
    return (x - mu) * lax.rsqrt(var + eps) * g + b


def _block_kernel(n_head,
                  x_ref,
                  wqkv_ref, wo_ref, w1_ref, b1_ref, w2_ref,
                  prm_ref,
                  o_ref):
    Bt, T, C = x_ref.shape
    H = n_head
    hs = C // H
    G = H * Bt            # attention batch: (head, batch) collapsed
    M = Bt * T            # matmul M dimension (rows) -> fills the MXU

    # packed small params: rows = [ln1 g, ln1 b, ln2 g, ln2 b, proj bias, ffn2 bias]
    g1, be1 = prm_ref[0], prm_ref[1]
    g2, be2 = prm_ref[2], prm_ref[3]
    bo, b2 = prm_ref[4], prm_ref[5]
    b1 = b1_ref[0]

    x = x_ref[...].reshape(M, C).astype(jnp.float32)          # (M, C)

    # ---- x + proj(MHA(LN1(x))) ----
    h = _layernorm(x, g1, be1)
    # fused q/k/v projection; 1/sqrt(C) already folded into the q columns of wqkv.
    qkv = jnp.dot(h.astype(jnp.bfloat16), wqkv_ref[...],
                  preferred_element_type=jnp.float32)          # (M, 3C) f32
    qkv = qkv.astype(jnp.bfloat16)                             # single bf16 cast

    def split_heads(base):
        # columns [base, base+C) of qkv -> (H*Bt, T, hs), batch index g = h*Bt + b
        return jnp.stack(
            [qkv[:, base + hh * hs: base + (hh + 1) * hs].reshape(Bt, T, hs)
             for hh in range(H)],
            axis=0).reshape(G, T, hs)

    q = split_heads(0 * C)
    k = split_heads(1 * C)
    v = split_heads(2 * C)

    # additive causal bias, built once (1 add per score, no per-head select)
    row = lax.broadcasted_iota(jnp.int32, (T, T), 0)
    col = lax.broadcasted_iota(jnp.int32, (T, T), 1)
    causal_bias = jnp.where(col <= row, jnp.float32(0.0), jnp.float32(-1e9))

    # attention batched over (head, batch); contraction on the last dim.
    s = jnp.einsum('gqd,gkd->gqk', q, k,
                   preferred_element_type=jnp.float32) + causal_bias[None]
    m = jnp.max(s, axis=-1, keepdims=True)
    p = jnp.exp(s - m)
    l = jnp.sum(p, axis=-1, keepdims=True)

    attn = jnp.einsum('gqk,gkd->gqd', p.astype(jnp.bfloat16), v,
                      preferred_element_type=jnp.float32)      # (G, T, hs), unnormalized
    # normalize AFTER the PV matmul: G*T*hs multiplies (not G*T*T), in f32, via EUP.
    attn = attn * pl.reciprocal(l, approx=True)

    # repack heads lane-dense -> single K=C output-projection matmul
    attn = attn.reshape(H, Bt, T, hs)
    attn_cat = jnp.concatenate([attn[hh] for hh in range(H)], axis=-1)   # (Bt, T, C)
    sa = jnp.dot(attn_cat.reshape(M, C).astype(jnp.bfloat16), wo_ref[...],
                 preferred_element_type=jnp.float32) + bo
    x1 = x + sa

    # ---- x1 + FFN(LN2(x1)):  Linear -> ReLU -> Linear -> ReLU (as in the module) ----
    h2 = _layernorm(x1, g2, be2)
    f = jnp.dot(h2.astype(jnp.bfloat16), w1_ref[...],
                preferred_element_type=jnp.float32) + b1
    f = jnp.maximum(f, 0.0).astype(jnp.bfloat16)               # bf16 intermediate (less spill)
    f = jnp.dot(f, w2_ref[...], preferred_element_type=jnp.float32) + b2
    f = jnp.maximum(f, 0.0)

    o_ref[...] = (x1 + f).reshape(Bt, T, C).astype(o_ref.dtype)


def _pick_batch_tile(B, T, target_rows=256):
    """Largest divisor of B such that Bt*T <= target_rows (fill MXU M dim)."""
    bt = 1
    for cand in range(1, B + 1):
        if B % cand == 0 and cand * T <= target_rows:
            bt = cand
    return bt


def block_forward(x, params, n_head, batch_tile=None):
    B, T, C = x.shape
    Bt = batch_tile if batch_tile is not None else _pick_batch_tile(B, T)
    assert B % Bt == 0, "batch tile must divide batch"
    kernel = functools.partial(_block_kernel, n_head)

    def rep(shape):          # replicated (weight) spec: same block every grid step
        nd = len(shape)
        return pl.BlockSpec(shape, lambda b, _nd=nd: (0,) * _nd)

    return pl.pallas_call(
        kernel,
        out_shape=jax.ShapeDtypeStruct((B, T, C), x.dtype),
        grid_spec=pltpu.PrefetchScalarGridSpec(
            num_scalar_prefetch=0,
            grid=(B // Bt,),
            in_specs=[
                pl.BlockSpec((Bt, T, C), lambda b: (b, 0, 0)),   # x (Bt batch rows / step)
                rep((C, 3 * C)),                                 # wqkv (bf16, q pre-scaled)
                rep((C, C)),                                     # wo   (bf16)
                rep((C, 4 * C)),                                 # w1   (bf16)
                rep((1, 4 * C)),                                 # b1   (f32)
                rep((4 * C, C)),                                 # w2   (bf16)
                rep((6, C)),                                     # packed small params (f32)
            ],
            out_specs=pl.BlockSpec((Bt, T, C), lambda b: (b, 0, 0)),
        ),
        compiler_params=pltpu.CompilerParams(
            dimension_semantics=("parallel",),
            # actual per-step footprint is ~2 MiB; keep a tight, generation-safe cap
            vmem_limit_bytes=16 * 1024 * 1024,
        ),
    )(x, params["wqkv"], params["wo"], params["w1"], params["b1"],
      params["w2"], params["prm"])


def _reference(x, p, n_head):
    """Pure-JAX f32 reference (module structure) using the same bf16-rounded weights.
    The attention scale is already folded into the q columns of wqkv."""
    B, T, C = x.shape
    hs = C // n_head
    wqkv = p["wqkv"].astype(jnp.float32)
    wo = p["wo"].astype(jnp.float32)
    w1 = p["w1"].astype(jnp.float32)
    w2 = p["w2"].astype(jnp.float32)
    g1, be1, g2, be2, bo, b2 = (p["prm"][i] for i in range(6))
    b1 = p["b1"][0]

    def ln(v, g, b):
        mu = v.mean(-1, keepdims=True)
        var = ((v - mu) ** 2).mean(-1, keepdims=True)
        return (v - mu) / jnp.sqrt(var + 1e-5) * g + b

    h = ln(x, g1, be1)
    qkv = h @ wqkv
    q, k, v = qkv[..., :C], qkv[..., C:2 * C], qkv[..., 2 * C:]
    mask = jnp.tril(jnp.ones((T, T), bool))
    outs = []
    for hh in range(n_head):
        sl = slice(hh * hs, (hh + 1) * hs)
        wei = q[..., sl] @ jnp.swapaxes(k[..., sl], -1, -2)   # scale folded into q weights
        wei = jnp.where(mask, wei, -jnp.inf)
        wei = jax.nn.softmax(wei, axis=-1)
        outs.append(wei @ v[..., sl])
    sa = jnp.concatenate(outs, -1) @ wo + bo
    x1 = x + sa
    h2 = ln(x1, g2, be2)
    f = jnp.maximum(h2 @ w1 + b1, 0.0)
    f = jnp.maximum(f @ w2 + b2, 0.0)
    return x1 + f


if __name__ == "__main__":
    B, T, C, n_head = 2, 64, 128, 4          # C multiple of 128 -> lane-dense tiles
    hs = C // n_head

    key = jax.random.PRNGKey(0)
    ks = jax.random.split(key, 10)
    s = 0.05
    wq = s * jax.random.normal(ks[0], (C, C), jnp.float32)
    wk = s * jax.random.normal(ks[1], (C, C), jnp.float32)
    wv = s * jax.random.normal(ks[2], (C, C), jnp.float32)
    wo = s * jax.random.normal(ks[3], (C, C), jnp.float32)
    bo = s * jax.random.normal(ks[4], (1, C), jnp.float32)
    w1 = s * jax.random.normal(ks[5], (C, 4 * C), jnp.float32)
    b1 = s * jax.random.normal(ks[6], (1, 4 * C), jnp.float32)
    w2 = s * jax.random.normal(ks[7], (4 * C, C), jnp.float32)
    b2 = s * jax.random.normal(ks[8], (1, C), jnp.float32)
    g1 = jnp.ones((1, C), jnp.float32)
    be1 = jnp.zeros((1, C), jnp.float32)
    g2 = jnp.ones((1, C), jnp.float32)
    be2 = jnp.zeros((1, C), jnp.float32)

    scale = jnp.float32(C) ** -0.5           # the PyTorch Head uses n_embd**-0.5
    params = {
        # heavy matmul weights in bf16 (kernel accumulates in f32);
        # the attention scale is folded into the q columns of wqkv.
        "wqkv": jnp.concatenate([wq * scale, wk, wv], axis=1).astype(jnp.bfloat16),  # (C, 3C)
        "wo":   wo.astype(jnp.bfloat16),                                             # (C, C)
        "w1":   w1.astype(jnp.bfloat16),                                             # (C, 4C)
        "w2":   w2.astype(jnp.bfloat16),                                             # (4C, C)
        "b1":   b1,                                                                  # (1, 4C)
        # six (1, C) params packed into one slab: [g1, be1, g2, be2, bo, b2]
        "prm":  jnp.concatenate([g1, be1, g2, be2, bo, b2], axis=0),                 # (6, C)
    }
    x = jax.random.normal(ks[9], (B, T, C), jnp.float32)

    out = jax.block_until_ready(block_forward(x, params, n_head))

    ref = _reference(x, params, n_head)
    err = jnp.max(jnp.abs(out - ref))
    assert jnp.allclose(out, ref, atol=2e-2, rtol=2e-2), f"mismatch vs reference, max abs err {err}"
    print("KERNEL_OK")
</pallas_src>

<mosaic_0001>
module attributes {stable_mosaic.version = 11 : i64} {
  func.func @_block_kernel(%arg0: i32, %arg1: memref<2x64x128xf32, #tpu.memory_space<vmem>>, %arg2: memref<128x384xbf16, #tpu.memory_space<vmem>>, %arg3: memref<128x128xbf16, #tpu.memory_space<vmem>>, %arg4: memref<128x512xbf16, #tpu.memory_space<vmem>>, %arg5: memref<1x512xf32, #tpu.memory_space<vmem>>, %arg6: memref<512x128xbf16, #tpu.memory_space<vmem>>, %arg7: memref<6x128xf32, #tpu.memory_space<vmem>>, %arg8: memref<2x64x128xf32, #tpu.memory_space<vmem>>) attributes {dimension_semantics = [#tpu.dimension_semantics<parallel>], iteration_bounds = array<i64: 1>, scalar_prefetch = 0 : i64, scratch_operands = 0 : i64, tpu.core_type = #tpu.core_type<tc>, window_params = [{transform_indices = @transform_0, window_bounds = array<i64: 2, 64, 128>}, {pipeline_mode = #tpu.pipeline_mode<synchronous>, transform_indices = @transform_1, window_bounds = array<i64: 128, 384>}, {pipeline_mode = #tpu.pipeline_mode<synchronous>, transform_indices = @transform_2, window_bounds = array<i64: 128, 128>}, {pipeline_mode = #tpu.pipeline_mode<synchronous>, transform_indices = @transform_3, window_bounds = array<i64: 128, 512>}, {pipeline_mode = #tpu.pipeline_mode<synchronous>, transform_indices = @transform_4, window_bounds = array<i64: 1, 512>}, {pipeline_mode = #tpu.pipeline_mode<synchronous>, transform_indices = @transform_5, window_bounds = array<i64: 512, 128>}, {pipeline_mode = #tpu.pipeline_mode<synchronous>, transform_indices = @transform_6, window_bounds = array<i64: 6, 128>}, {transform_indices = @transform_7, window_bounds = array<i64: 2, 64, 128>}]} {
    %c0 = arith.constant 0 : index
    %c0_0 = arith.constant 0 : index
    %0 = vector.load %arg7[%c0, %c0_0] : memref<6x128xf32, #tpu.memory_space<vmem>>, vector<1x128xf32>
    %1 = vector.shape_cast %0 : vector<1x128xf32> to vector<128xf32>
    %c1 = arith.constant 1 : index
    %c0_1 = arith.constant 0 : index
    %2 = vector.load %arg7[%c1, %c0_1] : memref<6x128xf32, #tpu.memory_space<vmem>>, vector<1x128xf32>
    %3 = vector.shape_cast %2 : vector<1x128xf32> to vector<128xf32>
    %c2 = arith.constant 2 : index
    %c0_2 = arith.constant 0 : index
    %4 = vector.load %arg7[%c2, %c0_2] : memref<6x128xf32, #tpu.memory_space<vmem>>, vector<1x128xf32>
    %5 = vector.shape_cast %4 : vector<1x128xf32> to vector<128xf32>
    %c3 = arith.constant 3 : index
    %c0_3 = arith.constant 0 : index
    %6 = vector.load %arg7[%c3, %c0_3] : memref<6x128xf32, #tpu.memory_space<vmem>>, vector<1x128xf32>
    %7 = vector.shape_cast %6 : vector<1x128xf32> to vector<128xf32>
    %c4 = arith.constant 4 : index
    %c0_4 = arith.constant 0 : index
    %8 = vector.load %arg7[%c4, %c0_4] : memref<6x128xf32, #tpu.memory_space<vmem>>, vector<1x128xf32>
    %9 = vector.shape_cast %8 : vector<1x128xf32> to vector<128xf32>
    %c5 = arith.constant 5 : index
    %c0_5 = arith.constant 0 : index
    %10 = vector.load %arg7[%c5, %c0_5] : memref<6x128xf32, #tpu.memory_space<vmem>>, vector<1x128xf32>
    %11 = vector.shape_cast %10 : vector<1x128xf32> to vector<128xf32>
    %c0_6 = arith.constant 0 : index
    %c0_7 = arith.constant 0 : index
    %12 = vector.load %arg5[%c0_6, %c0_7] : memref<1x512xf32, #tpu.memory_space<vmem>>, vector<1x512xf32>
    %13 = vector.shape_cast %12 : vector<1x512xf32> to vector<512xf32>
    %c0_8 = arith.constant 0 : index
    %c0_9 = arith.constant 0 : index
    %c0_10 = arith.constant 0 : index
    %14 = vector.load %arg1[%c0_8, %c0_9, %c0_10] : memref<2x64x128xf32, #tpu.memory_space<vmem>>, vector<2x64x128xf32>
    %15 = vector.shape_cast %14 : vector<2x64x128xf32> to vector<128x128xf32>
    %cst = arith.constant dense<0.000000e+00> : vector<128xf32>
    %16 = vector.multi_reduction <add>, %15, %cst [1] : vector<128x128xf32> to vector<128xf32>
    %17 = vector.shape_cast %16 : vector<128xf32> to vector<128x1xf32>
    %cst_11 = arith.constant 1.280000e+02 : f32
    %18 = vector.broadcast %cst_11 : f32 to vector<128x1xf32>
    %19 = arith.divf %17, %18 : vector<128x1xf32>
    %20 = vector.broadcast %19 : vector<128x1xf32> to vector<128x128xf32>
    %21 = arith.subf %15, %20 : vector<128x128xf32>
    %22 = arith.mulf %21, %21 : vector<128x128xf32>
    %cst_12 = arith.constant dense<0.000000e+00> : vector<128xf32>
    %23 = vector.multi_reduction <add>, %22, %cst_12 [1] : vector<128x128xf32> to vector<128xf32>
    %24 = vector.shape_cast %23 : vector<128xf32> to vector<128x1xf32>
    %cst_13 = arith.constant 1.280000e+02 : f32
    %25 = vector.broadcast %cst_13 : f32 to vector<128x1xf32>
    %26 = arith.divf %24, %25 : vector<128x1xf32>
    %27 = vector.broadcast %19 : vector<128x1xf32> to vector<128x128xf32>
    %28 = arith.subf %15, %27 : vector<128x128xf32>
    %cst_14 = arith.constant 9.99999974E-6 : f32
    %29 = vector.broadcast %cst_14 : f32 to vector<128x1xf32>
    %30 = arith.addf %26, %29 : vector<128x1xf32>
    %31 = math.rsqrt %30 : vector<128x1xf32>
    %32 = vector.broadcast %31 : vector<128x1xf32> to vector<128x128xf32>
    %33 = arith.mulf %28, %32 : vector<128x128xf32>
    %34 = vector.shape_cast %1 : vector<128xf32> to vector<1x128xf32>
    %35 = vector.broadcast %34 : vector<1x128xf32> to vector<128x128xf32>
    %36 = arith.mulf %33, %35 : vector<128x128xf32>
    %37 = vector.shape_cast %3 : vector<128xf32> to vector<1x128xf32>
    %38 = vector.broadcast %37 : vector<1x128xf32> to vector<128x128xf32>
    %39 = arith.addf %36, %38 : vector<128x128xf32>
    %40 = arith.truncf %39 : vector<128x128xf32> to vector<128x128xbf16>
    %c0_15 = arith.constant 0 : index
    %c0_16 = arith.constant 0 : index
    %41 = vector.load %arg2[%c0_15, %c0_16] : memref<128x384xbf16, #tpu.memory_space<vmem>>, vector<128x384xbf16>
    %cst_17 = arith.constant dense<0.000000e+00> : vector<128x384xf32>
    %42 = tpu.matmul %40, %41, %cst_17 {dimension_numbers = #tpu.dot_dimension_numbers<[1], [0], [0], [1], [0, 0, 1, 1], [], []>} : vector<128x128xbf16>, vector<128x384xbf16>, vector<128x384xf32> -> vector<128x384xf32>
    %43 = arith.truncf %42 : vector<128x384xf32> to vector<128x384xbf16>
    %44 = vector.extract_strided_slice %43 {offsets = [0, 0], sizes = [128, 32], strides = [1, 1]} : vector<128x384xbf16> to vector<128x32xbf16>
    %45 = vector.shape_cast %44 : vector<128x32xbf16> to vector<2x64x32xbf16>
    %46 = vector.extract_strided_slice %43 {offsets = [0, 32], sizes = [128, 32], strides = [1, 1]} : vector<128x384xbf16> to vector<128x32xbf16>
    %47 = vector.shape_cast %46 : vector<128x32xbf16> to vector<2x64x32xbf16>
    %48 = vector.extract_strided_slice %43 {offsets = [0, 64], sizes = [128, 32], strides = [1, 1]} : vector<128x384xbf16> to vector<128x32xbf16>
    %49 = vector.shape_cast %48 : vector<128x32xbf16> to vector<2x64x32xbf16>
    %50 = vector.extract_strided_slice %43 {offsets = [0, 96], sizes = [128, 32], strides = [1, 1]} : vector<128x384xbf16> to vector<128x32xbf16>
    %51 = vector.shape_cast %50 : vector<128x32xbf16> to vector<2x64x32xbf16>
    %52 = vector.shape_cast %45 : vector<2x64x32xbf16> to vector<1x2x64x32xbf16>
    %53 = vector.shape_cast %47 : vector<2x64x32xbf16> to vector<1x2x64x32xbf16>
    %54 = vector.shape_cast %49 : vector<2x64x32xbf16> to vector<1x2x64x32xbf16>
    %55 = vector.shape_cast %51 : vector<2x64x32xbf16> to vector<1x2x64x32xbf16>
    %56 = tpu.concatenate %52, %53, %54, %55 in 0 : vector<1x2x64x32xbf16>, vector<1x2x64x32xbf16>, vector<1x2x64x32xbf16>, vector<1x2x64x32xbf16> -> vector<4x2x64x32xbf16>
    %57 = vector.shape_cast %56 : vector<4x2x64x32xbf16> to vector<8x64x32xbf16>
    %58 = vector.extract_strided_slice %43 {offsets = [0, 128], sizes = [128, 32], strides = [1, 1]} : vector<128x384xbf16> to vector<128x32xbf16>
    %59 = vector.shape_cast %58 : vector<128x32xbf16> to vector<2x64x32xbf16>
    %60 = vector.extract_strided_slice %43 {offsets = [0, 160], sizes = [128, 32], strides = [1, 1]} : vector<128x384xbf16> to vector<128x32xbf16>
    %61 = vector.shape_cast %60 : vector<128x32xbf16> to vector<2x64x32xbf16>
    %62 = vector.extract_strided_slice %43 {offsets = [0, 192], sizes = [128, 32], strides = [1, 1]} : vector<128x384xbf16> to vector<128x32xbf16>
    %63 = vector.shape_cast %62 : vector<128x32xbf16> to vector<2x64x32xbf16>
    %64 = vector.extract_strided_slice %43 {offsets = [0, 224], sizes = [128, 32], strides = [1, 1]} : vector<128x384xbf16> to vector<128x32xbf16>
    %65 = vector.shape_cast %64 : vector<128x32xbf16> to vector<2x64x32xbf16>
    %66 = vector.shape_cast %59 : vector<2x64x32xbf16> to vector<1x2x64x32xbf16>
    %67 = vector.shape_cast %61 : vector<2x64x32xbf16> to vector<1x2x64x32xbf16>
    %68 = vector.shape_cast %63 : vector<2x64x32xbf16> to vector<1x2x64x32xbf16>
    %69 = vector.shape_cast %65 : vector<2x64x32xbf16> to vector<1x2x64x32xbf16>
    %70 = tpu.concatenate %66, %67, %68, %69 in 0 : vector<1x2x64x32xbf16>, vector<1x2x64x32xbf16>, vector<1x2x64x32xbf16>, vector<1x2x64x32xbf16> -> vector<4x2x64x32xbf16>
    %71 = vector.shape_cast %70 : vector<4x2x64x32xbf16> to vector<8x64x32xbf16>
    %72 = vector.extract_strided_slice %43 {offsets = [0, 256], sizes = [128, 32], strides = [1, 1]} : vector<128x384xbf16> to vector<128x32xbf16>
    %73 = vector.shape_cast %72 : vector<128x32xbf16> to vector<2x64x32xbf16>
    %74 = vector.extract_strided_slice %43 {offsets = [0, 288], sizes = [128, 32], strides = [1, 1]} : vector<128x384xbf16> to vector<128x32xbf16>
    %75 = vector.shape_cast %74 : vector<128x32xbf16> to vector<2x64x32xbf16>
    %76 = vector.extract_strided_slice %43 {offsets = [0, 320], sizes = [128, 32], strides = [1, 1]} : vector<128x384xbf16> to vector<128x32xbf16>
    %77 = vector.shape_cast %76 : vector<128x32xbf16> to vector<2x64x32xbf16>
    %78 = vector.extract_strided_slice %43 {offsets = [0, 352], sizes = [128, 32], strides = [1, 1]} : vector<128x384xbf16> to vector<128x32xbf16>
    %79 = vector.shape_cast %78 : vector<128x32xbf16> to vector<2x64x32xbf16>
    %80 = vector.shape_cast %73 : vector<2x64x32xbf16> to vector<1x2x64x32xbf16>
    %81 = vector.shape_cast %75 : vector<2x64x32xbf16> to vector<1x2x64x32xbf16>
    %82 = vector.shape_cast %77 : vector<2x64x32xbf16> to vector<1x2x64x32xbf16>
    %83 = vector.shape_cast %79 : vector<2x64x32xbf16> to vector<1x2x64x32xbf16>
    %84 = tpu.concatenate %80, %81, %82, %83 in 0 : vector<1x2x64x32xbf16>, vector<1x2x64x32xbf16>, vector<1x2x64x32xbf16>, vector<1x2x64x32xbf16> -> vector<4x2x64x32xbf16>
    %85 = vector.shape_cast %84 : vector<4x2x64x32xbf16> to vector<8x64x32xbf16>
    %86 = tpu.iota {dimensions = array<i32: 0>} : vector<64x64xi32>
    %87 = tpu.iota {dimensions = array<i32: 1>} : vector<64x64xi32>
    %88 = arith.cmpi sle, %87, %86 : vector<64x64xi32>
    %cst_18 = arith.constant 0.000000e+00 : f32
    %cst_19 = arith.constant -1.000000e+09 : f32
    %89 = vector.broadcast %cst_18 : f32 to vector<64x64xf32>
    %90 = vector.broadcast %cst_19 : f32 to vector<64x64xf32>
    %91 = arith.select %88, %89, %90 : vector<64x64xi1>, vector<64x64xf32>
    "tpu.trace_start"() <{level = 10 : i32, message = "gqd,gkd->gqk"}> : () -> ()
    %cst_20 = arith.constant dense<0.000000e+00> : vector<8x64x64xf32>
    %92 = tpu.matmul %57, %71, %cst_20 {dimension_numbers = #tpu.dot_dimension_numbers<[2], [2], [1], [1], [0, 0, 0, 1, 1, 1], [0], [0]>} : vector<8x64x32xbf16>, vector<8x64x32xbf16>, vector<8x64x64xf32> -> vector<8x64x64xf32>
    "tpu.trace_stop"() : () -> ()
    %93 = vector.shape_cast %91 : vector<64x64xf32> to vector<1x64x64xf32>
    %94 = vector.broadcast %93 : vector<1x64x64xf32> to vector<8x64x64xf32>
    %95 = arith.addf %92, %94 : vector<8x64x64xf32>
    %cst_21 = arith.constant dense<0xFF800000> : vector<8x64xf32>
    %96 = vector.multi_reduction <maximumf>, %95, %cst_21 [2] : vector<8x64x64xf32> to vector<8x64xf32>
    %97 = vector.shape_cast %96 : vector<8x64xf32> to vector<8x64x1xf32>
    %98 = vector.broadcast %97 : vector<8x64x1xf32> to vector<8x64x64xf32>
    %99 = arith.subf %95, %98 : vector<8x64x64xf32>
    %100 = math.exp %99 : vector<8x64x64xf32>
    %cst_22 = arith.constant dense<0.000000e+00> : vector<8x64xf32>
    %101 = vector.multi_reduction <add>, %100, %cst_22 [2] : vector<8x64x64xf32> to vector<8x64xf32>
    %102 = vector.shape_cast %101 : vector<8x64xf32> to vector<8x64x1xf32>
    %103 = arith.truncf %100 : vector<8x64x64xf32> to vector<8x64x64xbf16>
    "tpu.trace_start"() <{level = 10 : i32, message = "gqk,gkd->gqd"}> : () -> ()
    %cst_23 = arith.constant dense<0.000000e+00> : vector<8x64x32xf32>
    %104 = tpu.matmul %103, %85, %cst_23 {dimension_numbers = #tpu.dot_dimension_numbers<[2], [1], [1], [2], [0, 0, 0, 1, 1, 2], [0], [0]>} : vector<8x64x64xbf16>, vector<8x64x32xbf16>, vector<8x64x32xf32> -> vector<8x64x32xf32>
    "tpu.trace_stop"() : () -> ()
    %105 = tpu.reciprocal %102 {approx = true} : vector<8x64x1xf32> -> vector<8x64x1xf32>
    %106 = vector.broadcast %105 : vector<8x64x1xf32> to vector<8x64x32xf32>
    %107 = arith.mulf %104, %106 : vector<8x64x32xf32>
    %108 = vector.shape_cast %107 : vector<8x64x32xf32> to vector<4x2x64x32xf32>
    %109 = vector.extract_strided_slice %108 {offsets = [0, 0, 0, 0], sizes = [1, 2, 64, 32], strides = [1, 1, 1, 1]} : vector<4x2x64x32xf32> to vector<1x2x64x32xf32>
    %110 = vector.shape_cast %109 : vector<1x2x64x32xf32> to vector<2x64x32xf32>
    %111 = vector.extract_strided_slice %108 {offsets = [1, 0, 0, 0], sizes = [1, 2, 64, 32], strides = [1, 1, 1, 1]} : vector<4x2x64x32xf32> to vector<1x2x64x32xf32>
    %112 = vector.shape_cast %111 : vector<1x2x64x32xf32> to vector<2x64x32xf32>
    %113 = vector.extract_strided_slice %108 {offsets = [2, 0, 0, 0], sizes = [1, 2, 64, 32], strides = [1, 1, 1, 1]} : vector<4x2x64x32xf32> to vector<1x2x64x32xf32>
    %114 = vector.shape_cast %113 : vector<1x2x64x32xf32> to vector<2x64x32xf32>
    %115 = vector.extract_strided_slice %108 {offsets = [3, 0, 0, 0], sizes = [1, 2, 64, 32], strides = [1, 1, 1, 1]} : vector<4x2x64x32xf32> to vector<1x2x64x32xf32>
    %116 = vector.shape_cast %115 : vector<1x2x64x32xf32> to vector<2x64x32xf32>
    %117 = tpu.concatenate %110, %112, %114, %116 in 2 : vector<2x64x32xf32>, vector<2x64x32xf32>, vector<2x64x32xf32>, vector<2x64x32xf32> -> vector<2x64x128xf32>
    %118 = vector.shape_cast %117 : vector<2x64x128xf32> to vector<128x128xf32>
    %119 = arith.truncf %118 : vector<128x128xf32> to vector<128x128xbf16>
    %c0_24 = arith.constant 0 : index
    %c0_25 = arith.constant 0 : index
    %120 = vector.load %arg3[%c0_24, %c0_25] : memref<128x128xbf16, #tpu.memory_space<vmem>>, vector<128x128xbf16>
    %cst_26 = arith.constant dense<0.000000e+00> : vector<128x128xf32>
    %121 = tpu.matmul %119, %120, %cst_26 {dimension_numbers = #tpu.dot_dimension_numbers<[1], [0], [0], [1], [0, 0, 1, 1], [], []>} : vector<128x128xbf16>, vector<128x128xbf16>, vector<128x128xf32> -> vector<128x128xf32>
    %122 = vector.shape_cast %9 : vector<128xf32> to vector<1x128xf32>
    %123 = vector.broadcast %122 : vector<1x128xf32> to vector<128x128xf32>
    %124 = arith.addf %121, %123 : vector<128x128xf32>
    %125 = arith.addf %15, %124 : vector<128x128xf32>
    %cst_27 = arith.constant dense<0.000000e+00> : vector<128xf32>
    %126 = vector.multi_reduction <add>, %125, %cst_27 [1] : vector<128x128xf32> to vector<128xf32>
    %127 = vector.shape_cast %126 : vector<128xf32> to vector<128x1xf32>
    %cst_28 = arith.constant 1.280000e+02 : f32
    %128 = vector.broadcast %cst_28 : f32 to vector<128x1xf32>
    %129 = arith.divf %127, %128 : vector<128x1xf32>
    %130 = vector.broadcast %129 : vector<128x1xf32> to vector<128x128xf32>
    %131 = arith.subf %125, %130 : vector<128x128xf32>
    %132 = arith.mulf %131, %131 : vector<128x128xf32>
    %cst_29 = arith.constant dense<0.000000e+00> : vector<128xf32>
    %133 = vector.multi_reduction <add>, %132, %cst_29 [1] : vector<128x128xf32> to vector<128xf32>
    %134 = vector.shape_cast %133 : vector<128xf32> to vector<128x1xf32>
    %cst_30 = arith.constant 1.280000e+02 : f32
    %135 = vector.broadcast %cst_30 : f32 to vector<128x1xf32>
    %136 = arith.divf %134, %135 : vector<128x1xf32>
    %137 = vector.broadcast %129 : vector<128x1xf32> to vector<128x128xf32>
    %138 = arith.subf %125, %137 : vector<128x128xf32>
    %cst_31 = arith.constant 9.99999974E-6 : f32
    %139 = vector.broadcast %cst_31 : f32 to vector<128x1xf32>
    %140 = arith.addf %136, %139 : vector<128x1xf32>
    %141 = math.rsqrt %140 : vector<128x1xf32>
    %142 = vector.broadcast %141 : vector<128x1xf32> to vector<128x128xf32>
    %143 = arith.mulf %138, %142 : vector<128x128xf32>
    %144 = vector.shape_cast %5 : vector<128xf32> to vector<1x128xf32>
    %145 = vector.broadcast %144 : vector<1x128xf32> to vector<128x128xf32>
    %146 = arith.mulf %143, %145 : vector<128x128xf32>
    %147 = vector.shape_cast %7 : vector<128xf32> to vector<1x128xf32>
    %148 = vector.broadcast %147 : vector<1x128xf32> to vector<128x128xf32>
    %149 = arith.addf %146, %148 : vector<128x128xf32>
    %150 = arith.truncf %149 : vector<128x128xf32> to vector<128x128xbf16>
    %c0_32 = arith.constant 0 : index
    %c0_33 = arith.constant 0 : index
    %151 = vector.load %arg4[%c0_32, %c0_33] : memref<128x512xbf16, #tpu.memory_space<vmem>>, vector<128x512xbf16>
    %cst_34 = arith.constant dense<0.000000e+00> : vector<128x512xf32>
    %152 = tpu.matmul %150, %151, %cst_34 {dimension_numbers = #tpu.dot_dimension_numbers<[1], [0], [0], [1], [0, 0, 1, 1], [], []>} : vector<128x128xbf16>, vector<128x512xbf16>, vector<128x512xf32> -> vector<128x512xf32>
    %153 = vector.shape_cast %13 : vector<512xf32> to vector<1x512xf32>
    %154 = vector.broadcast %153 : vector<1x512xf32> to vector<128x512xf32>
    %155 = arith.addf %152, %154 : vector<128x512xf32>
    %cst_35 = arith.constant 0.000000e+00 : f32
    %156 = vector.broadcast %cst_35 : f32 to vector<128x512xf32>
    %157 = arith.maximumf %155, %156 : vector<128x512xf32>
    %158 = arith.truncf %157 : vector<128x512xf32> to vector<128x512xbf16>
    %c0_36 = arith.constant 0 : index
    %c0_37 = arith.constant 0 : index
    %159 = vector.load %arg6[%c0_36, %c0_37] : memref<512x128xbf16, #tpu.memory_space<vmem>>, vector<512x128xbf16>
    %cst_38 = arith.constant dense<0.000000e+00> : vector<128x128xf32>
    %160 = tpu.matmul %158, %159, %cst_38 {dimension_numbers = #tpu.dot_dimension_numbers<[1], [0], [0], [1], [0, 0, 1, 1], [], []>} : vector<128x512xbf16>, vector<512x128xbf16>, vector<128x128xf32> -> vector<128x128xf32>
    %161 = vector.shape_cast %11 : vector<128xf32> to vector<1x128xf32>
    %162 = vector.broadcast %161 : vector<1x128xf32> to vector<128x128xf32>
    %163 = arith.addf %160, %162 : vector<128x128xf32>
    %cst_39 = arith.constant 0.000000e+00 : f32
    %164 = vector.broadcast %cst_39 : f32 to vector<128x128xf32>
    %165 = arith.maximumf %163, %164 : vector<128x128xf32>
    %166 = arith.addf %125, %165 : vector<128x128xf32>
    %167 = vector.shape_cast %166 : vector<128x128xf32> to vector<2x64x128xf32>
    %c0_40 = arith.constant 0 : index
    %c0_41 = arith.constant 0 : index
    %c0_42 = arith.constant 0 : index
    %168 = vector.load %arg8[%c0_40, %c0_41, %c0_42] : memref<2x64x128xf32, #tpu.memory_space<vmem>>, vector<2x64x128xf32>
    tpu.vector_store %arg8[%c0_40, %c0_41, %c0_42], %167 {strides = array<i32>} : memref<2x64x128xf32, #tpu.memory_space<vmem>>, vector<2x64x128xf32>,
    return
  }
  func.func @transform_0(%arg0: i32) -> (i32, i32, i32) {
    %c0_i32 = arith.constant 0 : i32
    %c0_i32_0 = arith.constant 0 : i32
    %c0_i32_1 = arith.constant 0 : i32
    return %arg0, %c0_i32, %c0_i32_0 : i32, i32, i32
  }
  func.func @transform_1(%arg0: i32) -> (i32, i32) {
    %c0_i32 = arith.constant 0 : i32
    %c0_i32_0 = arith.constant 0 : i32
    %c0_i32_1 = arith.constant 0 : i32
    return %c0_i32, %c0_i32_0 : i32, i32
  }
  func.func @transform_2(%arg0: i32) -> (i32, i32) {
    %c0_i32 = arith.constant 0 : i32
    %c0_i32_0 = arith.constant 0 : i32
    %c0_i32_1 = arith.constant 0 : i32
    return %c0_i32, %c0_i32_0 : i32, i32
  }
  func.func @transform_3(%arg0: i32) -> (i32, i32) {
    %c0_i32 = arith.constant 0 : i32
    %c0_i32_0 = arith.constant 0 : i32
    %c0_i32_1 = arith.constant 0 : i32
    return %c0_i32, %c0_i32_0 : i32, i32
  }
  func.func @transform_4(%arg0: i32) -> (i32, i32) {
    %c0_i32 = arith.constant 0 : i32
    %c0_i32_0 = arith.constant 0 : i32
    %c0_i32_1 = arith.constant 0 : i32
    return %c0_i32, %c0_i32_0 : i32, i32
  }
  func.func @transform_5(%arg0: i32) -> (i32, i32) {
    %c0_i32 = arith.constant 0 : i32
    %c0_i32_0 = arith.constant 0 : i32
    %c0_i32_1 = arith.constant 0 : i32
    return %c0_i32, %c0_i32_0 : i32, i32
  }
  func.func @transform_6(%arg0: i32) -> (i32, i32) {
    %c0_i32 = arith.constant 0 : i32
    %c0_i32_0 = arith.constant 0 : i32
    %c0_i32_1 = arith.constant 0 : i32
    return %c0_i32, %c0_i32_0 : i32, i32
  }
  func.func @transform_7(%arg0: i32) -> (i32, i32, i32) {
    %c0_i32 = arith.constant 0 : i32
    %c0_i32_0 = arith.constant 0 : i32
    %c0_i32_1 = arith.constant 0 : i32
    return %arg0, %c0_i32, %c0_i32_0 : i32, i32, i32
  }
}

</mosaic_0001>

<llo_original>
// kernel: tpu_custom_call.1
$region0: #{tpu_custom_call.1}
  #allocation0 [shape = 'u32[]', space=smem, size = 0x4, offset = 0x4, fixed_abs, tag = 'smem constant byte address 0x4 - core index']
  #allocation1 [shape = 'u32[144,128]{1,0:T(1,128)}', space=vmem, size = 0x12000, scoped, tag = 'internal scratch']
  %s0 = inlined_call_operand.hbm [shape: f32[2,64,128], index: 0, kind: input, shape index: {}]
  %s1 = inlined_call_operand.hbm [shape: bf16[128,384], index: 1, kind: input, shape index: {}]
  %s2 = inlined_call_operand.hbm [shape: bf16[128,128], index: 2, kind: input, shape index: {}]
  %s3 = inlined_call_operand.hbm [shape: bf16[128,512], index: 3, kind: input, shape index: {}]
  %s4 = inlined_call_operand.vmem [shape: f32[1,512], index: 4, kind: input, shape index: {}]
  %s5 = inlined_call_operand.hbm [shape: bf16[512,128], index: 5, kind: input, shape index: {}]
  %s6 = inlined_call_operand.vmem [shape: f32[6,128], index: 6, kind: input, shape index: {}]
  %s7 = inlined_call_operand.hbm [shape: f32[2,64,128], index: 7, kind: output, shape index: {}]
  %s8 = sld [smem:[#allocation0]]
  $region58: #{tpu_custom_call.1} parent=0
    _
  %s10 = ssub.s32 1, %s8
  %s11 = scalar_select 0, %s10, %s8
  $region1: #{tpu_custom_call.1} parent=0
    #allocation2 [shape = 'u8[65536]{0}', space=vmem, size = 0x10000, scoped, tag = 'input window, operand 0, single buffered']
    #allocation3 [shape = 's32[1]{0}', space=sflag, size = 0x4, scoped, tag = 'scoped memory for tpu_custom_call.1']
    #allocation4 [shape = 's32[1]{0}', space=sflag, size = 0x4, scoped, tag = 'scoped memory for tpu_custom_call.1']
    #allocation5 [shape = 'u8[98304]{0}', space=vmem, size = 0x18000, scoped, tag = 'input window, operand 1, single buffered']
    #allocation6 [shape = 's32[1]{0}', space=sflag, size = 0x4, scoped, tag = 'scoped memory for tpu_custom_call.1']
    #allocation7 [shape = 'u8[32768]{0}', space=vmem, size = 0x8000, scoped, tag = 'input window, operand 2, single buffered']
    #allocation8 [shape = 'u8[131072]{0}', space=vmem, size = 0x20000, scoped, tag = 'input window, operand 3, single buffered']
    #allocation9 [shape = 's32[1]{0}', space=sflag, size = 0x4, scoped, tag = 'scoped memory for tpu_custom_call.1']
    #allocation10 [shape = 'u8[131072]{0}', space=vmem, size = 0x20000, scoped, tag = 'input window, operand 5, single buffered']
    #allocation11 [shape = 'u8[65536]{0}', space=vmem, size = 0x10000, scoped, tag = 'output window, operand 0, single buffered']
    %12 = vsyncpa [#allocation3], 0
    %13 = vsyncpa [#allocation6], 0
    %14 = vsyncpa [#allocation9], 0
    %15 = vsyncpa [#allocation4], 0
    // Predicated region
    $region2: #{tpu_custom_call.1} parent=1 // pred_check
      _
    $region3: #{tpu_custom_call.1} parent=1 // pred_check_branch
      %17 = sbr.rel (0) target = $region5
    $region4: #{tpu_custom_call.1} parent=1 // pred_region
      %s19 = ssub.s32 2048, 2048
      %20 = vsyncadd [#allocation3], %s19
      %s21 = sshll.u32 [#allocation2], 4
      %s22 = int_to_ptr.vmem [resolvable:$true] %s21
      %27 = dma.hbm_to_vmem [thread:$0]  %s0, 2048, %s22, [#allocation3], 128, 128, 8
    $region5: #{tpu_custom_call.1} parent=1 // pred_fallthru
      _
    // Predicated region
    $region6: #{tpu_custom_call.1} parent=1 // pred_check
      _
    $region7: #{tpu_custom_call.1} parent=1 // pred_check_branch
      %29 = sbr.rel (0) target = $region9
    $region8: #{tpu_custom_call.1} parent=1 // pred_region
      %s31 = ssub.s32 3072, 3072
      %32 = vsyncadd [#allocation6], %s31
      %s33 = sshll.u32 [#allocation5], 4
      %s34 = int_to_ptr.vmem [resolvable:$true] %s33
      %39 = dma.hbm_to_vmem [thread:$0]  %s1, 3072, %s34, [#allocation6], 192, 192, 12
    $region9: #{tpu_custom_call.1} parent=1 // pred_fallthru
      _
    // Predicated region
    $region10: #{tpu_custom_call.1} parent=1 // pred_check
      _
    $region11: #{tpu_custom_call.1} parent=1 // pred_check_branch
      %41 = sbr.rel (0) target = $region13
    $region12: #{tpu_custom_call.1} parent=1 // pred_region
      %s43 = ssub.s32 1024, 1024
      %44 = vsyncadd [#allocation6], %s43
      %s45 = sshll.u32 [#allocation7], 4
      %s46 = int_to_ptr.vmem [resolvable:$true] %s45
      %51 = dma.hbm_to_vmem [thread:$0]  %s2, 1024, %s46, [#allocation6], 64, 64, 4
    $region13: #{tpu_custom_call.1} parent=1 // pred_fallthru
      _
    // Predicated region
    $region14: #{tpu_custom_call.1} parent=1 // pred_check
      _
    $region15: #{tpu_custom_call.1} parent=1 // pred_check_branch
      %53 = sbr.rel (0) target = $region17
    $region16: #{tpu_custom_call.1} parent=1 // pred_region
      %s55 = ssub.s32 4096, 4096
      %56 = vsyncadd [#allocation9], %s55
      %s57 = sshll.u32 [#allocation8], 4
      %s58 = int_to_ptr.vmem [resolvable:$true] %s57
      %63 = dma.hbm_to_vmem [thread:$0]  %s3, 4096, %s58, [#allocation9], 256, 256, 16
    $region17: #{tpu_custom_call.1} parent=1 // pred_fallthru
      _
    // Predicated region
    $region18: #{tpu_custom_call.1} parent=1 // pred_check
      _
    $region19: #{tpu_custom_call.1} parent=1 // pred_check_branch
      %65 = sbr.rel (0) target = $region21
    $region20: #{tpu_custom_call.1} parent=1 // pred_region
      _
    $region21: #{tpu_custom_call.1} parent=1 // pred_fallthru
      _
    // Predicated region
    $region22: #{tpu_custom_call.1} parent=1 // pred_check
      _
    $region23: #{tpu_custom_call.1} parent=1 // pred_check_branch
      %67 = sbr.rel (0) target = $region25
    $region24: #{tpu_custom_call.1} parent=1 // pred_region
      %s69 = ssub.s32 4096, 4096
      %70 = vsyncadd [#allocation9], %s69
      %s71 = sshll.u32 [#allocation10], 4
      %s72 = int_to_ptr.vmem [resolvable:$true] %s71
      %77 = dma.hbm_to_vmem [thread:$0]  %s5, 4096, %s72, [#allocation9], 64, 64, 4
    $region25: #{tpu_custom_call.1} parent=1 // pred_fallthru
      _
    // Predicated region
    $region26: #{tpu_custom_call.1} parent=1 // pred_check
      _
    $region27: #{tpu_custom_call.1} parent=1 // pred_check_branch
      %79 = sbr.rel (0) target = $region29
    $region28: #{tpu_custom_call.1} parent=1 // pred_region
      _
    $region29: #{tpu_custom_call.1} parent=1 // pred_fallthru
      _
    // Predicated region
    $region30: #{tpu_custom_call.1} parent=1 // pred_check
      _
    $region31: #{tpu_custom_call.1} parent=1 // pred_check_branch
      %81 = sbr.rel (0) target = $region33
    $region32: #{tpu_custom_call.1} parent=1 // pred_region
      %82 = dma.done [#allocation3], 2048
    $region33: #{tpu_custom_call.1} parent=1 // pred_fallthru
      _
    // Predicated region
    $region34: #{tpu_custom_call.1} parent=1 // pred_check
      _
    $region35: #{tpu_custom_call.1} parent=1 // pred_check_branch
      %84 = sbr.rel (0) target = $region37
    $region36: #{tpu_custom_call.1} parent=1 // pred_region
      %85 = dma.done [#allocation6], 3072
    $region37: #{tpu_custom_call.1} parent=1 // pred_fallthru
      _
    // Predicated region
    $region38: #{tpu_custom_call.1} parent=1 // pred_check
      _
    $region39: #{tpu_custom_call.1} parent=1 // pred_check_branch
      %87 = sbr.rel (0) target = $region41
    $region40: #{tpu_custom_call.1} parent=1 // pred_region
      %88 = dma.done [#allocation6], 1024
    $region41: #{tpu_custom_call.1} parent=1 // pred_fallthru
      _
    // Predicated region
    $region42: #{tpu_custom_call.1} parent=1 // pred_check
      _
    $region43: #{tpu_custom_call.1} parent=1 // pred_check_branch
      %90 = sbr.rel (0) target = $region45
    $region44: #{tpu_custom_call.1} parent=1 // pred_region
      %91 = dma.done [#allocation9], 4096
    $region45: #{tpu_custom_call.1} parent=1 // pred_fallthru
      _
    // Predicated region
    $region46: #{tpu_custom_call.1} parent=1 // pred_check
      _
    $region47: #{tpu_custom_call.1} parent=1 // pred_check_branch
      %93 = sbr.rel (0) target = $region49
    $region48: #{tpu_custom_call.1} parent=1 // pred_region
      %94 = dma.done [#allocation9], 4096
    $region49: #{tpu_custom_call.1} parent=1 // pred_fallthru
      _
    %v96 = vld [vmem:[%s6] sm:$0x1]
    %v97 = vld [vmem:[%s6 + $0x1] sm:$0x1]
    %v98 = vld [vmem:[%s6 + $0x2] sm:$0x1]
    %v99 = vld [vmem:[%s6 + $0x3] sm:$0x1]
    %v100 = vld [vmem:[%s6 + $0x4] sm:$0x1]
    %v101 = vld [vmem:[%s6 + $0x5] sm:$0x1]
    %v102 = vld [vmem:[%s4] sm:$0xf]
    %v103 = vld [vmem:[#allocation2] sm:$0xff]
    %v104 = vld [vmem:[#allocation2 + $0x8] sm:$0xff]
    %v105 = vld [vmem:[#allocation2 + $0x10] sm:$0xff]
    %v106 = vld [vmem:[#allocation2 + $0x18] sm:$0xff]
    %v107 = vld [vmem:[#allocation2 + $0x20] sm:$0xff]
    %v108 = vld [vmem:[#allocation2 + $0x28] sm:$0xff]
    %v109 = vld [vmem:[#allocation2 + $0x30] sm:$0xff]
    %v110 = vld [vmem:[#allocation2 + $0x38] sm:$0xff]
    %v111 = vld [vmem:[#allocation2 + $0x40] sm:$0xff]
    %v112 = vld [vmem:[#allocation2 + $0x48] sm:$0xff]
    %v113 = vld [vmem:[#allocation2 + $0x50] sm:$0xff]
    %v114 = vld [vmem:[#allocation2 + $0x58] sm:$0xff]
    %v115 = vld [vmem:[#allocation2 + $0x60] sm:$0xff]
    %v116 = vld [vmem:[#allocation2 + $0x68] sm:$0xff]
    %v117 = vld [vmem:[#allocation2 + $0x70] sm:$0xff]
    %v118 = vld [vmem:[#allocation2 + $0x78] sm:$0xff]
    %119 = vadd.xlane.f32.xlu0 %v103
    %v120 = vpop.xlane.xlu0 %119
    %121 = vadd.xlane.f32.xlu0 %v104
    %v122 = vpop.xlane.xlu0 %121
    %123 = vadd.xlane.f32.xlu0 %v105
    %v124 = vpop.xlane.xlu0 %123
    %125 = vadd.xlane.f32.xlu0 %v106
    %v126 = vpop.xlane.xlu0 %125
    %127 = vadd.xlane.f32.xlu0 %v107
    %v128 = vpop.xlane.xlu0 %127
    %129 = vadd.xlane.f32.xlu0 %v108
    %v130 = vpop.xlane.xlu0 %129
    %131 = vadd.xlane.f32.xlu0 %v109
    %v132 = vpop.xlane.xlu0 %131
    %133 = vadd.xlane.f32.xlu0 %v110
    %v134 = vpop.xlane.xlu0 %133
    %135 = vadd.xlane.f32.xlu0 %v111
    %v136 = vpop.xlane.xlu0 %135
    %137 = vadd.xlane.f32.xlu0 %v112
    %v138 = vpop.xlane.xlu0 %137
    %139 = vadd.xlane.f32.xlu0 %v113
    %v140 = vpop.xlane.xlu0 %139
    %141 = vadd.xlane.f32.xlu0 %v114
    %v142 = vpop.xlane.xlu0 %141
    %143 = vadd.xlane.f32.xlu0 %v115
    %v144 = vpop.xlane.xlu0 %143
    %145 = vadd.xlane.f32.xlu0 %v116
    %v146 = vpop.xlane.xlu0 %145
    %147 = vadd.xlane.f32.xlu0 %v117
    %v148 = vpop.xlane.xlu0 %147
    %149 = vadd.xlane.f32.xlu0 %v118
    %v150 = vpop.xlane.xlu0 %149
    %v151 = vrcp.pop 128.0
    %v152 = vmul.f32 %v120, %v151
    %v153 = vmul.f32 %v122, %v151
    %v154 = vmul.f32 %v124, %v151
    %v155 = vmul.f32 %v126, %v151
    %v156 = vmul.f32 %v128, %v151
    %v157 = vmul.f32 %v130, %v151
    %v158 = vmul.f32 %v132, %v151
    %v159 = vmul.f32 %v134, %v151
    %v160 = vmul.f32 %v136, %v151
    %v161 = vmul.f32 %v138, %v151
    %v162 = vmul.f32 %v140, %v151
    %v163 = vmul.f32 %v142, %v151
    %v164 = vmul.f32 %v144, %v151
    %v165 = vmul.f32 %v146, %v151
    %v166 = vmul.f32 %v148, %v151
    %v167 = vmul.f32 %v150, %v151
    %v168 = vsub.f32 %v103, %v152
    %v169 = vsub.f32 %v104, %v153
    %v170 = vsub.f32 %v105, %v154
    %v171 = vsub.f32 %v106, %v155
    %v172 = vsub.f32 %v107, %v156
    %v173 = vsub.f32 %v108, %v157
    %v174 = vsub.f32 %v109, %v158
    %v175 = vsub.f32 %v110, %v159
    %v176 = vsub.f32 %v111, %v160
    %v177 = vsub.f32 %v112, %v161
    %v178 = vsub.f32 %v113, %v162
    %v179 = vsub.f32 %v114, %v163
    %v180 = vsub.f32 %v115, %v164
    %v181 = vsub.f32 %v116, %v165
    %v182 = vsub.f32 %v117, %v166
    %v183 = vsub.f32 %v118, %v167
    %v184 = vmul.f32 %v168, %v168
    %v185 = vmul.f32 %v169, %v169
    %v186 = vmul.f32 %v170, %v170
    %v187 = vmul.f32 %v171, %v171
    %v188 = vmul.f32 %v172, %v172
    %v189 = vmul.f32 %v173, %v173
    %v190 = vmul.f32 %v174, %v174
    %v191 = vmul.f32 %v175, %v175
    %v192 = vmul.f32 %v176, %v176
    %v193 = vmul.f32 %v177, %v177
    %v194 = vmul.f32 %v178, %v178
    %v195 = vmul.f32 %v179, %v179
    %v196 = vmul.f32 %v180, %v180
    %v197 = vmul.f32 %v181, %v181
    %v198 = vmul.f32 %v182, %v182
    %v199 = vmul.f32 %v183, %v183
    %200 = vadd.xlane.f32.xlu0 %v184
    %v201 = vpop.xlane.xlu0 %200
    %202 = vadd.xlane.f32.xlu0 %v185
    %v203 = vpop.xlane.xlu0 %202
    %204 = vadd.xlane.f32.xlu0 %v186
    %v205 = vpop.xlane.xlu0 %204
    %206 = vadd.xlane.f32.xlu0 %v187
    %v207 = vpop.xlane.xlu0 %206
    %208 = vadd.xlane.f32.xlu0 %v188
    %v209 = vpop.xlane.xlu0 %208
    %210 = vadd.xlane.f32.xlu0 %v189
    %v211 = vpop.xlane.xlu0 %210
    %212 = vadd.xlane.f32.xlu0 %v190
    %v213 = vpop.xlane.xlu0 %212
    %214 = vadd.xlane.f32.xlu0 %v191
    %v215 = vpop.xlane.xlu0 %214
    %216 = vadd.xlane.f32.xlu0 %v192
    %v217 = vpop.xlane.xlu0 %216
    %218 = vadd.xlane.f32.xlu0 %v193
    %v219 = vpop.xlane.xlu0 %218
    %220 = vadd.xlane.f32.xlu0 %v194
    %v221 = vpop.xlane.xlu0 %220
    %222 = vadd.xlane.f32.xlu0 %v195
    %v223 = vpop.xlane.xlu0 %222
    %224 = vadd.xlane.f32.xlu0 %v196
    %v225 = vpop.xlane.xlu0 %224
    %226 = vadd.xlane.f32.xlu0 %v197
    %v227 = vpop.xlane.xlu0 %226
    %228 = vadd.xlane.f32.xlu0 %v198
    %v229 = vpop.xlane.xlu0 %228
    %230 = vadd.xlane.f32.xlu0 %v199
    %v231 = vpop.xlane.xlu0 %230
    %v232 = vmul.f32 %v201, %v151
    %v233 = vmul.f32 %v203, %v151
    %v234 = vmul.f32 %v205, %v151
    %v235 = vmul.f32 %v207, %v151
    %v236 = vmul.f32 %v209, %v151
    %v237 = vmul.f32 %v211, %v151
    %v238 = vmul.f32 %v213, %v151
    %v239 = vmul.f32 %v215, %v151
    %v240 = vmul.f32 %v217, %v151
    %v241 = vmul.f32 %v219, %v151
    %v242 = vmul.f32 %v221, %v151
    %v243 = vmul.f32 %v223, %v151
    %v244 = vmul.f32 %v225, %v151
    %v245 = vmul.f32 %v227, %v151
    %v246 = vmul.f32 %v229, %v151
    %v247 = vmul.f32 %v231, %v151
    %v248 = vadd.f32 %v232, 1e-05
    %v249 = vadd.f32 %v233, 1e-05
    %v250 = vadd.f32 %v234, 1e-05
    %v251 = vadd.f32 %v235, 1e-05
    %v252 = vadd.f32 %v236, 1e-05
    %v253 = vadd.f32 %v237, 1e-05
    %v254 = vadd.f32 %v238, 1e-05
    %v255 = vadd.f32 %v239, 1e-05
    %v256 = vadd.f32 %v240, 1e-05
    %v257 = vadd.f32 %v241, 1e-05
    %v258 = vadd.f32 %v242, 1e-05
    %v259 = vadd.f32 %v243, 1e-05
    %v260 = vadd.f32 %v244, 1e-05
    %v261 = vadd.f32 %v245, 1e-05
    %v262 = vadd.f32 %v246, 1e-05
    %v263 = vadd.f32 %v247, 1e-05
    %v264 = vrsqrt.pop %v248
    %v265 = vrsqrt.pop %v249
    %v266 = vrsqrt.pop %v250
    %v267 = vrsqrt.pop %v251
    %v268 = vrsqrt.pop %v252
    %v269 = vrsqrt.pop %v253
    %v270 = vrsqrt.pop %v254
    %v271 = vrsqrt.pop %v255
    %v272 = vrsqrt.pop %v256
    %v273 = vrsqrt.pop %v257
    %v274 = vrsqrt.pop %v258
    %v275 = vrsqrt.pop %v259
    %v276 = vrsqrt.pop %v260
    %v277 = vrsqrt.pop %v261
    %v278 = vrsqrt.pop %v262
    %v279 = vrsqrt.pop %v263
    %v280 = vmul.f32 %v168, %v264
    %v281 = vmul.f32 %v169, %v265
    %v282 = vmul.f32 %v170, %v266
    %v283 = vmul.f32 %v171, %v267
    %v284 = vmul.f32 %v172, %v268
    %v285 = vmul.f32 %v173, %v269
    %v286 = vmul.f32 %v174, %v270
    %v287 = vmul.f32 %v175, %v271
    %v288 = vmul.f32 %v176, %v272
    %v289 = vmul.f32 %v177, %v273
    %v290 = vmul.f32 %v178, %v274
    %v291 = vmul.f32 %v179, %v275
    %v292 = vmul.f32 %v180, %v276
    %v293 = vmul.f32 %v181, %v277
    %v294 = vmul.f32 %v182, %v278
    %v295 = vmul.f32 %v183, %v279
    %v296 = vlaneseq
    %v297 = vshrl.u32 %v296, 7
    %v298 = vsub.s32 0, %v297
    %v299 = vrot.slane %v96, %v298
    %v300 = vmul.f32 %v280, %v299
    %v301 = vmul.f32 %v281, %v299
    %v302 = vmul.f32 %v282, %v299
    %v303 = vmul.f32 %v283, %v299
    %v304 = vmul.f32 %v284, %v299
    %v305 = vmul.f32 %v285, %v299
    %v306 = vmul.f32 %v286, %v299
    %v307 = vmul.f32 %v287, %v299
    %v308 = vmul.f32 %v288, %v299
    %v309 = vmul.f32 %v289, %v299
    %v310 = vmul.f32 %v290, %v299
    %v311 = vmul.f32 %v291, %v299
    %v312 = vmul.f32 %v292, %v299
    %v313 = vmul.f32 %v293, %v299
    %v314 = vmul.f32 %v294, %v299
    %v315 = vmul.f32 %v295, %v299
    %v316 = vlaneseq
    %v317 = vshrl.u32 %v316, 7
    %v318 = vsub.s32 0, %v317
    %v319 = vrot.slane %v97, %v318
    %v320 = vadd.f32 %v300, %v319
    %v321 = vadd.f32 %v301, %v319
    %v322 = vadd.f32 %v302, %v319
    %v323 = vadd.f32 %v303, %v319
    %v324 = vadd.f32 %v304, %v319
    %v325 = vadd.f32 %v305, %v319
    %v326 = vadd.f32 %v306, %v319
    %v327 = vadd.f32 %v307, %v319
    %v328 = vadd.f32 %v308, %v319
    %v329 = vadd.f32 %v309, %v319
    %v330 = vadd.f32 %v310, %v319
    %v331 = vadd.f32 %v311, %v319
    %v332 = vadd.f32 %v312, %v319
    %v333 = vadd.f32 %v313, %v319
    %v334 = vadd.f32 %v314, %v319
    %v335 = vadd.f32 %v315, %v319
    %v336 = vpack.c.bf16 %v321, %v320
    %v337 = vpack.c.bf16 %v323, %v322
    %v338 = vpack.c.bf16 %v325, %v324
    %v339 = vpack.c.bf16 %v327, %v326
    %v340 = vpack.c.bf16 %v329, %v328
    %v341 = vpack.c.bf16 %v331, %v330
    %v342 = vpack.c.bf16 %v333, %v332
    %v343 = vpack.c.bf16 %v335, %v334
    %v344 = vld [vmem:[#allocation5] sm:$0xff]
    %v345 = vld [vmem:[#allocation5 + $0x8] sm:$0xf]
    %v346 = vld [vmem:[#allocation5 + $0xc] sm:$0xff]
    %v347 = vld [vmem:[#allocation5 + $0x14] sm:$0xf]
    %v348 = vld [vmem:[#allocation5 + $0x18] sm:$0xff]
    %v349 = vld [vmem:[#allocation5 + $0x20] sm:$0xf]
    %v350 = vld [vmem:[#allocation5 + $0x24] sm:$0xff]
    %v351 = vld [vmem:[#allocation5 + $0x2c] sm:$0xf]
    %v352 = vld [vmem:[#allocation5 + $0x30] sm:$0xff]
    %v353 = vld [vmem:[#allocation5 + $0x38] sm:$0xf]
    %v354 = vld [vmem:[#allocation5 + $0x3c] sm:$0xff]
    %v355 = vld [vmem:[#allocation5 + $0x44] sm:$0xf]
    %v356 = vld [vmem:[#allocation5 + $0x48] sm:$0xff]
    %v357 = vld [vmem:[#allocation5 + $0x50] sm:$0xf]
    %v358 = vld [vmem:[#allocation5 + $0x54] sm:$0xff]
    %v359 = vld [vmem:[#allocation5 + $0x5c] sm:$0xf]
    %v360 = vld [vmem:[#allocation5 + $0x60] sm:$0xff]
    %v361 = vld [vmem:[#allocation5 + $0x68] sm:$0xf]
    %v362 = vld [vmem:[#allocation5 + $0x6c] sm:$0xff]
    %v363 = vld [vmem:[#allocation5 + $0x74] sm:$0xf]
    %v364 = vld [vmem:[#allocation5 + $0x78] sm:$0xff]
    %v365 = vld [vmem:[#allocation5 + $0x80] sm:$0xf]
    %v366 = vld [vmem:[#allocation5 + $0x84] sm:$0xff]
    %v367 = vld [vmem:[#allocation5 + $0x8c] sm:$0xf]
    %v368 = vld [vmem:[#allocation5 + $0x90] sm:$0xff]
    %v369 = vld [vmem:[#allocation5 + $0x98] sm:$0xf]
    %v370 = vld [vmem:[#allocation5 + $0x9c] sm:$0xff]
    %v371 = vld [vmem:[#allocation5 + $0xa4] sm:$0xf]
    %v372 = vld [vmem:[#allocation5 + $0xa8] sm:$0xff]
    %v373 = vld [vmem:[#allocation5 + $0xb0] sm:$0xf]
    %v374 = vld [vmem:[#allocation5 + $0xb4] sm:$0xff]
    %v375 = vld [vmem:[#allocation5 + $0xbc] sm:$0xf]
    %v408 = vunpack.c.l.b16 %v344
    %v409 = vunpack.c.h.b16 %v344
    %v410 = vunpack.c.l.b16 %v345
    %v411 = vunpack.c.l.b16 %v346
    %v412 = vunpack.c.h.b16 %v346
    %v413 = vunpack.c.l.b16 %v347
    %v414 = vunpack.c.l.b16 %v348
    %v415 = vunpack.c.h.b16 %v348
    %v416 = vunpack.c.l.b16 %v349
    %v417 = vunpack.c.l.b16 %v350
    %v418 = vunpack.c.h.b16 %v350
    %v419 = vunpack.c.l.b16 %v351
    %v420 = vunpack.c.l.b16 %v352
    %v421 = vunpack.c.h.b16 %v352
    %v422 = vunpack.c.l.b16 %v353
    %v423 = vunpack.c.l.b16 %v354
    %v424 = vunpack.c.h.b16 %v354
    %v425 = vunpack.c.l.b16 %v355
    %v426 = vunpack.c.l.b16 %v356
    %v427 = vunpack.c.h.b16 %v356
    %v428 = vunpack.c.l.b16 %v357
    %v429 = vunpack.c.l.b16 %v358
    %v430 = vunpack.c.h.b16 %v358
    %v431 = vunpack.c.l.b16 %v359
    %v432 = vunpack.c.l.b16 %v360
    %v433 = vunpack.c.h.b16 %v360
    %v434 = vunpack.c.l.b16 %v361
    %v435 = vunpack.c.l.b16 %v362
    %v436 = vunpack.c.h.b16 %v362
    %v437 = vunpack.c.l.b16 %v363
    %v438 = vunpack.c.l.b16 %v364
    %v439 = vunpack.c.h.b16 %v364
    %v440 = vunpack.c.l.b16 %v365
    %v441 = vunpack.c.l.b16 %v366
    %v442 = vunpack.c.h.b16 %v366
    %v443 = vunpack.c.l.b16 %v367
    %v444 = vunpack.c.l.b16 %v368
    %v445 = vunpack.c.h.b16 %v368
    %v446 = vunpack.c.l.b16 %v369
    %v447 = vunpack.c.l.b16 %v370
    %v448 = vunpack.c.h.b16 %v370
    %v449 = vunpack.c.l.b16 %v371
    %v450 = vunpack.c.l.b16 %v372
    %v451 = vunpack.c.h.b16 %v372
    %v452 = vunpack.c.l.b16 %v373
    %v453 = vunpack.c.l.b16 %v374
    %v454 = vunpack.c.h.b16 %v374
    %v455 = vunpack.c.l.b16 %v375
    %v456 = vpack.c.b16 %v411, %v408
    %v457 = vpack.c.b16 %v412, %v409
    %v458 = vpack.c.b16 %v413, %v410
    %v459 = vpack.c.b16 %v417, %v414
    %v460 = vpack.c.b16 %v418, %v415
    %v461 = vpack.c.b16 %v419, %v416
    %v462 = vpack.c.b16 %v423, %v420
    %v463 = vpack.c.b16 %v424, %v421
    %v464 = vpack.c.b16 %v425, %v422
    %v465 = vpack.c.b16 %v429, %v426
    %v466 = vpack.c.b16 %v430, %v427
    %v467 = vpack.c.b16 %v431, %v428
    %v468 = vpack.c.b16 %v435, %v432
    %v469 = vpack.c.b16 %v436, %v433
    %v470 = vpack.c.b16 %v437, %v434
    %v471 = vpack.c.b16 %v441, %v438
    %v472 = vpack.c.b16 %v442, %v439
    %v473 = vpack.c.b16 %v443, %v440
    %v474 = vpack.c.b16 %v447, %v444
    %v475 = vpack.c.b16 %v448, %v445
    %v476 = vpack.c.b16 %v449, %v446
    %v477 = vpack.c.b16 %v453, %v450
    %v478 = vpack.c.b16 %v454, %v451
    %v479 = vpack.c.b16 %v455, %v452
    %504 = vmatprep.subr.bf16.mxu0 %v457
    %505 = vmatpush1.bf16.msra.mxu0 %v456
    %506 = vmatprep.subr.bf16.mxu0 %v460
    %507 = vmatpush1.bf16.msra.mxu0 %v459
    %508 = vmatprep.subr.bf16.mxu0 %v463
    %509 = vmatpush1.bf16.msra.mxu0 %v462
    %510 = vmatprep.subr.bf16.mxu0 %v466
    %511 = vmatpush1.bf16.msra.mxu0 %v465
    %512 = vmatprep.subr.bf16.mxu0 %v469
    %513 = vmatpush1.bf16.msra.mxu0 %v468
    %514 = vmatprep.subr.bf16.mxu0 %v472
    %515 = vmatpush1.bf16.msra.mxu0 %v471
    %516 = vmatprep.subr.bf16.mxu0 %v475
    %517 = vmatpush1.bf16.msra.mxu0 %v474
    %518 = vmatprep.subr.bf16.mxu0 %v478
    %519 = vmatpush1.bf16.msra.mxu0 %v477
    %520 = vmatprep.subr.bf16.mxu0 0
    %521 = vmatpush1.bf16.msra.mxu0 0
    %522 = vmatprep.subr.bf16.mxu0 0
    %523 = vmatpush1.bf16.msra.mxu0 0
    %524 = vmatprep.subr.bf16.mxu0 0
    %525 = vmatpush1.bf16.msra.mxu0 0
    %526 = vmatprep.subr.bf16.mxu0 0
    %527 = vmatpush1.bf16.msra.mxu0 0
    %528 = vmatprep.subr.bf16.mxu0 0
    %529 = vmatpush1.bf16.msra.mxu0 0
    %530 = vmatprep.subr.bf16.mxu0 0
    %531 = vmatpush1.bf16.msra.mxu0 0
    %532 = vmatprep.subr.bf16.mxu0 0
    %533 = vmatpush1.bf16.msra.mxu0 0
    %534 = vmatprep.subr.bf16.mxu0 0
    %535 = vmatpush1.bf16.msra.mxu0 0
    %536 = vmatprep.mubr.bf16.mxu0 0
    %537 = vmatmul.mubr.bf16.gmra.mrb[0].mxu0 %v336
    %v538 = vpop.f32.mrb[0].mxu0
    %v539 = vadd.f32 0.0, %v538
    %v540 = vpop.f32.mrb[0].mxu0
    %v541 = vadd.f32 0.0, %v540
    %v542 = vpop.f32.mrb[0].mxu0
    %v543 = vadd.f32 0.0, %v542
    %v544 = vpop.f32.mrb[0].mxu0
    %v545 = vadd.f32 0.0, %v544
    %546 = vmatprep.mubr.bf16.mxu0 0
    %547 = vmatmul.mubr.bf16.gmra.mrb[0].mxu0 %v337
    %v548 = vpop.f32.mrb[0].mxu0
    %v549 = vadd.f32 0.0, %v548
    %v550 = vpop.f32.mrb[0].mxu0
    %v551 = vadd.f32 0.0, %v550
    %v552 = vpop.f32.mrb[0].mxu0
    %v553 = vadd.f32 0.0, %v552
    %v554 = vpop.f32.mrb[0].mxu0
    %v555 = vadd.f32 0.0, %v554
    %556 = vmatprep.mubr.bf16.mxu0 0
    %557 = vmatmul.mubr.bf16.gmra.mrb[0].mxu0 %v338
    %v558 = vpop.f32.mrb[0].mxu0
    %v559 = vadd.f32 0.0, %v558
    %v560 = vpop.f32.mrb[0].mxu0
    %v561 = vadd.f32 0.0, %v560
    %v562 = vpop.f32.mrb[0].mxu0
    %v563 = vadd.f32 0.0, %v562
    %v564 = vpop.f32.mrb[0].mxu0
    %v565 = vadd.f32 0.0, %v564
    %566 = vmatprep.mubr.bf16.mxu0 0
    %567 = vmatmul.mubr.bf16.gmra.mrb[0].mxu0 %v339
    %v568 = vpop.f32.mrb[0].mxu0
    %v569 = vadd.f32 0.0, %v568
    %v570 = vpop.f32.mrb[0].mxu0
    %v571 = vadd.f32 0.0, %v570
    %v572 = vpop.f32.mrb[0].mxu0
    %v573 = vadd.f32 0.0, %v572
    %v574 = vpop.f32.mrb[0].mxu0
    %v575 = vadd.f32 0.0, %v574
    %576 = vmatprep.mubr.bf16.mxu0 0
    %577 = vmatmul.mubr.bf16.gmra.mrb[0].mxu0 %v340
    %v578 = vpop.f32.mrb[0].mxu0
    %v579 = vadd.f32 0.0, %v578
    %v580 = vpop.f32.mrb[0].mxu0
    %v581 = vadd.f32 0.0, %v580
    %v582 = vpop.f32.mrb[0].mxu0
    %v583 = vadd.f32 0.0, %v582
    %v584 = vpop.f32.mrb[0].mxu0
    %v585 = vadd.f32 0.0, %v584
    %586 = vmatprep.mubr.bf16.mxu0 0
    %587 = vmatmul.mubr.bf16.gmra.mrb[0].mxu0 %v341
    %v588 = vpop.f32.mrb[0].mxu0
    %v589 = vadd.f32 0.0, %v588
    %v590 = vpop.f32.mrb[0].mxu0
    %v591 = vadd.f32 0.0, %v590
    %v592 = vpop.f32.mrb[0].mxu0
    %v593 = vadd.f32 0.0, %v592
    %v594 = vpop.f32.mrb[0].mxu0
    %v595 = vadd.f32 0.0, %v594
    %596 = vmatprep.mubr.bf16.mxu0 0
    %597 = vmatmul.mubr.bf16.gmra.mrb[0].mxu0 %v342
    %v598 = vpop.f32.mrb[0].mxu0
    %v599 = vadd.f32 0.0, %v598
    %v600 = vpop.f32.mrb[0].mxu0
    %v601 = vadd.f32 0.0, %v600
    %v602 = vpop.f32.mrb[0].mxu0
    %v603 = vadd.f32 0.0, %v602
    %v604 = vpop.f32.mrb[0].mxu0
    %v605 = vadd.f32 0.0, %v604
    %606 = vmatprep.mubr.bf16.mxu0 0
    %607 = vmatmul.mubr.bf16.gmra.mrb[0].mxu0 %v343
    %v608 = vpop.f32.mrb[0].mxu0
    %v609 = vadd.f32 0.0, %v608
    %v610 = vpop.f32.mrb[0].mxu0
    %v611 = vadd.f32 0.0, %v610
    %v612 = vpop.f32.mrb[0].mxu0
    %v613 = vadd.f32 0.0, %v612
    %v614 = vpop.f32.mrb[0].mxu0
    %v615 = vadd.f32 0.0, %v614
    %616 = vdwg.mxu0
    %617 = vmatprep.subr.bf16.mxu0 0
    %618 = vmatpush1.bf16.msra.mxu0 %v458
    %619 = vmatprep.subr.bf16.mxu0 0
    %620 = vmatpush1.bf16.msra.mxu0 %v461
    %621 = vmatprep.subr.bf16.mxu0 0
    %622 = vmatpush1.bf16.msra.mxu0 %v464
    %623 = vmatprep.subr.bf16.mxu0 0
    %624 = vmatpush1.bf16.msra.mxu0 %v467
    %625 = vmatprep.subr.bf16.mxu0 0
    %626 = vmatpush1.bf16.msra.mxu0 %v470
    %627 = vmatprep.subr.bf16.mxu0 0
    %628 = vmatpush1.bf16.msra.mxu0 %v473
    %629 = vmatprep.subr.bf16.mxu0 0
    %630 = vmatpush1.bf16.msra.mxu0 %v476
    %631 = vmatprep.subr.bf16.mxu0 0
    %632 = vmatpush1.bf16.msra.mxu0 %v479
    %633 = vmatprep.subr.bf16.mxu0 0
    %634 = vmatpush1.bf16.msra.mxu0 0
    %635 = vmatprep.subr.bf16.mxu0 0
    %636 = vmatpush1.bf16.msra.mxu0 0
    %637 = vmatprep.subr.bf16.mxu0 0
    %638 = vmatpush1.bf16.msra.mxu0 0
    %639 = vmatprep.subr.bf16.mxu0 0
    %640 = vmatpush1.bf16.msra.mxu0 0
    %641 = vmatprep.subr.bf16.mxu0 0
    %642 = vmatpush1.bf16.msra.mxu0 0
    %643 = vmatprep.subr.bf16.mxu0 0
    %644 = vmatpush1.bf16.msra.mxu0 0
    %645 = vmatprep.subr.bf16.mxu0 0
    %646 = vmatpush1.bf16.msra.mxu0 0
    %647 = vmatprep.subr.bf16.mxu0 0
    %648 = vmatpush1.bf16.msra.mxu0 0
    %649 = vmatprep.mubr.bf16.mxu0 0
    %650 = vmatmul.mubr.bf16.gmra.mrb[0].mxu0 %v336
    %v651 = vpop.f32.mrb[0].mxu0
    %v652 = vadd.f32 0.0, %v651
    %v653 = vpop.f32.mrb[0].mxu0
    %v654 = vpop.f32.mrb[0].mxu0
    %v655 = vadd.f32 0.0, %v654
    %v656 = vpop.f32.mrb[0].mxu0
    %657 = vmatprep.mubr.bf16.mxu0 0
    %658 = vmatmul.mubr.bf16.gmra.mrb[0].mxu0 %v337
    %v659 = vpop.f32.mrb[0].mxu0
    %v660 = vadd.f32 0.0, %v659
    %v661 = vpop.f32.mrb[0].mxu0
    %v662 = vpop.f32.mrb[0].mxu0
    %v663 = vadd.f32 0.0, %v662
    %v664 = vpop.f32.mrb[0].mxu0
    %665 = vmatprep.mubr.bf16.mxu0 0
    %666 = vmatmul.mubr.bf16.gmra.mrb[0].mxu0 %v338
    %v667 = vpop.f32.mrb[0].mxu0
    %v668 = vadd.f32 0.0, %v667
    %v669 = vpop.f32.mrb[0].mxu0
    %v670 = vpop.f32.mrb[0].mxu0
    %v671 = vadd.f32 0.0, %v670
    %v672 = vpop.f32.mrb[0].mxu0
    %673 = vmatprep.mubr.bf16.mxu0 0
    %674 = vmatmul.mubr.bf16.gmra.mrb[0].mxu0 %v339
    %v675 = vpop.f32.mrb[0].mxu0
    %v676 = vadd.f32 0.0, %v675
    %v677 = vpop.f32.mrb[0].mxu0
    %v678 = vpop.f32.mrb[0].mxu0
    %v679 = vadd.f32 0.0, %v678
    %v680 = vpop.f32.mrb[0].mxu0
    %681 = vmatprep.mubr.bf16.mxu0 0
    %682 = vmatmul.mubr.bf16.gmra.mrb[0].mxu0 %v340
    %v683 = vpop.f32.mrb[0].mxu0
    %v684 = vadd.f32 0.0, %v683
    %v685 = vpop.f32.mrb[0].mxu0
    %v686 = vpop.f32.mrb[0].mxu0
    %v687 = vadd.f32 0.0, %v686
    %v688 = vpop.f32.mrb[0].mxu0
    %689 = vmatprep.mubr.bf16.mxu0 0
    %690 = vmatmul.mubr.bf16.gmra.mrb[0].mxu0 %v341
    %v691 = vpop.f32.mrb[0].mxu0
    %v692 = vadd.f32 0.0, %v691
    %v693 = vpop.f32.mrb[0].mxu0
    %v694 = vpop.f32.mrb[0].mxu0
    %v695 = vadd.f32 0.0, %v694
    %v696 = vpop.f32.mrb[0].mxu0
    %697 = vmatprep.mubr.bf16.mxu0 0
    %698 = vmatmul.mubr.bf16.gmra.mrb[0].mxu0 %v342
    %v699 = vpop.f32.mrb[0].mxu0
    %v700 = vadd.f32 0.0, %v699
    %v701 = vpop.f32.mrb[0].mxu0
    %v702 = vpop.f32.mrb[0].mxu0
    %v703 = vadd.f32 0.0, %v702
    %v704 = vpop.f32.mrb[0].mxu0
    %705 = vmatprep.mubr.bf16.mxu0 0
    %706 = vmatmul.mubr.bf16.gmra.mrb[0].mxu0 %v343
    %v707 = vpop.f32.mrb[0].mxu0
    %v708 = vadd.f32 0.0, %v707
    %v709 = vpop.f32.mrb[0].mxu0
    %v710 = vpop.f32.mrb[0].mxu0
    %v711 = vadd.f32 0.0, %v710
    %v712 = vpop.f32.mrb[0].mxu0
    %713 = vdwg.mxu0
    %v714 = vpack.c.bf16 %v543, %v539
    %v715 = vpack.c.bf16 %v545, %v541
    %v716 = vpack.c.bf16 %v655, %v652
    %v717 = vpack.c.bf16 %v553, %v549
    %v718 = vpack.c.bf16 %v555, %v551
    %v719 = vpack.c.bf16 %v663, %v660
    %v720 = vpack.c.bf16 %v563, %v559
    %v721 = vpack.c.bf16 %v565, %v561
    %v722 = vpack.c.bf16 %v671, %v668
    %v723 = vpack.c.bf16 %v573, %v569
    %v724 = vpack.c.bf16 %v575, %v571
    %v725 = vpack.c.bf16 %v679, %v676
    %v726 = vpack.c.bf16 %v583, %v579
    %v727 = vpack.c.bf16 %v585, %v581
    %v728 = vpack.c.bf16 %v687, %v684
    %v729 = vpack.c.bf16 %v593, %v589
    %v730 = vpack.c.bf16 %v595, %v591
    %v731 = vpack.c.bf16 %v695, %v692
    %v732 = vpack.c.bf16 %v603, %v599
    %v733 = vpack.c.bf16 %v605, %v601
    %v734 = vpack.c.bf16 %v703, %v700
    %v735 = vpack.c.bf16 %v613, %v609
    %v736 = vpack.c.bf16 %v615, %v611
    %v737 = vpack.c.bf16 %v711, %v708
    %746 = vrot.lane.b32.xlu0 %v714, 96
    %v747 = vpop.permute.xlu0 %746
    %748 = vrot.lane.b32.xlu0 %v717, 96
    %v749 = vpop.permute.xlu0 %748
    %750 = vrot.lane.b32.xlu0 %v720, 96
    %v751 = vpop.permute.xlu0 %750
    %752 = vrot.lane.b32.xlu0 %v723, 96
    %v753 = vpop.permute.xlu0 %752
    %754 = vrot.lane.b32.xlu0 %v726, 96
    %v755 = vpop.permute.xlu0 %754
    %756 = vrot.lane.b32.xlu0 %v729, 96
    %v757 = vpop.permute.xlu0 %756
    %758 = vrot.lane.b32.xlu0 %v732, 96
    %v759 = vpop.permute.xlu0 %758
    %760 = vrot.lane.b32.xlu0 %v735, 96
    %v761 = vpop.permute.xlu0 %760
    %762 = vrot.lane.b32.xlu0 %v714, 64
    %v763 = vpop.permute.xlu0 %762
    %764 = vrot.lane.b32.xlu0 %v717, 64
    %v765 = vpop.permute.xlu0 %764
    %766 = vrot.lane.b32.xlu0 %v720, 64
    %v767 = vpop.permute.xlu0 %766
    %768 = vrot.lane.b32.xlu0 %v723, 64
    %v769 = vpop.permute.xlu0 %768
    %770 = vrot.lane.b32.xlu0 %v726, 64
    %v771 = vpop.permute.xlu0 %770
    %772 = vrot.lane.b32.xlu0 %v729, 64
    %v773 = vpop.permute.xlu0 %772
    %774 = vrot.lane.b32.xlu0 %v732, 64
    %v775 = vpop.permute.xlu0 %774
    %776 = vrot.lane.b32.xlu0 %v735, 64
    %v777 = vpop.permute.xlu0 %776
    %778 = vrot.lane.b32.xlu0 %v714, 32
    %v779 = vpop.permute.xlu0 %778
    %780 = vrot.lane.b32.xlu0 %v717, 32
    %v781 = vpop.permute.xlu0 %780
    %782 = vrot.lane.b32.xlu0 %v720, 32
    %v783 = vpop.permute.xlu0 %782
    %784 = vrot.lane.b32.xlu0 %v723, 32
    %v785 = vpop.permute.xlu0 %784
    %786 = vrot.lane.b32.xlu0 %v726, 32
    %v787 = vpop.permute.xlu0 %786
    %788 = vrot.lane.b32.xlu0 %v729, 32
    %v789 = vpop.permute.xlu0 %788
    %790 = vrot.lane.b32.xlu0 %v732, 32
    %v791 = vpop.permute.xlu0 %790
    %792 = vrot.lane.b32.xlu0 %v735, 32
    %v793 = vpop.permute.xlu0 %792
    %802 = vrot.lane.b32.xlu0 %v715, 96
    %v803 = vpop.permute.xlu0 %802
    %804 = vrot.lane.b32.xlu0 %v718, 96
    %v805 = vpop.permute.xlu0 %804
    %806 = vrot.lane.b32.xlu0 %v721, 96
    %v807 = vpop.permute.xlu0 %806
    %808 = vrot.lane.b32.xlu0 %v724, 96
    %v809 = vpop.permute.xlu0 %808
    %810 = vrot.lane.b32.xlu0 %v727, 96
    %v811 = vpop.permute.xlu0 %810
    %812 = vrot.lane.b32.xlu0 %v730, 96
    %v813 = vpop.permute.xlu0 %812
    %814 = vrot.lane.b32.xlu0 %v733, 96
    %v815 = vpop.permute.xlu0 %814
    %816 = vrot.lane.b32.xlu0 %v736, 96
    %v817 = vpop.permute.xlu0 %816
    %818 = vrot.lane.b32.xlu0 %v715, 64
    %v819 = vpop.permute.xlu0 %818
    %820 = vrot.lane.b32.xlu0 %v718, 64
    %v821 = vpop.permute.xlu0 %820
    %822 = vrot.lane.b32.xlu0 %v721, 64
    %v823 = vpop.permute.xlu0 %822
    %824 = vrot.lane.b32.xlu0 %v724, 64
    %v825 = vpop.permute.xlu0 %824
    %826 = vrot.lane.b32.xlu0 %v727, 64
    %v827 = vpop.permute.xlu0 %826
    %828 = vrot.lane.b32.xlu0 %v730, 64
    %v829 = vpop.permute.xlu0 %828
    %830 = vrot.lane.b32.xlu0 %v733, 64
    %v831 = vpop.permute.xlu0 %830
    %832 = vrot.lane.b32.xlu0 %v736, 64
    %v833 = vpop.permute.xlu0 %832
    %834 = vrot.lane.b32.xlu0 %v715, 32
    %v835 = vpop.permute.xlu0 %834
    %836 = vrot.lane.b32.xlu0 %v718, 32
    %v837 = vpop.permute.xlu0 %836
    %838 = vrot.lane.b32.xlu0 %v721, 32
    %v839 = vpop.permute.xlu0 %838
    %840 = vrot.lane.b32.xlu0 %v724, 32
    %v841 = vpop.permute.xlu0 %840
    %842 = vrot.lane.b32.xlu0 %v727, 32
    %v843 = vpop.permute.xlu0 %842
    %844 = vrot.lane.b32.xlu0 %v730, 32
    %v845 = vpop.permute.xlu0 %844
    %846 = vrot.lane.b32.xlu0 %v733, 32
    %v847 = vpop.permute.xlu0 %846
    %848 = vrot.lane.b32.xlu0 %v736, 32
    %v849 = vpop.permute.xlu0 %848
    %858 = vrot.lane.b32.xlu0 %v716, 96
    %v859 = vpop.permute.xlu0 %858
    %860 = vrot.lane.b32.xlu0 %v719, 96
    %v861 = vpop.permute.xlu0 %860
    %862 = vrot.lane.b32.xlu0 %v722, 96
    %v863 = vpop.permute.xlu0 %862
    %864 = vrot.lane.b32.xlu0 %v725, 96
    %v865 = vpop.permute.xlu0 %864
    %866 = vrot.lane.b32.xlu0 %v728, 96
    %v867 = vpop.permute.xlu0 %866
    %868 = vrot.lane.b32.xlu0 %v731, 96
    %v869 = vpop.permute.xlu0 %868
    %870 = vrot.lane.b32.xlu0 %v734, 96
    %v871 = vpop.permute.xlu0 %870
    %872 = vrot.lane.b32.xlu0 %v737, 96
    %v873 = vpop.permute.xlu0 %872
    %882 = vrot.lane.b32.xlu0 %v716, 64
    %v883 = vpop.permute.xlu0 %882
    %884 = vrot.lane.b32.xlu0 %v719, 64
    %v885 = vpop.permute.xlu0 %884
    %886 = vrot.lane.b32.xlu0 %v722, 64
    %v887 = vpop.permute.xlu0 %886
    %888 = vrot.lane.b32.xlu0 %v725, 64
    %v889 = vpop.permute.xlu0 %888
    %890 = vrot.lane.b32.xlu0 %v728, 64
    %v891 = vpop.permute.xlu0 %890
    %892 = vrot.lane.b32.xlu0 %v731, 64
    %v893 = vpop.permute.xlu0 %892
    %894 = vrot.lane.b32.xlu0 %v734, 64
    %v895 = vpop.permute.xlu0 %894
    %896 = vrot.lane.b32.xlu0 %v737, 64
    %v897 = vpop.permute.xlu0 %896
    %906 = vrot.lane.b32.xlu0 %v716, 32
    %v907 = vpop.permute.xlu0 %906
    %908 = vrot.lane.b32.xlu0 %v719, 32
    %v909 = vpop.permute.xlu0 %908
    %910 = vrot.lane.b32.xlu0 %v722, 32
    %v911 = vpop.permute.xlu0 %910
    %912 = vrot.lane.b32.xlu0 %v725, 32
    %v913 = vpop.permute.xlu0 %912
    %914 = vrot.lane.b32.xlu0 %v728, 32
    %v915 = vpop.permute.xlu0 %914
    %916 = vrot.lane.b32.xlu0 %v731, 32
    %v917 = vpop.permute.xlu0 %916
    %918 = vrot.lane.b32.xlu0 %v734, 32
    %v919 = vpop.permute.xlu0 %918
    %920 = vrot.lane.b32.xlu0 %v737, 32
    %v921 = vpop.permute.xlu0 %920
    %v930 = vlaneseq
    %v931 = vshrl.u32 %v930, 7
    %v932 = vadd.s32 %v931, 8
    %v933 = vadd.s32 %v931, 16
    %v934 = vadd.s32 %v931, 24
    %v935 = vadd.s32 %v931, 32
    %v936 = vadd.s32 %v931, 40
    %v937 = vadd.s32 %v931, 48
    %v938 = vadd.s32 %v931, 56
    %v939 = vlaneseq
    %v940 = vand.u32 %v939, 127
    %vm941 = vcmp.le.s32.totalorder %v940, %v931
    %vm942 = vcmp.le.s32.totalorder %v940, %v932
    %vm943 = vcmp.le.s32.totalorder %v940, %v933
    %vm944 = vcmp.le.s32.totalorder %v940, %v934
    %vm945 = vcmp.le.s32.totalorder %v940, %v935
    %vm946 = vcmp.le.s32.totalorder %v940, %v936
    %vm947 = vcmp.le.s32.totalorder %v940, %v937
    %vm948 = vcmp.le.s32.totalorder %v940, %v938
    %v949 = vsel %vm941, 0.0, -1e+09
    %v950 = vsel %vm942, 0.0, -1e+09
    %v951 = vsel %vm943, 0.0, -1e+09
    %v952 = vsel %vm944, 0.0, -1e+09
    %v953 = vsel %vm945, 0.0, -1e+09
    %v954 = vsel %vm946, 0.0, -1e+09
    %v955 = vsel %vm947, 0.0, -1e+09
    %v956 = vsel %vm948, 0.0, -1e+09
    %vm957 = vcmask 261120
    %v959 = vsel %vm957, %v714, 0
    %v962 = vsel %vm957, %v717, 0
    %v965 = vsel %vm957, %v720, 0
    %v968 = vsel %vm957, %v723, 0
    %v971 = vsel %vm957, %v715, 0
    %v974 = vsel %vm957, %v718, 0
    %v977 = vsel %vm957, %v721, 0
    %v980 = vsel %vm957, %v724, 0
    %982 = vmatprep.subr.bf16.mxu0 0
    %983 = vmatpush1.bf16.xpose.msra.mxu0 %v971
    %984 = vmatprep.subr.bf16.mxu0 0
    %985 = vmatpush1.bf16.xpose.msra.mxu0 %v974
    %986 = vmatprep.subr.bf16.mxu0 0
    %987 = vmatpush1.bf16.xpose.msra.mxu0 %v977
    %988 = vmatprep.subr.bf16.mxu0 0
    %989 = vmatpush1.bf16.xpose.msra.mxu0 %v980
    %990 = vmatprep.subr.bf16.mxu0 0
    %991 = vmatpush1.bf16.xpose.msra.mxu0 0
    %992 = vmatprep.subr.bf16.mxu0 0
    %993 = vmatpush1.bf16.xpose.msra.mxu0 0
    %994 = vmatprep.subr.bf16.mxu0 0
    %995 = vmatpush1.bf16.xpose.msra.mxu0 0
    %996 = vmatprep.subr.bf16.mxu0 0
    %997 = vmatpush1.bf16.xpose.msra.mxu0 0
    %998 = vmatprep.subr.bf16.mxu0 0
    %999 = vmatpush1.bf16.xpose.msra.mxu0 0
    %1000 = vmatprep.subr.bf16.mxu0 0
    %1001 = vmatpush1.bf16.xpose.msra.mxu0 0
    %1002 = vmatprep.subr.bf16.mxu0 0
    %1003 = vmatpush1.bf16.xpose.msra.mxu0 0
    %1004 = vmatprep.subr.bf16.mxu0 0
    %1005 = vmatpush1.bf16.xpose.msra.mxu0 0
    %1006 = vmatprep.subr.bf16.mxu0 0
    %1007 = vmatpush1.bf16.xpose.msra.mxu0 0
    %1008 = vmatprep.subr.bf16.mxu0 0
    %1009 = vmatpush1.bf16.xpose.msra.mxu0 0
    %1010 = vmatprep.subr.bf16.mxu0 0
    %1011 = vmatpush1.bf16.xpose.msra.mxu0 0
    %1012 = vmatprep.subr.bf16.mxu0 0
    %1013 = vmatpush1.bf16.xpose.msra.mxu0 0
    %1014 = vmatprep.mubr.bf16.mxu0 0
    %1015 = vmatmul.mubr.bf16.gmra.mrb[0].mxu0 %v959
    %v1016 = vpop.f32.mrb[0].mxu0
    %v1017 = vadd.f32 %v949, %v1016
    %v1018 = vpop.f32.mrb[0].mxu0
    %v1019 = vpop.f32.mrb[0].mxu0
    %v1020 = vadd.f32 %v950, %v1019
    %v1021 = vpop.f32.mrb[0].mxu0
    %1022 = vmatprep.mubr.bf16.mxu0 0
    %1023 = vmatmul.mubr.bf16.gmra.mrb[0].mxu0 %v962
    %v1024 = vpop.f32.mrb[0].mxu0
    %v1025 = vadd.f32 %v951, %v1024
    %v1026 = vpop.f32.mrb[0].mxu0
    %v1027 = vpop.f32.mrb[0].mxu0
    %v1028 = vadd.f32 %v952, %v1027
    %v1029 = vpop.f32.mrb[0].mxu0
    %1030 = vmatprep.mubr.bf16.mxu0 0
    %1031 = vmatmul.mubr.bf16.gmra.mrb[0].mxu0 %v965
    %v1032 = vpop.f32.mrb[0].mxu0
    %v1033 = vadd.f32 %v953, %v1032
    %v1034 = vpop.f32.mrb[0].mxu0
    %v1035 = vpop.f32.mrb[0].mxu0
    %v1036 = vadd.f32 %v954, %v1035
    %v1037 = vpop.f32.mrb[0].mxu0
    %1038 = vmatprep.mubr.bf16.mxu0 0
    %1039 = vmatmul.mubr.bf16.gmra.mrb[0].mxu0 %v968
    %v1040 = vpop.f32.mrb[0].mxu0
    %v1041 = vadd.f32 %v955, %v1040
    %v1042 = vpop.f32.mrb[0].mxu0
    %v1043 = vpop.f32.mrb[0].mxu0
    %v1044 = vadd.f32 %v956, %v1043
    %v1045 = vpop.f32.mrb[0].mxu0
    %1046 = vdwg.mxu0
    %v1048 = vsel %vm957, %v726, 0
    %v1051 = vsel %vm957, %v729, 0
    %v1054 = vsel %vm957, %v732, 0
    %v1057 = vsel %vm957, %v735, 0
    %v1060 = vsel %vm957, %v727, 0
    %v1063 = vsel %vm957, %v730, 0
    %v1066 = vsel %vm957, %v733, 0
    %v1069 = vsel %vm957, %v736, 0
    %1071 = vmatprep.subr.bf16.mxu0 0
    %1072 = vmatpush1.bf16.xpose.msra.mxu0 %v1060
    %1073 = vmatprep.subr.bf16.mxu0 0
    %1074 = vmatpush1.bf16.xpose.msra.mxu0 %v1063
    %1075 = vmatprep.subr.bf16.mxu0 0
    %1076 = vmatpush1.bf16.xpose.msra.mxu0 %v1066
    %1077 = vmatprep.subr.bf16.mxu0 0
    %1078 = vmatpush1.bf16.xpose.msra.mxu0 %v1069
    %1079 = vmatprep.subr.bf16.mxu0 0
    %1080 = vmatpush1.bf16.xpose.msra.mxu0 0
    %1081 = vmatprep.subr.bf16.mxu0 0
    %1082 = vmatpush1.bf16.xpose.msra.mxu0 0
    %1083 = vmatprep.subr.bf16.mxu0 0
    %1084 = vmatpush1.bf16.xpose.msra.mxu0 0
    %1085 = vmatprep.subr.bf16.mxu0 0
    %1086 = vmatpush1.bf16.xpose.msra.mxu0 0
    %1087 = vmatprep.subr.bf16.mxu0 0
    %1088 = vmatpush1.bf16.xpose.msra.mxu0 0
    %1089 = vmatprep.subr.bf16.mxu0 0
    %1090 = vmatpush1.bf16.xpose.msra.mxu0 0
    %1091 = vmatprep.subr.bf16.mxu0 0
    %1092 = vmatpush1.bf16.xpose.msra.mxu0 0
    %1093 = vmatprep.subr.bf16.mxu0 0
    %1094 = vmatpush1.bf16.xpose.msra.mxu0 0
    %1095 = vmatprep.subr.bf16.mxu0 0
    %1096 = vmatpush1.bf16.xpose.msra.mxu0 0
    %1097 = vmatprep.subr.bf16.mxu0 0
    %1098 = vmatpush1.bf16.xpose.msra.mxu0 0
    %1099 = vmatprep.subr.bf16.mxu0 0
    %1100 = vmatpush1.bf16.xpose.msra.mxu0 0
    %1101 = vmatprep.subr.bf16.mxu0 0
    %1102 = vmatpush1.bf16.xpose.msra.mxu0 0
    %1103 = vmatprep.mubr.bf16.mxu0 0
    %1104 = vmatmul.mubr.bf16.gmra.mrb[0].mxu0 %v1048
    %v1105 = vpop.f32.mrb[0].mxu0
    %v1106 = vadd.f32 %v949, %v1105
    %v1107 = vpop.f32.mrb[0].mxu0
    %v1108 = vpop.f32.mrb[0].mxu0
    %v1109 = vadd.f32 %v950, %v1108
    %v1110 = vpop.f32.mrb[0].mxu0
    %1111 = vmatprep.mubr.bf16.mxu0 0
    %1112 = vmatmul.mubr.bf16.gmra.mrb[0].mxu0 %v1051
    %v1113 = vpop.f32.mrb[0].mxu0
    %v1114 = vadd.f32 %v951, %v1113
    %v1115 = vpop.f32.mrb[0].mxu0
    %v1116 = vpop.f32.mrb[0].mxu0
    %v1117 = vadd.f32 %v952, %v1116
    %v1118 = vpop.f32.mrb[0].mxu0
    %1119 = vmatprep.mubr.bf16.mxu0 0
    %1120 = vmatmul.mubr.bf16.gmra.mrb[0].mxu0 %v1054
    %v1121 = vpop.f32.mrb[0].mxu0
    %v1122 = vadd.f32 %v953, %v1121
    %v1123 = vpop.f32.mrb[0].mxu0
    %v1124 = vpop.f32.mrb[0].mxu0
    %v1125 = vadd.f32 %v954, %v1124
    %v1126 = vpop.f32.mrb[0].mxu0
    %1127 = vmatprep.mubr.bf16.mxu0 0
    %1128 = vmatmul.mubr.bf16.gmra.mrb[0].mxu0 %v1057
    %v1129 = vpop.f32.mrb[0].mxu0
    %v1130 = vadd.f32 %v955, %v1129
    %v1131 = vpop.f32.mrb[0].mxu0
    %v1132 = vpop.f32.mrb[0].mxu0
    %v1133 = vadd.f32 %v956, %v1132
    %v1134 = vpop.f32.mrb[0].mxu0
    %1135 = vdwg.mxu0
    %v1137 = vsel %vm957, %v747, 0
    %v1140 = vsel %vm957, %v749, 0
    %v1143 = vsel %vm957, %v751, 0
    %v1146 = vsel %vm957, %v753, 0
    %v1149 = vsel %vm957, %v803, 0
    %v1152 = vsel %vm957, %v805, 0
    %v1155 = vsel %vm957, %v807, 0
    %v1158 = vsel %vm957, %v809, 0
    %1160 = vmatprep.subr.bf16.mxu0 0
    %1161 = vmatpush1.bf16.xpose.msra.mxu0 %v1149
    %1162 = vmatprep.subr.bf16.mxu0 0
    %1163 = vmatpush1.bf16.xpose.msra.mxu0 %v1152
    %1164 = vmatprep.subr.bf16.mxu0 0
    %1165 = vmatpush1.bf16.xpose.msra.mxu0 %v1155
    %1166 = vmatprep.subr.bf16.mxu0 0
    %1167 = vmatpush1.bf16.xpose.msra.mxu0 %v1158
    %1168 = vmatprep.subr.bf16.mxu0 0
    %1169 = vmatpush1.bf16.xpose.msra.mxu0 0
    %1170 = vmatprep.subr.bf16.mxu0 0
    %1171 = vmatpush1.bf16.xpose.msra.mxu0 0
    %1172 = vmatprep.subr.bf16.mxu0 0
    %1173 = vmatpush1.bf16.xpose.msra.mxu0 0
    %1174 = vmatprep.subr.bf16.mxu0 0
    %1175 = vmatpush1.bf16.xpose.msra.mxu0 0
    %1176 = vmatprep.subr.bf16.mxu0 0
    %1177 = vmatpush1.bf16.xpose.msra.mxu0 0
    %1178 = vmatprep.subr.bf16.mxu0 0
    %1179 = vmatpush1.bf16.xpose.msra.mxu0 0
    %1180 = vmatprep.subr.bf16.mxu0 0
    %1181 = vmatpush1.bf16.xpose.msra.mxu0 0
    %1182 = vmatprep.subr.bf16.mxu0 0
    %1183 = vmatpush1.bf16.xpose.msra.mxu0 0
    %1184 = vmatprep.subr.bf16.mxu0 0
    %1185 = vmatpush1.bf16.xpose.msra.mxu0 0
    %1186 = vmatprep.subr.bf16.mxu0 0
    %1187 = vmatpush1.bf16.xpose.msra.mxu0 0
    %1188 = vmatprep.subr.bf16.mxu0 0
    %1189 = vmatpush1.bf16.xpose.msra.mxu0 0
    %1190 = vmatprep.subr.bf16.mxu0 0
    %1191 = vmatpush1.bf16.xpose.msra.mxu0 0
    %1192 = vmatprep.mubr.bf16.mxu0 0
    %1193 = vmatmul.mubr.bf16.gmra.mrb[0].mxu0 %v1137
    %v1194 = vpop.f32.mrb[0].mxu0
    %v1195 = vadd.f32 %v949, %v1194
    %v1196 = vpop.f32.mrb[0].mxu0
    %v1197 = vpop.f32.mrb[0].mxu0
    %v1198 = vadd.f32 %v950, %v1197
    %v1199 = vpop.f32.mrb[0].mxu0
    %1200 = vmatprep.mubr.bf16.mxu0 0
    %1201 = vmatmul.mubr.bf16.gmra.mrb[0].mxu0 %v1140
    %v1202 = vpop.f32.mrb[0].mxu0
    %v1203 = vadd.f32 %v951, %v1202
    %v1204 = vpop.f32.mrb[0].mxu0
    %v1205 = vpop.f32.mrb[0].mxu0
    %v1206 = vadd.f32 %v952, %v1205
    %v1207 = vpop.f32.mrb[0].mxu0
    %1208 = vmatprep.mubr.bf16.mxu0 0
    %1209 = vmatmul.mubr.bf16.gmra.mrb[0].mxu0 %v1143
    %v1210 = vpop.f32.mrb[0].mxu0
    %v1211 = vadd.f32 %v953, %v1210
    %v1212 = vpop.f32.mrb[0].mxu0
    %v1213 = vpop.f32.mrb[0].mxu0
    %v1214 = vadd.f32 %v954, %v1213
    %v1215 = vpop.f32.mrb[0].mxu0
    %1216 = vmatprep.mubr.bf16.mxu0 0
    %1217 = vmatmul.mubr.bf16.gmra.mrb[0].mxu0 %v1146
    %v1218 = vpop.f32.mrb[0].mxu0
    %v1219 = vadd.f32 %v955, %v1218
    %v1220 = vpop.f32.mrb[0].mxu0
    %v1221 = vpop.f32.mrb[0].mxu0
    %v1222 = vadd.f32 %v956, %v1221
    %v1223 = vpop.f32.mrb[0].mxu0
    %1224 = vdwg.mxu0
    %v1226 = vsel %vm957, %v755, 0
    %v1229 = vsel %vm957, %v757, 0
    %v1232 = vsel %vm957, %v759, 0
    %v1235 = vsel %vm957, %v761, 0
    %v1238 = vsel %vm957, %v811, 0
    %v1241 = vsel %vm957, %v813, 0
    %v1244 = vsel %vm957, %v815, 0
    %v1247 = vsel %vm957, %v817, 0
    %1249 = vmatprep.subr.bf16.mxu0 0
    %1250 = vmatpush1.bf16.xpose.msra.mxu0 %v1238
    %1251 = vmatprep.subr.bf16.mxu0 0
    %1252 = vmatpush1.bf16.xpose.msra.mxu0 %v1241
    %1253 = vmatprep.subr.bf16.mxu0 0
    %1254 = vmatpush1.bf16.xpose.msra.mxu0 %v1244
    %1255 = vmatprep.subr.bf16.mxu0 0
    %1256 = vmatpush1.bf16.xpose.msra.mxu0 %v1247
    %1257 = vmatprep.subr.bf16.mxu0 0
    %1258 = vmatpush1.bf16.xpose.msra.mxu0 0
    %1259 = vmatprep.subr.bf16.mxu0 0
    %1260 = vmatpush1.bf16.xpose.msra.mxu0 0
    %1261 = vmatprep.subr.bf16.mxu0 0
    %1262 = vmatpush1.bf16.xpose.msra.mxu0 0
    %1263 = vmatprep.subr.bf16.mxu0 0
    %1264 = vmatpush1.bf16.xpose.msra.mxu0 0
    %1265 = vmatprep.subr.bf16.mxu0 0
    %1266 = vmatpush1.bf16.xpose.msra.mxu0 0
    %1267 = vmatprep.subr.bf16.mxu0 0
    %1268 = vmatpush1.bf16.xpose.msra.mxu0 0
    %1269 = vmatprep.subr.bf16.mxu0 0
    %1270 = vmatpush1.bf16.xpose.msra.mxu0 0
    %1271 = vmatprep.subr.bf16.mxu0 0
    %1272 = vmatpush1.bf16.xpose.msra.mxu0 0
    %1273 = vmatprep.subr.bf16.mxu0 0
    %1274 = vmatpush1.bf16.xpose.msra.mxu0 0
    %1275 = vmatprep.subr.bf16.mxu0 0
    %1276 = vmatpush1.bf16.xpose.msra.mxu0 0
    %1277 = vmatprep.subr.bf16.mxu0 0
    %1278 = vmatpush1.bf16.xpose.msra.mxu0 0
    %1279 = vmatprep.subr.bf16.mxu0 0
    %1280 = vmatpush1.bf16.xpose.msra.mxu0 0
    %1281 = vmatprep.mubr.bf16.mxu0 0
    %1282 = vmatmul.mubr.bf16.gmra.mrb[0].mxu0 %v1226
    %v1283 = vpop.f32.mrb[0].mxu0
    %v1284 = vadd.f32 %v949, %v1283
    %v1285 = vpop.f32.mrb[0].mxu0
    %v1286 = vpop.f32.mrb[0].mxu0
    %v1287 = vadd.f32 %v950, %v1286
    %v1288 = vpop.f32.mrb[0].mxu0
    %1289 = vmatprep.mubr.bf16.mxu0 0
    %1290 = vmatmul.mubr.bf16.gmra.mrb[0].mxu0 %v1229
    %v1291 = vpop.f32.mrb[0].mxu0
    %v1292 = vadd.f32 %v951, %v1291
    %v1293 = vpop.f32.mrb[0].mxu0
    %v1294 = vpop.f32.mrb[0].mxu0
    %v1295 = vadd.f32 %v952, %v1294
    %v1296 = vpop.f32.mrb[0].mxu0
    %1297 = vmatprep.mubr.bf16.mxu0 0
    %1298 = vmatmul.mubr.bf16.gmra.mrb[0].mxu0 %v1232
    %v1299 = vpop.f32.mrb[0].mxu0
    %v1300 = vadd.f32 %v953, %v1299
    %v1301 = vpop.f32.mrb[0].mxu0
    %v1302 = vpop.f32.mrb[0].mxu0
    %v1303 = vadd.f32 %v954, %v1302
    %v1304 = vpop.f32.mrb[0].mxu0
    %1305 = vmatprep.mubr.bf16.mxu0 0
    %1306 = vmatmul.mubr.bf16.gmra.mrb[0].mxu0 %v1235
    %v1307 = vpop.f32.mrb[0].mxu0
    %v1308 = vadd.f32 %v955, %v1307
    %v1309 = vpop.f32.mrb[0].mxu0
    %v1310 = vpop.f32.mrb[0].mxu0
    %v1311 = vadd.f32 %v956, %v1310
    %v1312 = vpop.f32.mrb[0].mxu0
    %1313 = vdwg.mxu0
    %v1315 = vsel %vm957, %v763, 0
    %v1318 = vsel %vm957, %v765, 0
    %v1321 = vsel %vm957, %v767, 0
    %v1324 = vsel %vm957, %v769, 0
    %v1327 = vsel %vm957, %v819, 0
    %v1330 = vsel %vm957, %v821, 0
    %v1333 = vsel %vm957, %v823, 0
    %v1336 = vsel %vm957, %v825, 0
    %1338 = vmatprep.subr.bf16.mxu0 0
    %1339 = vmatpush1.bf16.xpose.msra.mxu0 %v1327
    %1340 = vmatprep.subr.bf16.mxu0 0
    %1341 = vmatpush1.bf16.xpose.msra.mxu0 %v1330
    %1342 = vmatprep.subr.bf16.mxu0 0
    %1343 = vmatpush1.bf16.xpose.msra.mxu0 %v1333
    %1344 = vmatprep.subr.bf16.mxu0 0
    %1345 = vmatpush1.bf16.xpose.msra.mxu0 %v1336
    %1346 = vmatprep.subr.bf16.mxu0 0
    %1347 = vmatpush1.bf16.xpose.msra.mxu0 0
    %1348 = vmatprep.subr.bf16.mxu0 0
    %1349 = vmatpush1.bf16.xpose.msra.mxu0 0
    %1350 = vmatprep.subr.bf16.mxu0 0
    %1351 = vmatpush1.bf16.xpose.msra.mxu0 0
    %1352 = vmatprep.subr.bf16.mxu0 0
    %1353 = vmatpush1.bf16.xpose.msra.mxu0 0
    %1354 = vmatprep.subr.bf16.mxu0 0
    %1355 = vmatpush1.bf16.xpose.msra.mxu0 0
    %1356 = vmatprep.subr.bf16.mxu0 0
    %1357 = vmatpush1.bf16.xpose.msra.mxu0 0
    %1358 = vmatprep.subr.bf16.mxu0 0
    %1359 = vmatpush1.bf16.xpose.msra.mxu0 0
    %1360 = vmatprep.subr.bf16.mxu0 0
    %1361 = vmatpush1.bf16.xpose.msra.mxu0 0
    %1362 = vmatprep.subr.bf16.mxu0 0
    %1363 = vmatpush1.bf16.xpose.msra.mxu0 0
    %1364 = vmatprep.subr.bf16.mxu0 0
    %1365 = vmatpush1.bf16.xpose.msra.mxu0 0
    %1366 = vmatprep.subr.bf16.mxu0 0
    %1367 = vmatpush1.bf16.xpose.msra.mxu0 0
    %1368 = vmatprep.subr.bf16.mxu0 0
    %1369 = vmatpush1.bf16.xpose.msra.mxu0 0
    %1370 = vmatprep.mubr.bf16.mxu0 0
    %1371 = vmatmul.mubr.bf16.gmra.mrb[0].mxu0 %v1315
    %v1372 = vpop.f32.mrb[0].mxu0
    %v1373 = vadd.f32 %v949, %v1372
    %v1374 = vpop.f32.mrb[0].mxu0
    %v1375 = vpop.f32.mrb[0].mxu0
    %v1376 = vadd.f32 %v950, %v1375
    %v1377 = vpop.f32.mrb[0].mxu0
    %1378 = vmatprep.mubr.bf16.mxu0 0
    %1379 = vmatmul.mubr.bf16.gmra.mrb[0].mxu0 %v1318
    %v1380 = vpop.f32.mrb[0].mxu0
    %v1381 = vadd.f32 %v951, %v1380
    %v1382 = vpop.f32.mrb[0].mxu0
    %v1383 = vpop.f32.mrb[0].mxu0
    %v1384 = vadd.f32 %v952, %v1383
    %v1385 = vpop.f32.mrb[0].mxu0
    %1386 = vmatprep.mubr.bf16.mxu0 0
    %1387 = vmatmul.mubr.bf16.gmra.mrb[0].mxu0 %v1321
    %v1388 = vpop.f32.mrb[0].mxu0
    %v1389 = vadd.f32 %v953, %v1388
    %v1390 = vpop.f32.mrb[0].mxu0
    %v1391 = vpop.f32.mrb[0].mxu0
    %v1392 = vadd.f32 %v954, %v1391
    %v1393 = vpop.f32.mrb[0].mxu0
    %1394 = vmatprep.mubr.bf16.mxu0 0
    %1395 = vmatmul.mubr.bf16.gmra.mrb[0].mxu0 %v1324
    %v1396 = vpop.f32.mrb[0].mxu0
    %v1397 = vadd.f32 %v955, %v1396
    %v1398 = vpop.f32.mrb[0].mxu0
    %v1399 = vpop.f32.mrb[0].mxu0
    %v1400 = vadd.f32 %v956, %v1399
    %v1401 = vpop.f32.mrb[0].mxu0
    %1402 = vdwg.mxu0
    %v1404 = vsel %vm957, %v771, 0
    %v1407 = vsel %vm957, %v773, 0
    %v1410 = vsel %vm957, %v775, 0
    %v1413 = vsel %vm957, %v777, 0
    %v1416 = vsel %vm957, %v827, 0
    %v1419 = vsel %vm957, %v829, 0
    %v1422 = vsel %vm957, %v831, 0
    %v1425 = vsel %vm957, %v833, 0
    %1427 = vmatprep.subr.bf16.mxu0 0
    %1428 = vmatpush1.bf16.xpose.msra.mxu0 %v1416
    %1429 = vmatprep.subr.bf16.mxu0 0
    %1430 = vmatpush1.bf16.xpose.msra.mxu0 %v1419
    %1431 = vmatprep.subr.bf16.mxu0 0
    %1432 = vmatpush1.bf16.xpose.msra.mxu0 %v1422
    %1433 = vmatprep.subr.bf16.mxu0 0
    %1434 = vmatpush1.bf16.xpose.msra.mxu0 %v1425
    %1435 = vmatprep.subr.bf16.mxu0 0
    %1436 = vmatpush1.bf16.xpose.msra.mxu0 0
    %1437 = vmatprep.subr.bf16.mxu0 0
    %1438 = vmatpush1.bf16.xpose.msra.mxu0 0
    %1439 = vmatprep.subr.bf16.mxu0 0
    %1440 = vmatpush1.bf16.xpose.msra.mxu0 0
    %1441 = vmatprep.subr.bf16.mxu0 0
    %1442 = vmatpush1.bf16.xpose.msra.mxu0 0
    %1443 = vmatprep.subr.bf16.mxu0 0
    %1444 = vmatpush1.bf16.xpose.msra.mxu0 0
    %1445 = vmatprep.subr.bf16.mxu0 0
    %1446 = vmatpush1.bf16.xpose.msra.mxu0 0
    %1447 = vmatprep.subr.bf16.mxu0 0
    %1448 = vmatpush1.bf16.xpose.msra.mxu0 0
    %1449 = vmatprep.subr.bf16.mxu0 0
    %1450 = vmatpush1.bf16.xpose.msra.mxu0 0
    %1451 = vmatprep.subr.bf16.mxu0 0
    %1452 = vmatpush1.bf16.xpose.msra.mxu0 0
    %1453 = vmatprep.subr.bf16.mxu0 0
    %1454 = vmatpush1.bf16.xpose.msra.mxu0 0
    %1455 = vmatprep.subr.bf16.mxu0 0
    %1456 = vmatpush1.bf16.xpose.msra.mxu0 0
    %1457 = vmatprep.subr.bf16.mxu0 0
    %1458 = vmatpush1.bf16.xpose.msra.mxu0 0
    %1459 = vmatprep.mubr.bf16.mxu0 0
    %1460 = vmatmul.mubr.bf16.gmra.mrb[0].mxu0 %v1404
    %v1461 = vpop.f32.mrb[0].mxu0
    %v1462 = vadd.f32 %v949, %v1461
    %v1463 = vpop.f32.mrb[0].mxu0
    %v1464 = vpop.f32.mrb[0].mxu0
    %v1465 = vadd.f32 %v950, %v1464
    %v1466 = vpop.f32.mrb[0].mxu0
    %1467 = vmatprep.mubr.bf16.mxu0 0
    %1468 = vmatmul.mubr.bf16.gmra.mrb[0].mxu0 %v1407
    %v1469 = vpop.f32.mrb[0].mxu0
    %v1470 = vadd.f32 %v951, %v1469
    %v1471 = vpop.f32.mrb[0].mxu0
    %v1472 = vpop.f32.mrb[0].mxu0
    %v1473 = vadd.f32 %v952, %v1472
    %v1474 = vpop.f32.mrb[0].mxu0
    %1475 = vmatprep.mubr.bf16.mxu0 0
    %1476 = vmatmul.mubr.bf16.gmra.mrb[0].mxu0 %v1410
    %v1477 = vpop.f32.mrb[0].mxu0
    %v1478 = vadd.f32 %v953, %v1477
    %v1479 = vpop.f32.mrb[0].mxu0
    %v1480 = vpop.f32.mrb[0].mxu0
    %v1481 = vadd.f32 %v954, %v1480
    %v1482 = vpop.f32.mrb[0].mxu0
    %1483 = vmatprep.mubr.bf16.mxu0 0
    %1484 = vmatmul.mubr.bf16.gmra.mrb[0].mxu0 %v1413
    %v1485 = vpop.f32.mrb[0].mxu0
    %v1486 = vadd.f32 %v955, %v1485
    %v1487 = vpop.f32.mrb[0].mxu0
    %v1488 = vpop.f32.mrb[0].mxu0
    %v1489 = vadd.f32 %v956, %v1488
    %v1490 = vpop.f32.mrb[0].mxu0
    %1491 = vdwg.mxu0
    %v1493 = vsel %vm957, %v779, 0
    %v1496 = vsel %vm957, %v781, 0
    %v1499 = vsel %vm957, %v783, 0
    %v1502 = vsel %vm957, %v785, 0
    %v1505 = vsel %vm957, %v835, 0
    %v1508 = vsel %vm957, %v837, 0
    %v1511 = vsel %vm957, %v839, 0
    %v1514 = vsel %vm957, %v841, 0
    %1516 = vmatprep.subr.bf16.mxu0 0
    %1517 = vmatpush1.bf16.xpose.msra.mxu0 %v1505
    %1518 = vmatprep.subr.bf16.mxu0 0
    %1519 = vmatpush1.bf16.xpose.msra.mxu0 %v1508
    %1520 = vmatprep.subr.bf16.mxu0 0
    %1521 = vmatpush1.bf16.xpose.msra.mxu0 %v1511
    %1522 = vmatprep.subr.bf16.mxu0 0
    %1523 = vmatpush1.bf16.xpose.msra.mxu0 %v1514
    %1524 = vmatprep.subr.bf16.mxu0 0
    %1525 = vmatpush1.bf16.xpose.msra.mxu0 0
    %1526 = vmatprep.subr.bf16.mxu0 0
    %1527 = vmatpush1.bf16.xpose.msra.mxu0 0
    %1528 = vmatprep.subr.bf16.mxu0 0
    %1529 = vmatpush1.bf16.xpose.msra.mxu0 0
    %1530 = vmatprep.subr.bf16.mxu0 0
    %1531 = vmatpush1.bf16.xpose.msra.mxu0 0
    %1532 = vmatprep.subr.bf16.mxu0 0
    %1533 = vmatpush1.bf16.xpose.msra.mxu0 0
    %1534 = vmatprep.subr.bf16.mxu0 0
    %1535 = vmatpush1.bf16.xpose.msra.mxu0 0
    %1536 = vmatprep.subr.bf16.mxu0 0
    %1537 = vmatpush1.bf16.xpose.msra.mxu0 0
    %1538 = vmatprep.subr.bf16.mxu0 0
    %1539 = vmatpush1.bf16.xpose.msra.mxu0 0
    %1540 = vmatprep.subr.bf16.mxu0 0
    %1541 = vmatpush1.bf16.xpose.msra.mxu0 0
    %1542 = vmatprep.subr.bf16.mxu0 0
    %1543 = vmatpush1.bf16.xpose.msra.mxu0 0
    %1544 = vmatprep.subr.bf16.mxu0 0
    %1545 = vmatpush1.bf16.xpose.msra.mxu0 0
    %1546 = vmatprep.subr.bf16.mxu0 0
    %1547 = vmatpush1.bf16.xpose.msra.mxu0 0
    %1548 = vmatprep.mubr.bf16.mxu0 0
    %1549 = vmatmul.mubr.bf16.gmra.mrb[0].mxu0 %v1493
    %v1550 = vpop.f32.mrb[0].mxu0
    %v1551 = vadd.f32 %v949, %v1550
    %v1552 = vpop.f32.mrb[0].mxu0
    %v1553 = vpop.f32.mrb[0].mxu0
    %v1554 = vadd.f32 %v950, %v1553
    %v1555 = vpop.f32.mrb[0].mxu0
    %1556 = vmatprep.mubr.bf16.mxu0 0
    %1557 = vmatmul.mubr.bf16.gmra.mrb[0].mxu0 %v1496
    %v1558 = vpop.f32.mrb[0].mxu0
    %v1559 = vadd.f32 %v951, %v1558
    %v1560 = vpop.f32.mrb[0].mxu0
    %v1561 = vpop.f32.mrb[0].mxu0
    %v1562 = vadd.f32 %v952, %v1561
    %v1563 = vpop.f32.mrb[0].mxu0
    %1564 = vmatprep.mubr.bf16.mxu0 0
    %1565 = vmatmul.mubr.bf16.gmra.mrb[0].mxu0 %v1499
    %v1566 = vpop.f32.mrb[0].mxu0
    %v1567 = vadd.f32 %v953, %v1566
    %v1568 = vpop.f32.mrb[0].mxu0
    %v1569 = vpop.f32.mrb[0].mxu0
    %v1570 = vadd.f32 %v954, %v1569
    %v1571 = vpop.f32.mrb[0].mxu0
    %1572 = vmatprep.mubr.bf16.mxu0 0
    %1573 = vmatmul.mubr.bf16.gmra.mrb[0].mxu0 %v1502
    %v1574 = vpop.f32.mrb[0].mxu0
    %v1575 = vadd.f32 %v955, %v1574
    %v1576 = vpop.f32.mrb[0].mxu0
    %v1577 = vpop.f32.mrb[0].mxu0
    %v1578 = vadd.f32 %v956, %v1577
    %v1579 = vpop.f32.mrb[0].mxu0
    %1580 = vdwg.mxu0
    %v1582 = vsel %vm957, %v787, 0
    %v1585 = vsel %vm957, %v789, 0
    %v1588 = vsel %vm957, %v791, 0
    %v1591 = vsel %vm957, %v793, 0
    %v1594 = vsel %vm957, %v843, 0
    %v1597 = vsel %vm957, %v845, 0
    %v1600 = vsel %vm957, %v847, 0
    %v1603 = vsel %vm957, %v849, 0
    %1605 = vmatprep.subr.bf16.mxu0 0
    %1606 = vmatpush1.bf16.xpose.msra.mxu0 %v1594
    %1607 = vmatprep.subr.bf16.mxu0 0
    %1608 = vmatpush1.bf16.xpose.msra.mxu0 %v1597
    %1609 = vmatprep.subr.bf16.mxu0 0
    %1610 = vmatpush1.bf16.xpose.msra.mxu0 %v1600
    %1611 = vmatprep.subr.bf16.mxu0 0
    %1612 = vmatpush1.bf16.xpose.msra.mxu0 %v1603
    %1613 = vmatprep.subr.bf16.mxu0 0
    %1614 = vmatpush1.bf16.xpose.msra.mxu0 0
    %1615 = vmatprep.subr.bf16.mxu0 0
    %1616 = vmatpush1.bf16.xpose.msra.mxu0 0
    %1617 = vmatprep.subr.bf16.mxu0 0
    %1618 = vmatpush1.bf16.xpose.msra.mxu0 0
    %1619 = vmatprep.subr.bf16.mxu0 0
    %1620 = vmatpush1.bf16.xpose.msra.mxu0 0
    %1621 = vmatprep.subr.bf16.mxu0 0
    %1622 = vmatpush1.bf16.xpose.msra.mxu0 0
    %1623 = vmatprep.subr.bf16.mxu0 0
    %1624 = vmatpush1.bf16.xpose.msra.mxu0 0
    %1625 = vmatprep.subr.bf16.mxu0 0
    %1626 = vmatpush1.bf16.xpose.msra.mxu0 0
    %1627 = vmatprep.subr.bf16.mxu0 0
    %1628 = vmatpush1.bf16.xpose.msra.mxu0 0
    %1629 = vmatprep.subr.bf16.mxu0 0
    %1630 = vmatpush1.bf16.xpose.msra.mxu0 0
    %1631 = vmatprep.subr.bf16.mxu0 0
    %1632 = vmatpush1.bf16.xpose.msra.mxu0 0
    %1633 = vmatprep.subr.bf16.mxu0 0
    %1634 = vmatpush1.bf16.xpose.msra.mxu0 0
    %1635 = vmatprep.subr.bf16.mxu0 0
    %1636 = vmatpush1.bf16.xpose.msra.mxu0 0
    %1637 = vmatprep.mubr.bf16.mxu0 0
    %1638 = vmatmul.mubr.bf16.gmra.mrb[0].mxu0 %v1582
    %v1639 = vpop.f32.mrb[0].mxu0
    %v1640 = vadd.f32 %v949, %v1639
    %v1641 = vpop.f32.mrb[0].mxu0
    %v1642 = vpop.f32.mrb[0].mxu0
    %v1643 = vadd.f32 %v950, %v1642
    %v1644 = vpop.f32.mrb[0].mxu0
    %1645 = vmatprep.mubr.bf16.mxu0 0
    %1646 = vmatmul.mubr.bf16.gmra.mrb[0].mxu0 %v1585
    %v1647 = vpop.f32.mrb[0].mxu0
    %v1648 = vadd.f32 %v951, %v1647
    %v1649 = vpop.f32.mrb[0].mxu0
    %v1650 = vpop.f32.mrb[0].mxu0
    %v1651 = vadd.f32 %v952, %v1650
    %v1652 = vpop.f32.mrb[0].mxu0
    %1653 = vmatprep.mubr.bf16.mxu0 0
    %1654 = vmatmul.mubr.bf16.gmra.mrb[0].mxu0 %v1588
    %v1655 = vpop.f32.mrb[0].mxu0
    %v1656 = vadd.f32 %v953, %v1655
    %v1657 = vpop.f32.mrb[0].mxu0
    %v1658 = vpop.f32.mrb[0].mxu0
    %v1659 = vadd.f32 %v954, %v1658
    %v1660 = vpop.f32.mrb[0].mxu0
    %1661 = vmatprep.mubr.bf16.mxu0 0
    %1662 = vmatmul.mubr.bf16.gmra.mrb[0].mxu0 %v1591
    %v1663 = vpop.f32.mrb[0].mxu0
    %v1664 = vadd.f32 %v955, %v1663
    %v1665 = vpop.f32.mrb[0].mxu0
    %v1666 = vpop.f32.mrb[0].mxu0
    %v1667 = vadd.f32 %v956, %v1666
    %v1668 = vpop.f32.mrb[0].mxu0
    %1669 = vdwg.mxu0
    %vm1670 = vcmask 523264
    %v1671 = vsel %vm1670, %v1017, -inf
    %1672 = vmax.xlane.f32.xlu0 %v1671
    %v1673 = vpop.xlane.xlu0 %1672
    %v1674 = vsel %vm1670, %v1020, -inf
    %1675 = vmax.xlane.f32.xlu0 %v1674
    %v1676 = vpop.xlane.xlu0 %1675
    %v1677 = vsel %vm1670, %v1025, -inf
    %1678 = vmax.xlane.f32.xlu0 %v1677
    %v1679 = vpop.xlane.xlu0 %1678
    %v1680 = vsel %vm1670, %v1028, -inf
    %1681 = vmax.xlane.f32.xlu0 %v1680
    %v1682 = vpop.xlane.xlu0 %1681
    %v1683 = vsel %vm1670, %v1033, -inf
    %1684 = vmax.xlane.f32.xlu0 %v1683
    %v1685 = vpop.xlane.xlu0 %1684
    %v1686 = vsel %vm1670, %v1036, -inf
    %1687 = vmax.xlane.f32.xlu0 %v1686
    %v1688 = vpop.xlane.xlu0 %1687
    %v1689 = vsel %vm1670, %v1041, -inf
    %1690 = vmax.xlane.f32.xlu0 %v1689
    %v1691 = vpop.xlane.xlu0 %1690
    %v1692 = vsel %vm1670, %v1044, -inf
    %1693 = vmax.xlane.f32.xlu0 %v1692
    %v1694 = vpop.xlane.xlu0 %1693
    %v1695 = vsel %vm1670, %v1106, -inf
    %1696 = vmax.xlane.f32.xlu0 %v1695
    %v1697 = vpop.xlane.xlu0 %1696
    %v1698 = vsel %vm1670, %v1109, -inf
    %1699 = vmax.xlane.f32.xlu0 %v1698
    %v1700 = vpop.xlane.xlu0 %1699
    %v1701 = vsel %vm1670, %v1114, -inf
    %1702 = vmax.xlane.f32.xlu0 %v1701
    %v1703 = vpop.xlane.xlu0 %1702
    %v1704 = vsel %vm1670, %v1117, -inf
    %1705 = vmax.xlane.f32.xlu0 %v1704
    %v1706 = vpop.xlane.xlu0 %1705
    %v1707 = vsel %vm1670, %v1122, -inf
    %1708 = vmax.xlane.f32.xlu0 %v1707
    %v1709 = vpop.xlane.xlu0 %1708
    %v1710 = vsel %vm1670, %v1125, -inf
    %1711 = vmax.xlane.f32.xlu0 %v1710
    %v1712 = vpop.xlane.xlu0 %1711
    %v1713 = vsel %vm1670, %v1130, -inf
    %1714 = vmax.xlane.f32.xlu0 %v1713
    %v1715 = vpop.xlane.xlu0 %1714
    %v1716 = vsel %vm1670, %v1133, -inf
    %1717 = vmax.xlane.f32.xlu0 %v1716
    %v1718 = vpop.xlane.xlu0 %1717
    %v1719 = vsel %vm1670, %v1195, -inf
    %1720 = vmax.xlane.f32.xlu0 %v1719
    %v1721 = vpop.xlane.xlu0 %1720
    %v1722 = vsel %vm1670, %v1198, -inf
    %1723 = vmax.xlane.f32.xlu0 %v1722
    %v1724 = vpop.xlane.xlu0 %1723
    %v1725 = vsel %vm1670, %v1203, -inf
    %1726 = vmax.xlane.f32.xlu0 %v1725
    %v1727 = vpop.xlane.xlu0 %1726
    %v1728 = vsel %vm1670, %v1206, -inf
    %1729 = vmax.xlane.f32.xlu0 %v1728
    %v1730 = vpop.xlane.xlu0 %1729
    %v1731 = vsel %vm1670, %v1211, -inf
    %1732 = vmax.xlane.f32.xlu0 %v1731
    %v1733 = vpop.xlane.xlu0 %1732
    %v1734 = vsel %vm1670, %v1214, -inf
    %1735 = vmax.xlane.f32.xlu0 %v1734
    %v1736 = vpop.xlane.xlu0 %1735
    %v1737 = vsel %vm1670, %v1219, -inf
    %1738 = vmax.xlane.f32.xlu0 %v1737
    %v1739 = vpop.xlane.xlu0 %1738
    %v1740 = vsel %vm1670, %v1222, -inf
    %1741 = vmax.xlane.f32.xlu0 %v1740
    %v1742 = vpop.xlane.xlu0 %1741
    %v1743 = vsel %vm1670, %v1284, -inf
    %1744 = vmax.xlane.f32.xlu0 %v1743
    %v1745 = vpop.xlane.xlu0 %1744
    %v1746 = vsel %vm1670, %v1287, -inf
    %1747 = vmax.xlane.f32.xlu0 %v1746
    %v1748 = vpop.xlane.xlu0 %1747
    %v1749 = vsel %vm1670, %v1292, -inf
    %1750 = vmax.xlane.f32.xlu0 %v1749
    %v1751 = vpop.xlane.xlu0 %1750
    %v1752 = vsel %vm1670, %v1295, -inf
    %1753 = vmax.xlane.f32.xlu0 %v1752
    %v1754 = vpop.xlane.xlu0 %1753
    %v1755 = vsel %vm1670, %v1300, -inf
    %1756 = vmax.xlane.f32.xlu0 %v1755
    %v1757 = vpop.xlane.xlu0 %1756
    %v1758 = vsel %vm1670, %v1303, -inf
    %1759 = vmax.xlane.f32.xlu0 %v1758
    %v1760 = vpop.xlane.xlu0 %1759
    %v1761 = vsel %vm1670, %v1308, -inf
    %1762 = vmax.xlane.f32.xlu0 %v1761
    %v1763 = vpop.xlane.xlu0 %1762
    %v1764 = vsel %vm1670, %v1311, -inf
    %1765 = vmax.xlane.f32.xlu0 %v1764
    %v1766 = vpop.xlane.xlu0 %1765
    %v1767 = vsel %vm1670, %v1373, -inf
    %1768 = vmax.xlane.f32.xlu0 %v1767
    %v1769 = vpop.xlane.xlu0 %1768
    %v1770 = vsel %vm1670, %v1376, -inf
    %1771 = vmax.xlane.f32.xlu0 %v1770
    %v1772 = vpop.xlane.xlu0 %1771
    %v1773 = vsel %vm1670, %v1381, -inf
    %1774 = vmax.xlane.f32.xlu0 %v1773
    %v1775 = vpop.xlane.xlu0 %1774
    %v1776 = vsel %vm1670, %v1384, -inf
    %1777 = vmax.xlane.f32.xlu0 %v1776
    %v1778 = vpop.xlane.xlu0 %1777
    %v1779 = vsel %vm1670, %v1389, -inf
    %1780 = vmax.xlane.f32.xlu0 %v1779
    %v1781 = vpop.xlane.xlu0 %1780
    %v1782 = vsel %vm1670, %v1392, -inf
    %1783 = vmax.xlane.f32.xlu0 %v1782
    %v1784 = vpop.xlane.xlu0 %1783
    %v1785 = vsel %vm1670, %v1397, -inf
    %1786 = vmax.xlane.f32.xlu0 %v1785
    %v1787 = vpop.xlane.xlu0 %1786
    %v1788 = vsel %vm1670, %v1400, -inf
    %1789 = vmax.xlane.f32.xlu0 %v1788
    %v1790 = vpop.xlane.xlu0 %1789
    %v1791 = vsel %vm1670, %v1462, -inf
    %1792 = vmax.xlane.f32.xlu0 %v1791
    %v1793 = vpop.xlane.xlu0 %1792
    %v1794 = vsel %vm1670, %v1465, -inf
    %1795 = vmax.xlane.f32.xlu0 %v1794
    %v1796 = vpop.xlane.xlu0 %1795
    %v1797 = vsel %vm1670, %v1470, -inf
    %1798 = vmax.xlane.f32.xlu0 %v1797
    %v1799 = vpop.xlane.xlu0 %1798
    %v1800 = vsel %vm1670, %v1473, -inf
    %1801 = vmax.xlane.f32.xlu0 %v1800
    %v1802 = vpop.xlane.xlu0 %1801
    %v1803 = vsel %vm1670, %v1478, -inf
    %1804 = vmax.xlane.f32.xlu0 %v1803
    %v1805 = vpop.xlane.xlu0 %1804
    %v1806 = vsel %vm1670, %v1481, -inf
    %1807 = vmax.xlane.f32.xlu0 %v1806
    %v1808 = vpop.xlane.xlu0 %1807
    %v1809 = vsel %vm1670, %v1486, -inf
    %1810 = vmax.xlane.f32.xlu0 %v1809
    %v1811 = vpop.xlane.xlu0 %1810
    %v1812 = vsel %vm1670, %v1489, -inf
    %1813 = vmax.xlane.f32.xlu0 %v1812
    %v1814 = vpop.xlane.xlu0 %1813
    %v1815 = vsel %vm1670, %v1551, -inf
    %1816 = vmax.xlane.f32.xlu0 %v1815
    %v1817 = vpop.xlane.xlu0 %1816
    %v1818 = vsel %vm1670, %v1554, -inf
    %1819 = vmax.xlane.f32.xlu0 %v1818
    %v1820 = vpop.xlane.xlu0 %1819
    %v1821 = vsel %vm1670, %v1559, -inf
    %1822 = vmax.xlane.f32.xlu0 %v1821
    %v1823 = vpop.xlane.xlu0 %1822
    %v1824 = vsel %vm1670, %v1562, -inf
    %1825 = vmax.xlane.f32.xlu0 %v1824
    %v1826 = vpop.xlane.xlu0 %1825
    %v1827 = vsel %vm1670, %v1567, -inf
    %1828 = vmax.xlane.f32.xlu0 %v1827
    %v1829 = vpop.xlane.xlu0 %1828
    %v1830 = vsel %vm1670, %v1570, -inf
    %1831 = vmax.xlane.f32.xlu0 %v1830
    %v1832 = vpop.xlane.xlu0 %1831
    %v1833 = vsel %vm1670, %v1575, -inf
    %1834 = vmax.xlane.f32.xlu0 %v1833
    %v1835 = vpop.xlane.xlu0 %1834
    %v1836 = vsel %vm1670, %v1578, -inf
    %1837 = vmax.xlane.f32.xlu0 %v1836
    %v1838 = vpop.xlane.xlu0 %1837
    %v1839 = vsel %vm1670, %v1640, -inf
    %1840 = vmax.xlane.f32.xlu0 %v1839
    %v1841 = vpop.xlane.xlu0 %1840
    %v1842 = vsel %vm1670, %v1643, -inf
    %1843 = vmax.xlane.f32.xlu0 %v1842
    %v1844 = vpop.xlane.xlu0 %1843
    %v1845 = vsel %vm1670, %v1648, -inf
    %1846 = vmax.xlane.f32.xlu0 %v1845
    %v1847 = vpop.xlane.xlu0 %1846
    %v1848 = vsel %vm1670, %v1651, -inf
    %1849 = vmax.xlane.f32.xlu0 %v1848
    %v1850 = vpop.xlane.xlu0 %1849
    %v1851 = vsel %vm1670, %v1656, -inf
    %1852 = vmax.xlane.f32.xlu0 %v1851
    %v1853 = vpop.xlane.xlu0 %1852
    %v1854 = vsel %vm1670, %v1659, -inf
    %1855 = vmax.xlane.f32.xlu0 %v1854
    %v1856 = vpop.xlane.xlu0 %1855
    %v1857 = vsel %vm1670, %v1664, -inf
    %1858 = vmax.xlane.f32.xlu0 %v1857
    %v1859 = vpop.xlane.xlu0 %1858
    %v1860 = vsel %vm1670, %v1667, -inf
    %1861 = vmax.xlane.f32.xlu0 %v1860
    %v1862 = vpop.xlane.xlu0 %1861
    %v1863 = vsub.f32 %v1017, %v1673
    %v1864 = vsub.f32 %v1020, %v1676
    %v1865 = vsub.f32 %v1025, %v1679
    %v1866 = vsub.f32 %v1028, %v1682
    %v1867 = vsub.f32 %v1033, %v1685
    %v1868 = vsub.f32 %v1036, %v1688
    %v1869 = vsub.f32 %v1041, %v1691
    %v1870 = vsub.f32 %v1044, %v1694
    %v1871 = vsub.f32 %v1106, %v1697
    %v1872 = vsub.f32 %v1109, %v1700
    %v1873 = vsub.f32 %v1114, %v1703
    %v1874 = vsub.f32 %v1117, %v1706
    %v1875 = vsub.f32 %v1122, %v1709
    %v1876 = vsub.f32 %v1125, %v1712
    %v1877 = vsub.f32 %v1130, %v1715
    %v1878 = vsub.f32 %v1133, %v1718
    %v1879 = vsub.f32 %v1195, %v1721
    %v1880 = vsub.f32 %v1198, %v1724
    %v1881 = vsub.f32 %v1203, %v1727
    %v1882 = vsub.f32 %v1206, %v1730
    %v1883 = vsub.f32 %v1211, %v1733
    %v1884 = vsub.f32 %v1214, %v1736
    %v1885 = vsub.f32 %v1219, %v1739
    %v1886 = vsub.f32 %v1222, %v1742
    %v1887 = vsub.f32 %v1284, %v1745
    %v1888 = vsub.f32 %v1287, %v1748
    %v1889 = vsub.f32 %v1292, %v1751
    %v1890 = vsub.f32 %v1295, %v1754
    %v1891 = vsub.f32 %v1300, %v1757
    %v1892 = vsub.f32 %v1303, %v1760
    %v1893 = vsub.f32 %v1308, %v1763
    %v1894 = vsub.f32 %v1311, %v1766
    %v1895 = vsub.f32 %v1373, %v1769
    %v1896 = vsub.f32 %v1376, %v1772
    %v1897 = vsub.f32 %v1381, %v1775
    %v1898 = vsub.f32 %v1384, %v1778
    %v1899 = vsub.f32 %v1389, %v1781
    %v1900 = vsub.f32 %v1392, %v1784
    %v1901 = vsub.f32 %v1397, %v1787
    %v1902 = vsub.f32 %v1400, %v1790
    %v1903 = vsub.f32 %v1462, %v1793
    %v1904 = vsub.f32 %v1465, %v1796
    %v1905 = vsub.f32 %v1470, %v1799
    %v1906 = vsub.f32 %v1473, %v1802
    %v1907 = vsub.f32 %v1478, %v1805
    %v1908 = vsub.f32 %v1481, %v1808
    %v1909 = vsub.f32 %v1486, %v1811
    %v1910 = vsub.f32 %v1489, %v1814
    %v1911 = vsub.f32 %v1551, %v1817
    %v1912 = vsub.f32 %v1554, %v1820
    %v1913 = vsub.f32 %v1559, %v1823
    %v1914 = vsub.f32 %v1562, %v1826
    %v1915 = vsub.f32 %v1567, %v1829
    %v1916 = vsub.f32 %v1570, %v1832
    %v1917 = vsub.f32 %v1575, %v1835
    %v1918 = vsub.f32 %v1578, %v1838
    %v1919 = vsub.f32 %v1640, %v1841
    %v1920 = vsub.f32 %v1643, %v1844
    %v1921 = vsub.f32 %v1648, %v1847
    %v1922 = vsub.f32 %v1651, %v1850
    %v1923 = vsub.f32 %v1656, %v1853
    %v1924 = vsub.f32 %v1659, %v1856
    %v1925 = vsub.f32 %v1664, %v1859
    %v1926 = vsub.f32 %v1667, %v1862
    %v1927 = vmul.f32 %v1863, 1.442695
    %v1928 = vpow.pop %v1927
    %v1929 = vmul.f32 %v1864, 1.442695
    %v1930 = vpow.pop %v1929
    %v1931 = vmul.f32 %v1865, 1.442695
    %v1932 = vpow.pop %v1931
    %v1933 = vmul.f32 %v1866, 1.442695
    %v1934 = vpow.pop %v1933
    %v1935 = vmul.f32 %v1867, 1.442695
    %v1936 = vpow.pop %v1935
    %v1937 = vmul.f32 %v1868, 1.442695
    %v1938 = vpow.pop %v1937
    %v1939 = vmul.f32 %v1869, 1.442695
    %v1940 = vpow.pop %v1939
    %v1941 = vmul.f32 %v1870, 1.442695
    %v1942 = vpow.pop %v1941
    %v1943 = vmul.f32 %v1871, 1.442695
    %v1944 = vpow.pop %v1943
    %v1945 = vmul.f32 %v1872, 1.442695
    %v1946 = vpow.pop %v1945
    %v1947 = vmul.f32 %v1873, 1.442695
    %v1948 = vpow.pop %v1947
    %v1949 = vmul.f32 %v1874, 1.442695
    %v1950 = vpow.pop %v1949
    %v1951 = vmul.f32 %v1875, 1.442695
    %v1952 = vpow.pop %v1951
    %v1953 = vmul.f32 %v1876, 1.442695
    %v1954 = vpow.pop %v1953
    %v1955 = vmul.f32 %v1877, 1.442695
    %v1956 = vpow.pop %v1955
    %v1957 = vmul.f32 %v1878, 1.442695
    %v1958 = vpow.pop %v1957
    %v1959 = vmul.f32 %v1879, 1.442695
    %v1960 = vpow.pop %v1959
    %v1961 = vmul.f32 %v1880, 1.442695
    %v1962 = vpow.pop %v1961
    %v1963 = vmul.f32 %v1881, 1.442695
    %v1964 = vpow.pop %v1963
    %v1965 = vmul.f32 %v1882, 1.442695
    %v1966 = vpow.pop %v1965
    %v1967 = vmul.f32 %v1883, 1.442695
    %v1968 = vpow.pop %v1967
    %v1969 = vmul.f32 %v1884, 1.442695
    %v1970 = vpow.pop %v1969
    %v1971 = vmul.f32 %v1885, 1.442695
    %v1972 = vpow.pop %v1971
    %v1973 = vmul.f32 %v1886, 1.442695
    %v1974 = vpow.pop %v1973
    %v1975 = vmul.f32 %v1887, 1.442695
    %v1976 = vpow.pop %v1975
    %v1977 = vmul.f32 %v1888, 1.442695
    %v1978 = vpow.pop %v1977
    %v1979 = vmul.f32 %v1889, 1.442695
    %v1980 = vpow.pop %v1979
    %v1981 = vmul.f32 %v1890, 1.442695
    %v1982 = vpow.pop %v1981
    %v1983 = vmul.f32 %v1891, 1.442695
    %v1984 = vpow.pop %v1983
    %v1985 = vmul.f32 %v1892, 1.442695
    %v1986 = vpow.pop %v1985
    %v1987 = vmul.f32 %v1893, 1.442695
    %v1988 = vpow.pop %v1987
    %v1989 = vmul.f32 %v1894, 1.442695
    %v1990 = vpow.pop %v1989
    %v1991 = vmul.f32 %v1895, 1.442695
    %v1992 = vpow.pop %v1991
    %v1993 = vmul.f32 %v1896, 1.442695
    %v1994 = vpow.pop %v1993
    %v1995 = vmul.f32 %v1897, 1.442695
    %v1996 = vpow.pop %v1995
    %v1997 = vmul.f32 %v1898, 1.442695
    %v1998 = vpow.pop %v1997
    %v1999 = vmul.f32 %v1899, 1.442695
    %v2000 = vpow.pop %v1999
    %v2001 = vmul.f32 %v1900, 1.442695
    %v2002 = vpow.pop %v2001
    %v2003 = vmul.f32 %v1901, 1.442695
    %v2004 = vpow.pop %v2003
    %v2005 = vmul.f32 %v1902, 1.442695
    %v2006 = vpow.pop %v2005
    %v2007 = vmul.f32 %v1903, 1.442695
    %v2008 = vpow.pop %v2007
    %v2009 = vmul.f32 %v1904, 1.442695
    %v2010 = vpow.pop %v2009
    %v2011 = vmul.f32 %v1905, 1.442695
    %v2012 = vpow.pop %v2011
    %v2013 = vmul.f32 %v1906, 1.442695
    %v2014 = vpow.pop %v2013
    %v2015 = vmul.f32 %v1907, 1.442695
    %v2016 = vpow.pop %v2015
    %v2017 = vmul.f32 %v1908, 1.442695
    %v2018 = vpow.pop %v2017
    %v2019 = vmul.f32 %v1909, 1.442695
    %v2020 = vpow.pop %v2019
    %v2021 = vmul.f32 %v1910, 1.442695
    %v2022 = vpow.pop %v2021
    %v2023 = vmul.f32 %v1911, 1.442695
    %v2024 = vpow.pop %v2023
    %v2025 = vmul.f32 %v1912, 1.442695
    %v2026 = vpow.pop %v2025
    %v2027 = vmul.f32 %v1913, 1.442695
    %v2028 = vpow.pop %v2027
    %v2029 = vmul.f32 %v1914, 1.442695
    %v2030 = vpow.pop %v2029
    %v2031 = vmul.f32 %v1915, 1.442695
    %v2032 = vpow.pop %v2031
    %v2033 = vmul.f32 %v1916, 1.442695
    %v2034 = vpow.pop %v2033
    %v2035 = vmul.f32 %v1917, 1.442695
    %v2036 = vpow.pop %v2035
    %v2037 = vmul.f32 %v1918, 1.442695
    %v2038 = vpow.pop %v2037
    %v2039 = vmul.f32 %v1919, 1.442695
    %v2040 = vpow.pop %v2039
    %v2041 = vmul.f32 %v1920, 1.442695
    %v2042 = vpow.pop %v2041
    %v2043 = vmul.f32 %v1921, 1.442695
    %v2044 = vpow.pop %v2043
    %v2045 = vmul.f32 %v1922, 1.442695
    %v2046 = vpow.pop %v2045
    %v2047 = vmul.f32 %v1923, 1.442695
    %v2048 = vpow.pop %v2047
    %v2049 = vmul.f32 %v1924, 1.442695
    %v2050 = vpow.pop %v2049
    %v2051 = vmul.f32 %v1925, 1.442695
    %v2052 = vpow.pop %v2051
    %v2053 = vmul.f32 %v1926, 1.442695
    %v2054 = vpow.pop %v2053
    %v2055 = vsel %vm1670, %v1928, 0.0
    %2056 = vadd.xlane.f32.xlu0 %v2055
    %v2057 = vpop.xlane.xlu0 %2056
    %v2058 = vsel %vm1670, %v1930, 0.0
    %2059 = vadd.xlane.f32.xlu0 %v2058
    %v2060 = vpop.xlane.xlu0 %2059
    %v2061 = vsel %vm1670, %v1932, 0.0
    %2062 = vadd.xlane.f32.xlu0 %v2061
    %v2063 = vpop.xlane.xlu0 %2062
    %v2064 = vsel %vm1670, %v1934, 0.0
    %2065 = vadd.xlane.f32.xlu0 %v2064
    %v2066 = vpop.xlane.xlu0 %2065
    %v2067 = vsel %vm1670, %v1936, 0.0
    %2068 = vadd.xlane.f32.xlu0 %v2067
    %v2069 = vpop.xlane.xlu0 %2068
    %v2070 = vsel %vm1670, %v1938, 0.0
    %2071 = vadd.xlane.f32.xlu0 %v2070
    %v2072 = vpop.xlane.xlu0 %2071
    %v2073 = vsel %vm1670, %v1940, 0.0
    %2074 = vadd.xlane.f32.xlu0 %v2073
    %v2075 = vpop.xlane.xlu0 %2074
    %v2076 = vsel %vm1670, %v1942, 0.0
    %2077 = vadd.xlane.f32.xlu0 %v2076
    %v2078 = vpop.xlane.xlu0 %2077
    %v2079 = vsel %vm1670, %v1944, 0.0
    %2080 = vadd.xlane.f32.xlu0 %v2079
    %v2081 = vpop.xlane.xlu0 %2080
    %v2082 = vsel %vm1670, %v1946, 0.0
    %2083 = vadd.xlane.f32.xlu0 %v2082
    %v2084 = vpop.xlane.xlu0 %2083
    %v2085 = vsel %vm1670, %v1948, 0.0
    %2086 = vadd.xlane.f32.xlu0 %v2085
    %v2087 = vpop.xlane.xlu0 %2086
    %v2088 = vsel %vm1670, %v1950, 0.0
    %2089 = vadd.xlane.f32.xlu0 %v2088
    %v2090 = vpop.xlane.xlu0 %2089
    %v2091 = vsel %vm1670, %v1952, 0.0
    %2092 = vadd.xlane.f32.xlu0 %v2091
    %v2093 = vpop.xlane.xlu0 %2092
    %v2094 = vsel %vm1670, %v1954, 0.0
    %2095 = vadd.xlane.f32.xlu0 %v2094
    %v2096 = vpop.xlane.xlu0 %2095
    %v2097 = vsel %vm1670, %v1956, 0.0
    %2098 = vadd.xlane.f32.xlu0 %v2097
    %v2099 = vpop.xlane.xlu0 %2098
    %v2100 = vsel %vm1670, %v1958, 0.0
    %2101 = vadd.xlane.f32.xlu0 %v2100
    %v2102 = vpop.xlane.xlu0 %2101
    %v2103 = vsel %vm1670, %v1960, 0.0
    %2104 = vadd.xlane.f32.xlu0 %v2103
    %v2105 = vpop.xlane.xlu0 %2104
    %v2106 = vsel %vm1670, %v1962, 0.0
    %2107 = vadd.xlane.f32.xlu0 %v2106
    %v2108 = vpop.xlane.xlu0 %2107
    %v2109 = vsel %vm1670, %v1964, 0.0
    %2110 = vadd.xlane.f32.xlu0 %v2109
    %v2111 = vpop.xlane.xlu0 %2110
    %v2112 = vsel %vm1670, %v1966, 0.0
    %2113 = vadd.xlane.f32.xlu0 %v2112
    %v2114 = vpop.xlane.xlu0 %2113
    %v2115 = vsel %vm1670, %v1968, 0.0
    %2116 = vadd.xlane.f32.xlu0 %v2115
    %v2117 = vpop.xlane.xlu0 %2116
    %v2118 = vsel %vm1670, %v1970, 0.0
    %2119 = vadd.xlane.f32.xlu0 %v2118
    %v2120 = vpop.xlane.xlu0 %2119
    %v2121 = vsel %vm1670, %v1972, 0.0
    %2122 = vadd.xlane.f32.xlu0 %v2121
    %v2123 = vpop.xlane.xlu0 %2122
    %v2124 = vsel %vm1670, %v1974, 0.0
    %2125 = vadd.xlane.f32.xlu0 %v2124
    %v2126 = vpop.xlane.xlu0 %2125
    %v2127 = vsel %vm1670, %v1976, 0.0
    %2128 = vadd.xlane.f32.xlu0 %v2127
    %v2129 = vpop.xlane.xlu0 %2128
    %v2130 = vsel %vm1670, %v1978, 0.0
    %2131 = vadd.xlane.f32.xlu0 %v2130
    %v2132 = vpop.xlane.xlu0 %2131
    %v2133 = vsel %vm1670, %v1980, 0.0
    %2134 = vadd.xlane.f32.xlu0 %v2133
    %v2135 = vpop.xlane.xlu0 %2134
    %v2136 = vsel %vm1670, %v1982, 0.0
    %2137 = vadd.xlane.f32.xlu0 %v2136
    %v2138 = vpop.xlane.xlu0 %2137
    %v2139 = vsel %vm1670, %v1984, 0.0
    %2140 = vadd.xlane.f32.xlu0 %v2139
    %v2141 = vpop.xlane.xlu0 %2140
    %v2142 = vsel %vm1670, %v1986, 0.0
    %2143 = vadd.xlane.f32.xlu0 %v2142
    %v2144 = vpop.xlane.xlu0 %2143
    %v2145 = vsel %vm1670, %v1988, 0.0
    %2146 = vadd.xlane.f32.xlu0 %v2145
    %v2147 = vpop.xlane.xlu0 %2146
    %v2148 = vsel %vm1670, %v1990, 0.0
    %2149 = vadd.xlane.f32.xlu0 %v2148
    %v2150 = vpop.xlane.xlu0 %2149
    %v2151 = vsel %vm1670, %v1992, 0.0
    %2152 = vadd.xlane.f32.xlu0 %v2151
    %v2153 = vpop.xlane.xlu0 %2152
    %v2154 = vsel %vm1670, %v1994, 0.0
    %2155 = vadd.xlane.f32.xlu0 %v2154
    %v2156 = vpop.xlane.xlu0 %2155
    %v2157 = vsel %vm1670, %v1996, 0.0
    %2158 = vadd.xlane.f32.xlu0 %v2157
    %v2159 = vpop.xlane.xlu0 %2158
    %v2160 = vsel %vm1670, %v1998, 0.0
    %2161 = vadd.xlane.f32.xlu0 %v2160
    %v2162 = vpop.xlane.xlu0 %2161
    %v2163 = vsel %vm1670, %v2000, 0.0
    %2164 = vadd.xlane.f32.xlu0 %v2163
    %v2165 = vpop.xlane.xlu0 %2164
    %v2166 = vsel %vm1670, %v2002, 0.0
    %2167 = vadd.xlane.f32.xlu0 %v2166
    %v2168 = vpop.xlane.xlu0 %2167
    %v2169 = vsel %vm1670, %v2004, 0.0
    %2170 = vadd.xlane.f32.xlu0 %v2169
    %v2171 = vpop.xlane.xlu0 %2170
    %v2172 = vsel %vm1670, %v2006, 0.0
    %2173 = vadd.xlane.f32.xlu0 %v2172
    %v2174 = vpop.xlane.xlu0 %2173
    %v2175 = vsel %vm1670, %v2008, 0.0
    %2176 = vadd.xlane.f32.xlu0 %v2175
    %v2177 = vpop.xlane.xlu0 %2176
    %v2178 = vsel %vm1670, %v2010, 0.0
    %2179 = vadd.xlane.f32.xlu0 %v2178
    %v2180 = vpop.xlane.xlu0 %2179
    %v2181 = vsel %vm1670, %v2012, 0.0
    %2182 = vadd.xlane.f32.xlu0 %v2181
    %v2183 = vpop.xlane.xlu0 %2182
    %v2184 = vsel %vm1670, %v2014, 0.0
    %2185 = vadd.xlane.f32.xlu0 %v2184
    %v2186 = vpop.xlane.xlu0 %2185
    %v2187 = vsel %vm1670, %v2016, 0.0
    %2188 = vadd.xlane.f32.xlu0 %v2187
    %v2189 = vpop.xlane.xlu0 %2188
    %v2190 = vsel %vm1670, %v2018, 0.0
    %2191 = vadd.xlane.f32.xlu0 %v2190
    %v2192 = vpop.xlane.xlu0 %2191
    %v2193 = vsel %vm1670, %v2020, 0.0
    %2194 = vadd.xlane.f32.xlu0 %v2193
    %v2195 = vpop.xlane.xlu0 %2194
    %v2196 = vsel %vm1670, %v2022, 0.0
    %2197 = vadd.xlane.f32.xlu0 %v2196
    %v2198 = vpop.xlane.xlu0 %2197
    %v2199 = vsel %vm1670, %v2024, 0.0
    %2200 = vadd.xlane.f32.xlu0 %v2199
    %v2201 = vpop.xlane.xlu0 %2200
    %v2202 = vsel %vm1670, %v2026, 0.0
    %2203 = vadd.xlane.f32.xlu0 %v2202
    %v2204 = vpop.xlane.xlu0 %2203
    %v2205 = vsel %vm1670, %v2028, 0.0
    %2206 = vadd.xlane.f32.xlu0 %v2205
    %v2207 = vpop.xlane.xlu0 %2206
    %v2208 = vsel %vm1670, %v2030, 0.0
    %2209 = vadd.xlane.f32.xlu0 %v2208
    %v2210 = vpop.xlane.xlu0 %2209
    %v2211 = vsel %vm1670, %v2032, 0.0
    %2212 = vadd.xlane.f32.xlu0 %v2211
    %v2213 = vpop.xlane.xlu0 %2212
    %v2214 = vsel %vm1670, %v2034, 0.0
    %2215 = vadd.xlane.f32.xlu0 %v2214
    %v2216 = vpop.xlane.xlu0 %2215
    %v2217 = vsel %vm1670, %v2036, 0.0
    %2218 = vadd.xlane.f32.xlu0 %v2217
    %v2219 = vpop.xlane.xlu0 %2218
    %v2220 = vsel %vm1670, %v2038, 0.0
    %2221 = vadd.xlane.f32.xlu0 %v2220
    %v2222 = vpop.xlane.xlu0 %2221
    %v2223 = vsel %vm1670, %v2040, 0.0
    %2224 = vadd.xlane.f32.xlu0 %v2223
    %v2225 = vpop.xlane.xlu0 %2224
    %v2226 = vsel %vm1670, %v2042, 0.0
    %2227 = vadd.xlane.f32.xlu0 %v2226
    %v2228 = vpop.xlane.xlu0 %2227
    %v2229 = vsel %vm1670, %v2044, 0.0
    %2230 = vadd.xlane.f32.xlu0 %v2229
    %v2231 = vpop.xlane.xlu0 %2230
    %v2232 = vsel %vm1670, %v2046, 0.0
    %2233 = vadd.xlane.f32.xlu0 %v2232
    %v2234 = vpop.xlane.xlu0 %2233
    %v2235 = vsel %vm1670, %v2048, 0.0
    %2236 = vadd.xlane.f32.xlu0 %v2235
    %v2237 = vpop.xlane.xlu0 %2236
    %v2238 = vsel %vm1670, %v2050, 0.0
    %2239 = vadd.xlane.f32.xlu0 %v2238
    %v2240 = vpop.xlane.xlu0 %2239
    %v2241 = vsel %vm1670, %v2052, 0.0
    %2242 = vadd.xlane.f32.xlu0 %v2241
    %v2243 = vpop.xlane.xlu0 %2242
    %v2244 = vsel %vm1670, %v2054, 0.0
    %2245 = vadd.xlane.f32.xlu0 %v2244
    %v2246 = vpop.xlane.xlu0 %2245
    %v2247 = vpack.c.bf16 %v1930, %v1928
    %v2248 = vpack.c.bf16 %v1934, %v1932
    %v2249 = vpack.c.bf16 %v1938, %v1936
    %v2250 = vpack.c.bf16 %v1942, %v1940
    %v2251 = vpack.c.bf16 %v1946, %v1944
    %v2252 = vpack.c.bf16 %v1950, %v1948
    %v2253 = vpack.c.bf16 %v1954, %v1952
    %v2254 = vpack.c.bf16 %v1958, %v1956
    %v2255 = vpack.c.bf16 %v1962, %v1960
    %v2256 = vpack.c.bf16 %v1966, %v1964
    %v2257 = vpack.c.bf16 %v1970, %v1968
    %v2258 = vpack.c.bf16 %v1974, %v1972
    %v2259 = vpack.c.bf16 %v1978, %v1976
    %v2260 = vpack.c.bf16 %v1982, %v1980
    %v2261 = vpack.c.bf16 %v1986, %v1984
    %v2262 = vpack.c.bf16 %v1990, %v1988
    %v2263 = vpack.c.bf16 %v1994, %v1992
    %v2264 = vpack.c.bf16 %v1998, %v1996
    %v2265 = vpack.c.bf16 %v2002, %v2000
    %v2266 = vpack.c.bf16 %v2006, %v2004
    %v2267 = vpack.c.bf16 %v2010, %v2008
    %v2268 = vpack.c.bf16 %v2014, %v2012
    %v2269 = vpack.c.bf16 %v2018, %v2016
    %v2270 = vpack.c.bf16 %v2022, %v2020
    %v2271 = vpack.c.bf16 %v2026, %v2024
    %v2272 = vpack.c.bf16 %v2030, %v2028
    %v2273 = vpack.c.bf16 %v2034, %v2032
    %v2274 = vpack.c.bf16 %v2038, %v2036
    %v2275 = vpack.c.bf16 %v2042, %v2040
    %v2276 = vpack.c.bf16 %v2046, %v2044
    %v2277 = vpack.c.bf16 %v2050, %v2048
    %v2278 = vpack.c.bf16 %v2054, %v2052
    %v2280 = vsel %vm1670, %v2247, 0
    %v2283 = vsel %vm1670, %v2248, 0
    %v2286 = vsel %vm1670, %v2249, 0
    %v2289 = vsel %vm1670, %v2250, 0
    %2291 = vmatprep.subr.bf16.mxu0 0
    %2292 = vmatpush1.bf16.msra.mxu0 %v716
    %2293 = vmatprep.subr.bf16.mxu0 0
    %2294 = vmatpush1.bf16.msra.mxu0 %v719
    %2295 = vmatprep.subr.bf16.mxu0 0
    %2296 = vmatpush1.bf16.msra.mxu0 %v722
    %2297 = vmatprep.subr.bf16.mxu0 0
    %2298 = vmatpush1.bf16.msra.mxu0 %v725
    %2299 = vmatprep.subr.bf16.mxu0 0
    %2300 = vmatpush1.bf16.msra.mxu0 0
    %2301 = vmatprep.subr.bf16.mxu0 0
    %2302 = vmatpush1.bf16.msra.mxu0 0
    %2303 = vmatprep.subr.bf16.mxu0 0
    %2304 = vmatpush1.bf16.msra.mxu0 0
    %2305 = vmatprep.subr.bf16.mxu0 0
    %2306 = vmatpush1.bf16.msra.mxu0 0
    %2307 = vmatprep.subr.bf16.mxu0 0
    %2308 = vmatpush1.bf16.msra.mxu0 0
    %2309 = vmatprep.subr.bf16.mxu0 0
    %2310 = vmatpush1.bf16.msra.mxu0 0
    %2311 = vmatprep.subr.bf16.mxu0 0
    %2312 = vmatpush1.bf16.msra.mxu0 0
    %2313 = vmatprep.subr.bf16.mxu0 0
    %2314 = vmatpush1.bf16.msra.mxu0 0
    %2315 = vmatprep.subr.bf16.mxu0 0
    %2316 = vmatpush1.bf16.msra.mxu0 0
    %2317 = vmatprep.subr.bf16.mxu0 0
    %2318 = vmatpush1.bf16.msra.mxu0 0
    %2319 = vmatprep.subr.bf16.mxu0 0
    %2320 = vmatpush1.bf16.msra.mxu0 0
    %2321 = vmatprep.subr.bf16.mxu0 0
    %2322 = vmatpush1.bf16.msra.mxu0 0
    %2323 = vmatprep.mubr.bf16.mxu0 0
    %2324 = vmatmul.mubr.bf16.gmra.mrb[0].mxu0 %v2280
    %v2325 = vpop.f32.mrb[0].mxu0
    %v2326 = vadd.f32 0.0, %v2325
    %v2327 = vpop.f32.mrb[0].mxu0
    %v2328 = vpop.f32.mrb[0].mxu0
    %v2329 = vadd.f32 0.0, %v2328
    %v2330 = vpop.f32.mrb[0].mxu0
    %2331 = vmatprep.mubr.bf16.mxu0 0
    %2332 = vmatmul.mubr.bf16.gmra.mrb[0].mxu0 %v2283
    %v2333 = vpop.f32.mrb[0].mxu0
    %v2334 = vadd.f32 0.0, %v2333
    %v2335 = vpop.f32.mrb[0].mxu0
    %v2336 = vpop.f32.mrb[0].mxu0
    %v2337 = vadd.f32 0.0, %v2336
    %v2338 = vpop.f32.mrb[0].mxu0
    %2339 = vmatprep.mubr.bf16.mxu0 0
    %2340 = vmatmul.mubr.bf16.gmra.mrb[0].mxu0 %v2286
    %v2341 = vpop.f32.mrb[0].mxu0
    %v2342 = vadd.f32 0.0, %v2341
    %v2343 = vpop.f32.mrb[0].mxu0
    %v2344 = vpop.f32.mrb[0].mxu0
    %v2345 = vadd.f32 0.0, %v2344
    %v2346 = vpop.f32.mrb[0].mxu0
    %2347 = vmatprep.mubr.bf16.mxu0 0
    %2348 = vmatmul.mubr.bf16.gmra.mrb[0].mxu0 %v2289
    %v2349 = vpop.f32.mrb[0].mxu0
    %v2350 = vadd.f32 0.0, %v2349
    %v2351 = vpop.f32.mrb[0].mxu0
    %v2352 = vpop.f32.mrb[0].mxu0
    %v2353 = vadd.f32 0.0, %v2352
    %v2354 = vpop.f32.mrb[0].mxu0
    %2355 = vdwg.mxu0
    %v2357 = vsel %vm1670, %v2251, 0
    %v2360 = vsel %vm1670, %v2252, 0
    %v2363 = vsel %vm1670, %v2253, 0
    %v2366 = vsel %vm1670, %v2254, 0
    %2368 = vmatprep.subr.bf16.mxu0 0
    %2369 = vmatpush1.bf16.msra.mxu0 %v728
    %2370 = vmatprep.subr.bf16.mxu0 0
    %2371 = vmatpush1.bf16.msra.mxu0 %v731
    %2372 = vmatprep.subr.bf16.mxu0 0
    %2373 = vmatpush1.bf16.msra.mxu0 %v734
    %2374 = vmatprep.subr.bf16.mxu0 0
    %2375 = vmatpush1.bf16.msra.mxu0 %v737
    %2376 = vmatprep.subr.bf16.mxu0 0
    %2377 = vmatpush1.bf16.msra.mxu0 0
    %2378 = vmatprep.subr.bf16.mxu0 0
    %2379 = vmatpush1.bf16.msra.mxu0 0
    %2380 = vmatprep.subr.bf16.mxu0 0
    %2381 = vmatpush1.bf16.msra.mxu0 0
    %2382 = vmatprep.subr.bf16.mxu0 0
    %2383 = vmatpush1.bf16.msra.mxu0 0
    %2384 = vmatprep.subr.bf16.mxu0 0
    %2385 = vmatpush1.bf16.msra.mxu0 0
    %2386 = vmatprep.subr.bf16.mxu0 0
    %2387 = vmatpush1.bf16.msra.mxu0 0
    %2388 = vmatprep.subr.bf16.mxu0 0
    %2389 = vmatpush1.bf16.msra.mxu0 0
    %2390 = vmatprep.subr.bf16.mxu0 0
    %2391 = vmatpush1.bf16.msra.mxu0 0
    %2392 = vmatprep.subr.bf16.mxu0 0
    %2393 = vmatpush1.bf16.msra.mxu0 0
    %2394 = vmatprep.subr.bf16.mxu0 0
    %2395 = vmatpush1.bf16.msra.mxu0 0
    %2396 = vmatprep.subr.bf16.mxu0 0
    %2397 = vmatpush1.bf16.msra.mxu0 0
    %2398 = vmatprep.subr.bf16.mxu0 0
    %2399 = vmatpush1.bf16.msra.mxu0 0
    %2400 = vmatprep.mubr.bf16.mxu0 0
    %2401 = vmatmul.mubr.bf16.gmra.mrb[0].mxu0 %v2357
    %v2402 = vpop.f32.mrb[0].mxu0
    %v2403 = vadd.f32 0.0, %v2402
    %v2404 = vpop.f32.mrb[0].mxu0
    %v2405 = vpop.f32.mrb[0].mxu0
    %v2406 = vadd.f32 0.0, %v2405
    %v2407 = vpop.f32.mrb[0].mxu0
    %2408 = vmatprep.mubr.bf16.mxu0 0
    %2409 = vmatmul.mubr.bf16.gmra.mrb[0].mxu0 %v2360
    %v2410 = vpop.f32.mrb[0].mxu0
    %v2411 = vadd.f32 0.0, %v2410
    %v2412 = vpop.f32.mrb[0].mxu0
    %v2413 = vpop.f32.mrb[0].mxu0
    %v2414 = vadd.f32 0.0, %v2413
    %v2415 = vpop.f32.mrb[0].mxu0
    %2416 = vmatprep.mubr.bf16.mxu0 0
    %2417 = vmatmul.mubr.bf16.gmra.mrb[0].mxu0 %v2363
    %v2418 = vpop.f32.mrb[0].mxu0
    %v2419 = vadd.f32 0.0, %v2418
    %v2420 = vpop.f32.mrb[0].mxu0
    %v2421 = vpop.f32.mrb[0].mxu0
    %v2422 = vadd.f32 0.0, %v2421
    %v2423 = vpop.f32.mrb[0].mxu0
    %2424 = vmatprep.mubr.bf16.mxu0 0
    %2425 = vmatmul.mubr.bf16.gmra.mrb[0].mxu0 %v2366
    %v2426 = vpop.f32.mrb[0].mxu0
    %v2427 = vadd.f32 0.0, %v2426
    %v2428 = vpop.f32.mrb[0].mxu0
    %v2429 = vpop.f32.mrb[0].mxu0
    %v2430 = vadd.f32 0.0, %v2429
    %v2431 = vpop.f32.mrb[0].mxu0
    %2432 = vdwg.mxu0
    %v2434 = vsel %vm1670, %v2255, 0
    %v2437 = vsel %vm1670, %v2256, 0
    %v2440 = vsel %vm1670, %v2257, 0
    %v2443 = vsel %vm1670, %v2258, 0
    %2445 = vmatprep.subr.bf16.mxu0 0
    %2446 = vmatpush1.bf16.msra.mxu0 %v859
    %2447 = vmatprep.subr.bf16.mxu0 0
    %2448 = vmatpush1.bf16.msra.mxu0 %v861
    %2449 = vmatprep.subr.bf16.mxu0 0
    %2450 = vmatpush1.bf16.msra.mxu0 %v863
    %2451 = vmatprep.subr.bf16.mxu0 0
    %2452 = vmatpush1.bf16.msra.mxu0 %v865
    %2453 = vmatprep.subr.bf16.mxu0 0
    %2454 = vmatpush1.bf16.msra.mxu0 0
    %2455 = vmatprep.subr.bf16.mxu0 0
    %2456 = vmatpush1.bf16.msra.mxu0 0
    %2457 = vmatprep.subr.bf16.mxu0 0
    %2458 = vmatpush1.bf16.msra.mxu0 0
    %2459 = vmatprep.subr.bf16.mxu0 0
    %2460 = vmatpush1.bf16.msra.mxu0 0
    %2461 = vmatprep.subr.bf16.mxu0 0
    %2462 = vmatpush1.bf16.msra.mxu0 0
    %2463 = vmatprep.subr.bf16.mxu0 0
    %2464 = vmatpush1.bf16.msra.mxu0 0
    %2465 = vmatprep.subr.bf16.mxu0 0
    %2466 = vmatpush1.bf16.msra.mxu0 0
    %2467 = vmatprep.subr.bf16.mxu0 0
    %2468 = vmatpush1.bf16.msra.mxu0 0
    %2469 = vmatprep.subr.bf16.mxu0 0
    %2470 = vmatpush1.bf16.msra.mxu0 0
    %2471 = vmatprep.subr.bf16.mxu0 0
    %2472 = vmatpush1.bf16.msra.mxu0 0
    %2473 = vmatprep.subr.bf16.mxu0 0
    %2474 = vmatpush1.bf16.msra.mxu0 0
    %2475 = vmatprep.subr.bf16.mxu0 0
    %2476 = vmatpush1.bf16.msra.mxu0 0
    %2477 = vmatprep.mubr.bf16.mxu0 0
    %2478 = vmatmul.mubr.bf16.gmra.mrb[0].mxu0 %v2434
    %v2479 = vpop.f32.mrb[0].mxu0
    %v2480 = vadd.f32 0.0, %v2479
    %v2481 = vpop.f32.mrb[0].mxu0
    %v2482 = vpop.f32.mrb[0].mxu0
    %v2483 = vadd.f32 0.0, %v2482
    %v2484 = vpop.f32.mrb[0].mxu0
    %2485 = vmatprep.mubr.bf16.mxu0 0
    %2486 = vmatmul.mubr.bf16.gmra.mrb[0].mxu0 %v2437
    %v2487 = vpop.f32.mrb[0].mxu0
    %v2488 = vadd.f32 0.0, %v2487
    %v2489 = vpop.f32.mrb[0].mxu0
    %v2490 = vpop.f32.mrb[0].mxu0
    %v2491 = vadd.f32 0.0, %v2490
    %v2492 = vpop.f32.mrb[0].mxu0
    %2493 = vmatprep.mubr.bf16.mxu0 0
    %2494 = vmatmul.mubr.bf16.gmra.mrb[0].mxu0 %v2440
    %v2495 = vpop.f32.mrb[0].mxu0
    %v2496 = vadd.f32 0.0, %v2495
    %v2497 = vpop.f32.mrb[0].mxu0
    %v2498 = vpop.f32.mrb[0].mxu0
    %v2499 = vadd.f32 0.0, %v2498
    %v2500 = vpop.f32.mrb[0].mxu0
    %2501 = vmatprep.mubr.bf16.mxu0 0
    %2502 = vmatmul.mubr.bf16.gmra.mrb[0].mxu0 %v2443
    %v2503 = vpop.f32.mrb[0].mxu0
    %v2504 = vadd.f32 0.0, %v2503
    %v2505 = vpop.f32.mrb[0].mxu0
    %v2506 = vpop.f32.mrb[0].mxu0
    %v2507 = vadd.f32 0.0, %v2506
    %v2508 = vpop.f32.mrb[0].mxu0
    %2509 = vdwg.mxu0
    %v2511 = vsel %vm1670, %v2259, 0
    %v2514 = vsel %vm1670, %v2260, 0
    %v2517 = vsel %vm1670, %v2261, 0
    %v2520 = vsel %vm1670, %v2262, 0
    %2522 = vmatprep.subr.bf16.mxu0 0
    %2523 = vmatpush1.bf16.msra.mxu0 %v867
    %2524 = vmatprep.subr.bf16.mxu0 0
    %2525 = vmatpush1.bf16.msra.mxu0 %v869
    %2526 = vmatprep.subr.bf16.mxu0 0
    %2527 = vmatpush1.bf16.msra.mxu0 %v871
    %2528 = vmatprep.subr.bf16.mxu0 0
    %2529 = vmatpush1.bf16.msra.mxu0 %v873
    %2530 = vmatprep.subr.bf16.mxu0 0
    %2531 = vmatpush1.bf16.msra.mxu0 0
    %2532 = vmatprep.subr.bf16.mxu0 0
    %2533 = vmatpush1.bf16.msra.mxu0 0
    %2534 = vmatprep.subr.bf16.mxu0 0
    %2535 = vmatpush1.bf16.msra.mxu0 0
    %2536 = vmatprep.subr.bf16.mxu0 0
    %2537 = vmatpush1.bf16.msra.mxu0 0
    %2538 = vmatprep.subr.bf16.mxu0 0
    %2539 = vmatpush1.bf16.msra.mxu0 0
    %2540 = vmatprep.subr.bf16.mxu0 0
    %2541 = vmatpush1.bf16.msra.mxu0 0
    %2542 = vmatprep.subr.bf16.mxu0 0
    %2543 = vmatpush1.bf16.msra.mxu0 0
    %2544 = vmatprep.subr.bf16.mxu0 0
    %2545 = vmatpush1.bf16.msra.mxu0 0
    %2546 = vmatprep.subr.bf16.mxu0 0
    %2547 = vmatpush1.bf16.msra.mxu0 0
    %2548 = vmatprep.subr.bf16.mxu0 0
    %2549 = vmatpush1.bf16.msra.mxu0 0
    %2550 = vmatprep.subr.bf16.mxu0 0
    %2551 = vmatpush1.bf16.msra.mxu0 0
    %2552 = vmatprep.subr.bf16.mxu0 0
    %2553 = vmatpush1.bf16.msra.mxu0 0
    %2554 = vmatprep.mubr.bf16.mxu0 0
    %2555 = vmatmul.mubr.bf16.gmra.mrb[0].mxu0 %v2511
    %v2556 = vpop.f32.mrb[0].mxu0
    %v2557 = vadd.f32 0.0, %v2556
    %v2558 = vpop.f32.mrb[0].mxu0
    %v2559 = vpop.f32.mrb[0].mxu0
    %v2560 = vadd.f32 0.0, %v2559
    %v2561 = vpop.f32.mrb[0].mxu0
    %2562 = vmatprep.mubr.bf16.mxu0 0
    %2563 = vmatmul.mubr.bf16.gmra.mrb[0].mxu0 %v2514
    %v2564 = vpop.f32.mrb[0].mxu0
    %v2565 = vadd.f32 0.0, %v2564
    %v2566 = vpop.f32.mrb[0].mxu0
    %v2567 = vpop.f32.mrb[0].mxu0
    %v2568 = vadd.f32 0.0, %v2567
    %v2569 = vpop.f32.mrb[0].mxu0
    %2570 = vmatprep.mubr.bf16.mxu0 0
    %2571 = vmatmul.mubr.bf16.gmra.mrb[0].mxu0 %v2517
    %v2572 = vpop.f32.mrb[0].mxu0
    %v2573 = vadd.f32 0.0, %v2572
    %v2574 = vpop.f32.mrb[0].mxu0
    %v2575 = vpop.f32.mrb[0].mxu0
    %v2576 = vadd.f32 0.0, %v2575
    %v2577 = vpop.f32.mrb[0].mxu0
    %2578 = vmatprep.mubr.bf16.mxu0 0
    %2579 = vmatmul.mubr.bf16.gmra.mrb[0].mxu0 %v2520
    %v2580 = vpop.f32.mrb[0].mxu0
    %v2581 = vadd.f32 0.0, %v2580
    %v2582 = vpop.f32.mrb[0].mxu0
    %v2583 = vpop.f32.mrb[0].mxu0
    %v2584 = vadd.f32 0.0, %v2583
    %v2585 = vpop.f32.mrb[0].mxu0
    %2586 = vdwg.mxu0
    %v2588 = vsel %vm1670, %v2263, 0
    %v2591 = vsel %vm1670, %v2264, 0
    %v2594 = vsel %vm1670, %v2265, 0
    %v2597 = vsel %vm1670, %v2266, 0
    %2599 = vmatprep.subr.bf16.mxu0 0
    %2600 = vmatpush1.bf16.msra.mxu0 %v883
    %2601 = vmatprep.subr.bf16.mxu0 0
    %2602 = vmatpush1.bf16.msra.mxu0 %v885
    %2603 = vmatprep.subr.bf16.mxu0 0
    %2604 = vmatpush1.bf16.msra.mxu0 %v887
    %2605 = vmatprep.subr.bf16.mxu0 0
    %2606 = vmatpush1.bf16.msra.mxu0 %v889
    %2607 = vmatprep.subr.bf16.mxu0 0
    %2608 = vmatpush1.bf16.msra.mxu0 0
    %2609 = vmatprep.subr.bf16.mxu0 0
    %2610 = vmatpush1.bf16.msra.mxu0 0
    %2611 = vmatprep.subr.bf16.mxu0 0
    %2612 = vmatpush1.bf16.msra.mxu0 0
    %2613 = vmatprep.subr.bf16.mxu0 0
    %2614 = vmatpush1.bf16.msra.mxu0 0
    %2615 = vmatprep.subr.bf16.mxu0 0
    %2616 = vmatpush1.bf16.msra.mxu0 0
    %2617 = vmatprep.subr.bf16.mxu0 0
    %2618 = vmatpush1.bf16.msra.mxu0 0
    %2619 = vmatprep.subr.bf16.mxu0 0
    %2620 = vmatpush1.bf16.msra.mxu0 0
    %2621 = vmatprep.subr.bf16.mxu0 0
    %2622 = vmatpush1.bf16.msra.mxu0 0
    %2623 = vmatprep.subr.bf16.mxu0 0
    %2624 = vmatpush1.bf16.msra.mxu0 0
    %2625 = vmatprep.subr.bf16.mxu0 0
    %2626 = vmatpush1.bf16.msra.mxu0 0
    %2627 = vmatprep.subr.bf16.mxu0 0
    %2628 = vmatpush1.bf16.msra.mxu0 0
    %2629 = vmatprep.subr.bf16.mxu0 0
    %2630 = vmatpush1.bf16.msra.mxu0 0
    %2631 = vmatprep.mubr.bf16.mxu0 0
    %2632 = vmatmul.mubr.bf16.gmra.mrb[0].mxu0 %v2588
    %v2633 = vpop.f32.mrb[0].mxu0
    %v2634 = vadd.f32 0.0, %v2633
    %v2635 = vpop.f32.mrb[0].mxu0
    %v2636 = vpop.f32.mrb[0].mxu0
    %v2637 = vadd.f32 0.0, %v2636
    %v2638 = vpop.f32.mrb[0].mxu0
    %2639 = vmatprep.mubr.bf16.mxu0 0
    %2640 = vmatmul.mubr.bf16.gmra.mrb[0].mxu0 %v2591
    %v2641 = vpop.f32.mrb[0].mxu0
    %v2642 = vadd.f32 0.0, %v2641
    %v2643 = vpop.f32.mrb[0].mxu0
    %v2644 = vpop.f32.mrb[0].mxu0
    %v2645 = vadd.f32 0.0, %v2644
    %v2646 = vpop.f32.mrb[0].mxu0
    %2647 = vmatprep.mubr.bf16.mxu0 0
    %2648 = vmatmul.mubr.bf16.gmra.mrb[0].mxu0 %v2594
    %v2649 = vpop.f32.mrb[0].mxu0
    %v2650 = vadd.f32 0.0, %v2649
    %v2651 = vpop.f32.mrb[0].mxu0
    %v2652 = vpop.f32.mrb[0].mxu0
    %v2653 = vadd.f32 0.0, %v2652
    %v2654 = vpop.f32.mrb[0].mxu0
    %2655 = vmatprep.mubr.bf16.mxu0 0
    %2656 = vmatmul.mubr.bf16.gmra.mrb[0].mxu0 %v2597
    %v2657 = vpop.f32.mrb[0].mxu0
    %v2658 = vadd.f32 0.0, %v2657
    %v2659 = vpop.f32.mrb[0].mxu0
    %v2660 = vpop.f32.mrb[0].mxu0
    %v2661 = vadd.f32 0.0, %v2660
    %v2662 = vpop.f32.mrb[0].mxu0
    %2663 = vdwg.mxu0
    %v2665 = vsel %vm1670, %v2267, 0
    %v2668 = vsel %vm1670, %v2268, 0
    %v2671 = vsel %vm1670, %v2269, 0
    %v2674 = vsel %vm1670, %v2270, 0
    %2676 = vmatprep.subr.bf16.mxu0 0
    %2677 = vmatpush1.bf16.msra.mxu0 %v891
    %2678 = vmatprep.subr.bf16.mxu0 0
    %2679 = vmatpush1.bf16.msra.mxu0 %v893
    %2680 = vmatprep.subr.bf16.mxu0 0
    %2681 = vmatpush1.bf16.msra.mxu0 %v895
    %2682 = vmatprep.subr.bf16.mxu0 0
    %2683 = vmatpush1.bf16.msra.mxu0 %v897
    %2684 = vmatprep.subr.bf16.mxu0 0
    %2685 = vmatpush1.bf16.msra.mxu0 0
    %2686 = vmatprep.subr.bf16.mxu0 0
    %2687 = vmatpush1.bf16.msra.mxu0 0
    %2688 = vmatprep.subr.bf16.mxu0 0
    %2689 = vmatpush1.bf16.msra.mxu0 0
    %2690 = vmatprep.subr.bf16.mxu0 0
    %2691 = vmatpush1.bf16.msra.mxu0 0
    %2692 = vmatprep.subr.bf16.mxu0 0
    %2693 = vmatpush1.bf16.msra.mxu0 0
    %2694 = vmatprep.subr.bf16.mxu0 0
    %2695 = vmatpush1.bf16.msra.mxu0 0
    %2696 = vmatprep.subr.bf16.mxu0 0
    %2697 = vmatpush1.bf16.msra.mxu0 0
    %2698 = vmatprep.subr.bf16.mxu0 0
    %2699 = vmatpush1.bf16.msra.mxu0 0
    %2700 = vmatprep.subr.bf16.mxu0 0
    %2701 = vmatpush1.bf16.msra.mxu0 0
    %2702 = vmatprep.subr.bf16.mxu0 0
    %2703 = vmatpush1.bf16.msra.mxu0 0
    %2704 = vmatprep.subr.bf16.mxu0 0
    %2705 = vmatpush1.bf16.msra.mxu0 0
    %2706 = vmatprep.subr.bf16.mxu0 0
    %2707 = vmatpush1.bf16.msra.mxu0 0
    %2708 = vmatprep.mubr.bf16.mxu0 0
    %2709 = vmatmul.mubr.bf16.gmra.mrb[0].mxu0 %v2665
    %v2710 = vpop.f32.mrb[0].mxu0
    %v2711 = vadd.f32 0.0, %v2710
    %v2712 = vpop.f32.mrb[0].mxu0
    %v2713 = vpop.f32.mrb[0].mxu0
    %v2714 = vadd.f32 0.0, %v2713
    %v2715 = vpop.f32.mrb[0].mxu0
    %2716 = vmatprep.mubr.bf16.mxu0 0
    %2717 = vmatmul.mubr.bf16.gmra.mrb[0].mxu0 %v2668
    %v2718 = vpop.f32.mrb[0].mxu0
    %v2719 = vadd.f32 0.0, %v2718
    %v2720 = vpop.f32.mrb[0].mxu0
    %v2721 = vpop.f32.mrb[0].mxu0
    %v2722 = vadd.f32 0.0, %v2721
    %v2723 = vpop.f32.mrb[0].mxu0
    %2724 = vmatprep.mubr.bf16.mxu0 0
    %2725 = vmatmul.mubr.bf16.gmra.mrb[0].mxu0 %v2671
    %v2726 = vpop.f32.mrb[0].mxu0
    %v2727 = vadd.f32 0.0, %v2726
    %v2728 = vpop.f32.mrb[0].mxu0
    %v2729 = vpop.f32.mrb[0].mxu0
    %v2730 = vadd.f32 0.0, %v2729
    %v2731 = vpop.f32.mrb[0].mxu0
    %2732 = vmatprep.mubr.bf16.mxu0 0
    %2733 = vmatmul.mubr.bf16.gmra.mrb[0].mxu0 %v2674
    %v2734 = vpop.f32.mrb[0].mxu0
    %v2735 = vadd.f32 0.0, %v2734
    %v2736 = vpop.f32.mrb[0].mxu0
    %v2737 = vpop.f32.mrb[0].mxu0
    %v2738 = vadd.f32 0.0, %v2737
    %v2739 = vpop.f32.mrb[0].mxu0
    %2740 = vdwg.mxu0
    %v2742 = vsel %vm1670, %v2271, 0
    %v2745 = vsel %vm1670, %v2272, 0
    %v2748 = vsel %vm1670, %v2273, 0
    %v2751 = vsel %vm1670, %v2274, 0
    %2753 = vmatprep.subr.bf16.mxu0 0
    %2754 = vmatpush1.bf16.msra.mxu0 %v907
    %2755 = vmatprep.subr.bf16.mxu0 0
    %2756 = vmatpush1.bf16.msra.mxu0 %v909
    %2757 = vmatprep.subr.bf16.mxu0 0
    %2758 = vmatpush1.bf16.msra.mxu0 %v911
    %2759 = vmatprep.subr.bf16.mxu0 0
    %2760 = vmatpush1.bf16.msra.mxu0 %v913
    %2761 = vmatprep.subr.bf16.mxu0 0
    %2762 = vmatpush1.bf16.msra.mxu0 0
    %2763 = vmatprep.subr.bf16.mxu0 0
    %2764 = vmatpush1.bf16.msra.mxu0 0
    %2765 = vmatprep.subr.bf16.mxu0 0
    %2766 = vmatpush1.bf16.msra.mxu0 0
    %2767 = vmatprep.subr.bf16.mxu0 0
    %2768 = vmatpush1.bf16.msra.mxu0 0
    %2769 = vmatprep.subr.bf16.mxu0 0
    %2770 = vmatpush1.bf16.msra.mxu0 0
    %2771 = vmatprep.subr.bf16.mxu0 0
    %2772 = vmatpush1.bf16.msra.mxu0 0
    %2773 = vmatprep.subr.bf16.mxu0 0
    %2774 = vmatpush1.bf16.msra.mxu0 0
    %2775 = vmatprep.subr.bf16.mxu0 0
    %2776 = vmatpush1.bf16.msra.mxu0 0
    %2777 = vmatprep.subr.bf16.mxu0 0
    %2778 = vmatpush1.bf16.msra.mxu0 0
    %2779 = vmatprep.subr.bf16.mxu0 0
    %2780 = vmatpush1.bf16.msra.mxu0 0
    %2781 = vmatprep.subr.bf16.mxu0 0
    %2782 = vmatpush1.bf16.msra.mxu0 0
    %2783 = vmatprep.subr.bf16.mxu0 0
    %2784 = vmatpush1.bf16.msra.mxu0 0
    %2785 = vmatprep.mubr.bf16.mxu0 0
    %2786 = vmatmul.mubr.bf16.gmra.mrb[0].mxu0 %v2742
    %v2787 = vpop.f32.mrb[0].mxu0
    %v2788 = vadd.f32 0.0, %v2787
    %v2789 = vpop.f32.mrb[0].mxu0
    %v2790 = vpop.f32.mrb[0].mxu0
    %v2791 = vadd.f32 0.0, %v2790
    %v2792 = vpop.f32.mrb[0].mxu0
    %2793 = vmatprep.mubr.bf16.mxu0 0
    %2794 = vmatmul.mubr.bf16.gmra.mrb[0].mxu0 %v2745
    %v2795 = vpop.f32.mrb[0].mxu0
    %v2796 = vadd.f32 0.0, %v2795
    %v2797 = vpop.f32.mrb[0].mxu0
    %v2798 = vpop.f32.mrb[0].mxu0
    %v2799 = vadd.f32 0.0, %v2798
    %v2800 = vpop.f32.mrb[0].mxu0
    %2801 = vmatprep.mubr.bf16.mxu0 0
    %2802 = vmatmul.mubr.bf16.gmra.mrb[0].mxu0 %v2748
    %v2803 = vpop.f32.mrb[0].mxu0
    %v2804 = vadd.f32 0.0, %v2803
    %v2805 = vpop.f32.mrb[0].mxu0
    %v2806 = vpop.f32.mrb[0].mxu0
    %v2807 = vadd.f32 0.0, %v2806
    %v2808 = vpop.f32.mrb[0].mxu0
    %2809 = vmatprep.mubr.bf16.mxu0 0
    %2810 = vmatmul.mubr.bf16.gmra.mrb[0].mxu0 %v2751
    %v2811 = vpop.f32.mrb[0].mxu0
    %v2812 = vadd.f32 0.0, %v2811
    %v2813 = vpop.f32.mrb[0].mxu0
    %v2814 = vpop.f32.mrb[0].mxu0
    %v2815 = vadd.f32 0.0, %v2814
    %v2816 = vpop.f32.mrb[0].mxu0
    %2817 = vdwg.mxu0
    %v2819 = vsel %vm1670, %v2275, 0
    %v2822 = vsel %vm1670, %v2276, 0
    %v2825 = vsel %vm1670, %v2277, 0
    %v2828 = vsel %vm1670, %v2278, 0
    %2830 = vmatprep.subr.bf16.mxu0 0
    %2831 = vmatpush1.bf16.msra.mxu0 %v915
    %2832 = vmatprep.subr.bf16.mxu0 0
    %2833 = vmatpush1.bf16.msra.mxu0 %v917
    %2834 = vmatprep.subr.bf16.mxu0 0
    %2835 = vmatpush1.bf16.msra.mxu0 %v919
    %2836 = vmatprep.subr.bf16.mxu0 0
    %2837 = vmatpush1.bf16.msra.mxu0 %v921
    %2838 = vmatprep.subr.bf16.mxu0 0
    %2839 = vmatpush1.bf16.msra.mxu0 0
    %2840 = vmatprep.subr.bf16.mxu0 0
    %2841 = vmatpush1.bf16.msra.mxu0 0
    %2842 = vmatprep.subr.bf16.mxu0 0
    %2843 = vmatpush1.bf16.msra.mxu0 0
    %2844 = vmatprep.subr.bf16.mxu0 0
    %2845 = vmatpush1.bf16.msra.mxu0 0
    %2846 = vmatprep.subr.bf16.mxu0 0
    %2847 = vmatpush1.bf16.msra.mxu0 0
    %2848 = vmatprep.subr.bf16.mxu0 0
    %2849 = vmatpush1.bf16.msra.mxu0 0
    %2850 = vmatprep.subr.bf16.mxu0 0
    %2851 = vmatpush1.bf16.msra.mxu0 0
    %2852 = vmatprep.subr.bf16.mxu0 0
    %2853 = vmatpush1.bf16.msra.mxu0 0
    %2854 = vmatprep.subr.bf16.mxu0 0
    %2855 = vmatpush1.bf16.msra.mxu0 0
    %2856 = vmatprep.subr.bf16.mxu0 0
    %2857 = vmatpush1.bf16.msra.mxu0 0
    %2858 = vmatprep.subr.bf16.mxu0 0
    %2859 = vmatpush1.bf16.msra.mxu0 0
    %2860 = vmatprep.subr.bf16.mxu0 0
    %2861 = vmatpush1.bf16.msra.mxu0 0
    %2862 = vmatprep.mubr.bf16.mxu0 0
    %2863 = vmatmul.mubr.bf16.gmra.mrb[0].mxu0 %v2819
    %v2864 = vpop.f32.mrb[0].mxu0
    %v2865 = vadd.f32 0.0, %v2864
    %v2866 = vpop.f32.mrb[0].mxu0
    %v2867 = vpop.f32.mrb[0].mxu0
    %v2868 = vadd.f32 0.0, %v2867
    %v2869 = vpop.f32.mrb[0].mxu0
    %2870 = vmatprep.mubr.bf16.mxu0 0
    %2871 = vmatmul.mubr.bf16.gmra.mrb[0].mxu0 %v2822
    %v2872 = vpop.f32.mrb[0].mxu0
    %v2873 = vadd.f32 0.0, %v2872
    %v2874 = vpop.f32.mrb[0].mxu0
    %v2875 = vpop.f32.mrb[0].mxu0
    %v2876 = vadd.f32 0.0, %v2875
    %v2877 = vpop.f32.mrb[0].mxu0
    %2878 = vmatprep.mubr.bf16.mxu0 0
    %2879 = vmatmul.mubr.bf16.gmra.mrb[0].mxu0 %v2825
    %v2880 = vpop.f32.mrb[0].mxu0
    %v2881 = vadd.f32 0.0, %v2880
    %v2882 = vpop.f32.mrb[0].mxu0
    %v2883 = vpop.f32.mrb[0].mxu0
    %v2884 = vadd.f32 0.0, %v2883
    %v2885 = vpop.f32.mrb[0].mxu0
    %2886 = vmatprep.mubr.bf16.mxu0 0
    %2887 = vmatmul.mubr.bf16.gmra.mrb[0].mxu0 %v2828
    %v2888 = vpop.f32.mrb[0].mxu0
    %v2889 = vadd.f32 0.0, %v2888
    %v2890 = vpop.f32.mrb[0].mxu0
    %v2891 = vpop.f32.mrb[0].mxu0
    %v2892 = vadd.f32 0.0, %v2891
    %v2893 = vpop.f32.mrb[0].mxu0
    %2894 = vdwg.mxu0
    %v2895 = vrcp.pop %v2057
    %v2896 = vrcp.pop %v2060
    %v2897 = vrcp.pop %v2063
    %v2898 = vrcp.pop %v2066
    %v2899 = vrcp.pop %v2069
    %v2900 = vrcp.pop %v2072
    %v2901 = vrcp.pop %v2075
    %v2902 = vrcp.pop %v2078
    %v2903 = vrcp.pop %v2081
    %v2904 = vrcp.pop %v2084
    %v2905 = vrcp.pop %v2087
    %v2906 = vrcp.pop %v2090
    %v2907 = vrcp.pop %v2093
    %v2908 = vrcp.pop %v2096
    %v2909 = vrcp.pop %v2099
    %v2910 = vrcp.pop %v2102
    %v2911 = vrcp.pop %v2105
    %v2912 = vrcp.pop %v2108
    %v2913 = vrcp.pop %v2111
    %v2914 = vrcp.pop %v2114
    %v2915 = vrcp.pop %v2117
    %v2916 = vrcp.pop %v2120
    %v2917 = vrcp.pop %v2123
    %v2918 = vrcp.pop %v2126
    %v2919 = vrcp.pop %v2129
    %v2920 = vrcp.pop %v2132
    %v2921 = vrcp.pop %v2135
    %v2922 = vrcp.pop %v2138
    %v2923 = vrcp.pop %v2141
    %v2924 = vrcp.pop %v2144
    %v2925 = vrcp.pop %v2147
    %v2926 = vrcp.pop %v2150
    %v2927 = vrcp.pop %v2153
    %v2928 = vrcp.pop %v2156
    %v2929 = vrcp.pop %v2159
    %v2930 = vrcp.pop %v2162
    %v2931 = vrcp.pop %v2165
    %v2932 = vrcp.pop %v2168
    %v2933 = vrcp.pop %v2171
    %v2934 = vrcp.pop %v2174
    %v2935 = vrcp.pop %v2177
    %v2936 = vrcp.pop %v2180
    %v2937 = vrcp.pop %v2183
    %v2938 = vrcp.pop %v2186
    %v2939 = vrcp.pop %v2189
    %v2940 = vrcp.pop %v2192
    %v2941 = vrcp.pop %v2195
    %v2942 = vrcp.pop %v2198
    %v2943 = vrcp.pop %v2201
    %v2944 = vrcp.pop %v2204
    %v2945 = vrcp.pop %v2207
    %v2946 = vrcp.pop %v2210
    %v2947 = vrcp.pop %v2213
    %v2948 = vrcp.pop %v2216
    %v2949 = vrcp.pop %v2219
    %v2950 = vrcp.pop %v2222
    %v2951 = vrcp.pop %v2225
    %v2952 = vrcp.pop %v2228
    %v2953 = vrcp.pop %v2231
    %v2954 = vrcp.pop %v2234
    %v2955 = vrcp.pop %v2237
    %v2956 = vrcp.pop %v2240
    %v2957 = vrcp.pop %v2243
    %v2958 = vrcp.pop %v2246
    %v2959 = vmul.f32 %v2326, %v2895
    %v2960 = vmul.f32 %v2329, %v2896
    %v2961 = vmul.f32 %v2334, %v2897
    %v2962 = vmul.f32 %v2337, %v2898
    %v2963 = vmul.f32 %v2342, %v2899
    %v2964 = vmul.f32 %v2345, %v2900
    %v2965 = vmul.f32 %v2350, %v2901
    %v2966 = vmul.f32 %v2353, %v2902
    %v2967 = vmul.f32 %v2403, %v2903
    %v2968 = vmul.f32 %v2406, %v2904
    %v2969 = vmul.f32 %v2411, %v2905
    %v2970 = vmul.f32 %v2414, %v2906
    %v2971 = vmul.f32 %v2419, %v2907
    %v2972 = vmul.f32 %v2422, %v2908
    %v2973 = vmul.f32 %v2427, %v2909
    %v2974 = vmul.f32 %v2430, %v2910
    %v2975 = vmul.f32 %v2480, %v2911
    %v2976 = vmul.f32 %v2483, %v2912
    %v2977 = vmul.f32 %v2488, %v2913
    %v2978 = vmul.f32 %v2491, %v2914
    %v2979 = vmul.f32 %v2496, %v2915
    %v2980 = vmul.f32 %v2499, %v2916
    %v2981 = vmul.f32 %v2504, %v2917
    %v2982 = vmul.f32 %v2507, %v2918
    %v2983 = vmul.f32 %v2557, %v2919
    %v2984 = vmul.f32 %v2560, %v2920
    %v2985 = vmul.f32 %v2565, %v2921
    %v2986 = vmul.f32 %v2568, %v2922
    %v2987 = vmul.f32 %v2573, %v2923
    %v2988 = vmul.f32 %v2576, %v2924
    %v2989 = vmul.f32 %v2581, %v2925
    %v2990 = vmul.f32 %v2584, %v2926
    %v2991 = vmul.f32 %v2634, %v2927
    %v2992 = vmul.f32 %v2637, %v2928
    %v2993 = vmul.f32 %v2642, %v2929
    %v2994 = vmul.f32 %v2645, %v2930
    %v2995 = vmul.f32 %v2650, %v2931
    %v2996 = vmul.f32 %v2653, %v2932
    %v2997 = vmul.f32 %v2658, %v2933
    %v2998 = vmul.f32 %v2661, %v2934
    %v2999 = vmul.f32 %v2711, %v2935
    %v3000 = vmul.f32 %v2714, %v2936
    %v3001 = vmul.f32 %v2719, %v2937
    %v3002 = vmul.f32 %v2722, %v2938
    %v3003 = vmul.f32 %v2727, %v2939
    %v3004 = vmul.f32 %v2730, %v2940
    %v3005 = vmul.f32 %v2735, %v2941
    %v3006 = vmul.f32 %v2738, %v2942
    %v3007 = vmul.f32 %v2788, %v2943
    %v3008 = vmul.f32 %v2791, %v2944
    %v3009 = vmul.f32 %v2796, %v2945
    %v3010 = vmul.f32 %v2799, %v2946
    %v3011 = vmul.f32 %v2804, %v2947
    %v3012 = vmul.f32 %v2807, %v2948
    %v3013 = vmul.f32 %v2812, %v2949
    %v3014 = vmul.f32 %v2815, %v2950
    %v3015 = vmul.f32 %v2865, %v2951
    %v3016 = vmul.f32 %v2868, %v2952
    %v3017 = vmul.f32 %v2873, %v2953
    %v3018 = vmul.f32 %v2876, %v2954
    %v3019 = vmul.f32 %v2881, %v2955
    %v3020 = vmul.f32 %v2884, %v2956
    %v3021 = vmul.f32 %v2889, %v2957
    %v3022 = vmul.f32 %v2892, %v2958
    %3039 = vrot.lane.b32.xlu0 %v2975, 32
    %v3040 = vpop.permute.xlu0 %3039
    %3041 = vrot.lane.b32.xlu0 %v2976, 32
    %v3042 = vpop.permute.xlu0 %3041
    %3043 = vrot.lane.b32.xlu0 %v2977, 32
    %v3044 = vpop.permute.xlu0 %3043
    %3045 = vrot.lane.b32.xlu0 %v2978, 32
    %v3046 = vpop.permute.xlu0 %3045
    %3047 = vrot.lane.b32.xlu0 %v2979, 32
    %v3048 = vpop.permute.xlu0 %3047
    %3049 = vrot.lane.b32.xlu0 %v2980, 32
    %v3050 = vpop.permute.xlu0 %3049
    %3051 = vrot.lane.b32.xlu0 %v2981, 32
    %v3052 = vpop.permute.xlu0 %3051
    %3053 = vrot.lane.b32.xlu0 %v2982, 32
    %v3054 = vpop.permute.xlu0 %3053
    %3055 = vrot.lane.b32.xlu0 %v2983, 32
    %v3056 = vpop.permute.xlu0 %3055
    %3057 = vrot.lane.b32.xlu0 %v2984, 32
    %v3058 = vpop.permute.xlu0 %3057
    %3059 = vrot.lane.b32.xlu0 %v2985, 32
    %v3060 = vpop.permute.xlu0 %3059
    %3061 = vrot.lane.b32.xlu0 %v2986, 32
    %v3062 = vpop.permute.xlu0 %3061
    %3063 = vrot.lane.b32.xlu0 %v2987, 32
    %v3064 = vpop.permute.xlu0 %3063
    %3065 = vrot.lane.b32.xlu0 %v2988, 32
    %v3066 = vpop.permute.xlu0 %3065
    %3067 = vrot.lane.b32.xlu0 %v2989, 32
    %v3068 = vpop.permute.xlu0 %3067
    %3069 = vrot.lane.b32.xlu0 %v2990, 32
    %v3070 = vpop.permute.xlu0 %3069
    %3103 = vrot.lane.b32.xlu0 %v2991, 64
    %v3104 = vpop.permute.xlu0 %3103
    %3105 = vrot.lane.b32.xlu0 %v2992, 64
    %v3106 = vpop.permute.xlu0 %3105
    %3107 = vrot.lane.b32.xlu0 %v2993, 64
    %v3108 = vpop.permute.xlu0 %3107
    %3109 = vrot.lane.b32.xlu0 %v2994, 64
    %v3110 = vpop.permute.xlu0 %3109
    %3111 = vrot.lane.b32.xlu0 %v2995, 64
    %v3112 = vpop.permute.xlu0 %3111
    %3113 = vrot.lane.b32.xlu0 %v2996, 64
    %v3114 = vpop.permute.xlu0 %3113
    %3115 = vrot.lane.b32.xlu0 %v2997, 64
    %v3116 = vpop.permute.xlu0 %3115
    %3117 = vrot.lane.b32.xlu0 %v2998, 64
    %v3118 = vpop.permute.xlu0 %3117
    %3119 = vrot.lane.b32.xlu0 %v2999, 64
    %v3120 = vpop.permute.xlu0 %3119
    %3121 = vrot.lane.b32.xlu0 %v3000, 64
    %v3122 = vpop.permute.xlu0 %3121
    %3123 = vrot.lane.b32.xlu0 %v3001, 64
    %v3124 = vpop.permute.xlu0 %3123
    %3125 = vrot.lane.b32.xlu0 %v3002, 64
    %v3126 = vpop.permute.xlu0 %3125
    %3127 = vrot.lane.b32.xlu0 %v3003, 64
    %v3128 = vpop.permute.xlu0 %3127
    %3129 = vrot.lane.b32.xlu0 %v3004, 64
    %v3130 = vpop.permute.xlu0 %3129
    %3131 = vrot.lane.b32.xlu0 %v3005, 64
    %v3132 = vpop.permute.xlu0 %3131
    %3133 = vrot.lane.b32.xlu0 %v3006, 64
    %v3134 = vpop.permute.xlu0 %3133
    %3167 = vrot.lane.b32.xlu0 %v3007, 96
    %v3168 = vpop.permute.xlu0 %3167
    %3169 = vrot.lane.b32.xlu0 %v3008, 96
    %v3170 = vpop.permute.xlu0 %3169
    %3171 = vrot.lane.b32.xlu0 %v3009, 96
    %v3172 = vpop.permute.xlu0 %3171
    %3173 = vrot.lane.b32.xlu0 %v3010, 96
    %v3174 = vpop.permute.xlu0 %3173
    %3175 = vrot.lane.b32.xlu0 %v3011, 96
    %v3176 = vpop.permute.xlu0 %3175
    %3177 = vrot.lane.b32.xlu0 %v3012, 96
    %v3178 = vpop.permute.xlu0 %3177
    %3179 = vrot.lane.b32.xlu0 %v3013, 96
    %v3180 = vpop.permute.xlu0 %3179
    %3181 = vrot.lane.b32.xlu0 %v3014, 96
    %v3182 = vpop.permute.xlu0 %3181
    %3183 = vrot.lane.b32.xlu0 %v3015, 96
    %v3184 = vpop.permute.xlu0 %3183
    %3185 = vrot.lane.b32.xlu0 %v3016, 96
    %v3186 = vpop.permute.xlu0 %3185
    %3187 = vrot.lane.b32.xlu0 %v3017, 96
    %v3188 = vpop.permute.xlu0 %3187
    %3189 = vrot.lane.b32.xlu0 %v3018, 96
    %v3190 = vpop.permute.xlu0 %3189
    %3191 = vrot.lane.b32.xlu0 %v3019, 96
    %v3192 = vpop.permute.xlu0 %3191
    %3193 = vrot.lane.b32.xlu0 %v3020, 96
    %v3194 = vpop.permute.xlu0 %3193
    %3195 = vrot.lane.b32.xlu0 %v3021, 96
    %v3196 = vpop.permute.xlu0 %3195
    %3197 = vrot.lane.b32.xlu0 %v3022, 96
    %v3198 = vpop.permute.xlu0 %3197
    %v3215 = vsel %vm957, %v2959, %v3040
    %v3216 = vsel %vm957, %v2960, %v3042
    %v3217 = vsel %vm957, %v2961, %v3044
    %v3218 = vsel %vm957, %v2962, %v3046
    %v3219 = vsel %vm957, %v2963, %v3048
    %v3220 = vsel %vm957, %v2964, %v3050
    %v3221 = vsel %vm957, %v2965, %v3052
    %v3222 = vsel %vm957, %v2966, %v3054
    %v3223 = vsel %vm957, %v2967, %v3056
    %v3224 = vsel %vm957, %v2968, %v3058
    %v3225 = vsel %vm957, %v2969, %v3060
    %v3226 = vsel %vm957, %v2970, %v3062
    %v3227 = vsel %vm957, %v2971, %v3064
    %v3228 = vsel %vm957, %v2972, %v3066
    %v3229 = vsel %vm957, %v2973, %v3068
    %v3230 = vsel %vm957, %v2974, %v3070
    %v3231 = vsel %vm1670, %v3215, %v3104
    %v3232 = vsel %vm1670, %v3216, %v3106
    %v3233 = vsel %vm1670, %v3217, %v3108
    %v3234 = vsel %vm1670, %v3218, %v3110
    %v3235 = vsel %vm1670, %v3219, %v3112
    %v3236 = vsel %vm1670, %v3220, %v3114
    %v3237 = vsel %vm1670, %v3221, %v3116
    %v3238 = vsel %vm1670, %v3222, %v3118
    %v3239 = vsel %vm1670, %v3223, %v3120
    %v3240 = vsel %vm1670, %v3224, %v3122
    %v3241 = vsel %vm1670, %v3225, %v3124
    %v3242 = vsel %vm1670, %v3226, %v3126
    %v3243 = vsel %vm1670, %v3227, %v3128
    %v3244 = vsel %vm1670, %v3228, %v3130
    %v3245 = vsel %vm1670, %v3229, %v3132
    %v3246 = vsel %vm1670, %v3230, %v3134
    %vm3247 = vcmask 785408
    %v3248 = vsel %vm3247, %v3231, %v3168
    %v3249 = vsel %vm3247, %v3232, %v3170
    %v3250 = vsel %vm3247, %v3233, %v3172
    %v3251 = vsel %vm3247, %v3234, %v3174
    %v3252 = vsel %vm3247, %v3235, %v3176
    %v3253 = vsel %vm3247, %v3236, %v3178
    %v3254 = vsel %vm3247, %v3237, %v3180
    %v3255 = vsel %vm3247, %v3238, %v3182
    %v3256 = vsel %vm3247, %v3239, %v3184
    %v3257 = vsel %vm3247, %v3240, %v3186
    %v3258 = vsel %vm3247, %v3241, %v3188
    %v3259 = vsel %vm3247, %v3242, %v3190
    %v3260 = vsel %vm3247, %v3243, %v3192
    %v3261 = vsel %vm3247, %v3244, %v3194
    %v3262 = vsel %vm3247, %v3245, %v3196
    %v3263 = vsel %vm3247, %v3246, %v3198
    %v3264 = vpack.c.bf16 %v3249, %v3248
    %v3265 = vpack.c.bf16 %v3251, %v3250
    %v3266 = vpack.c.bf16 %v3253, %v3252
    %v3267 = vpack.c.bf16 %v3255, %v3254
    %v3268 = vpack.c.bf16 %v3257, %v3256
    %v3269 = vpack.c.bf16 %v3259, %v3258
    %v3270 = vpack.c.bf16 %v3261, %v3260
    %v3271 = vpack.c.bf16 %v3263, %v3262
    %v3272 = vld [vmem:[#allocation7] sm:$0xf]
    %v3273 = vld [vmem:[#allocation7 + $0x4] sm:$0xf]
    %v3274 = vld [vmem:[#allocation7 + $0x8] sm:$0xf]
    %v3275 = vld [vmem:[#allocation7 + $0xc] sm:$0xf]
    %v3276 = vld [vmem:[#allocation7 + $0x10] sm:$0xf]
    %v3277 = vld [vmem:[#allocation7 + $0x14] sm:$0xf]
    %v3278 = vld [vmem:[#allocation7 + $0x18] sm:$0xf]
    %v3279 = vld [vmem:[#allocation7 + $0x1c] sm:$0xf]
    %v3280 = vld [vmem:[#allocation7 + $0x20] sm:$0xf]
    %v3281 = vld [vmem:[#allocation7 + $0x24] sm:$0xf]
    %v3282 = vld [vmem:[#allocation7 + $0x28] sm:$0xf]
    %v3283 = vld [vmem:[#allocation7 + $0x2c] sm:$0xf]
    %v3284 = vld [vmem:[#allocation7 + $0x30] sm:$0xf]
    %v3285 = vld [vmem:[#allocation7 + $0x34] sm:$0xf]
    %v3286 = vld [vmem:[#allocation7 + $0x38] sm:$0xf]
    %v3287 = vld [vmem:[#allocation7 + $0x3c] sm:$0xf]
    %v3288 = vlaneseq
    %v3289 = vshrl.u32 %v3288, 7
    %v3290 = vsub.s32 0, %v3289
    %v3291 = vrot.slane %v100, %v3290
    %v3308 = vunpack.c.l.b16 %v3272
    %v3309 = vunpack.c.l.b16 %v3273
    %v3310 = vunpack.c.l.b16 %v3274
    %v3311 = vunpack.c.l.b16 %v3275
    %v3312 = vunpack.c.l.b16 %v3276
    %v3313 = vunpack.c.l.b16 %v3277
    %v3314 = vunpack.c.l.b16 %v3278
    %v3315 = vunpack.c.l.b16 %v3279
    %v3316 = vunpack.c.l.b16 %v3280
    %v3317 = vunpack.c.l.b16 %v3281
    %v3318 = vunpack.c.l.b16 %v3282
    %v3319 = vunpack.c.l.b16 %v3283
    %v3320 = vunpack.c.l.b16 %v3284
    %v3321 = vunpack.c.l.b16 %v3285
    %v3322 = vunpack.c.l.b16 %v3286
    %v3323 = vunpack.c.l.b16 %v3287
    %v3324 = vpack.c.b16 %v3309, %v3308
    %v3325 = vpack.c.b16 %v3311, %v3310
    %v3326 = vpack.c.b16 %v3313, %v3312
    %v3327 = vpack.c.b16 %v3315, %v3314
    %v3328 = vpack.c.b16 %v3317, %v3316
    %v3329 = vpack.c.b16 %v3319, %v3318
    %v3330 = vpack.c.b16 %v3321, %v3320
    %v3331 = vpack.c.b16 %v3323, %v3322
    %3340 = vmatprep.subr.bf16.mxu0 0
    %3341 = vmatpush1.bf16.msra.mxu0 %v3324
    %3342 = vmatprep.subr.bf16.mxu0 0
    %3343 = vmatpush1.bf16.msra.mxu0 %v3325
    %3344 = vmatprep.subr.bf16.mxu0 0
    %3345 = vmatpush1.bf16.msra.mxu0 %v3326
    %3346 = vmatprep.subr.bf16.mxu0 0
    %3347 = vmatpush1.bf16.msra.mxu0 %v3327
    %3348 = vmatprep.subr.bf16.mxu0 0
    %3349 = vmatpush1.bf16.msra.mxu0 %v3328
    %3350 = vmatprep.subr.bf16.mxu0 0
    %3351 = vmatpush1.bf16.msra.mxu0 %v3329
    %3352 = vmatprep.subr.bf16.mxu0 0
    %3353 = vmatpush1.bf16.msra.mxu0 %v3330
    %3354 = vmatprep.subr.bf16.mxu0 0
    %3355 = vmatpush1.bf16.msra.mxu0 %v3331
    %3356 = vmatprep.subr.bf16.mxu0 0
    %3357 = vmatpush1.bf16.msra.mxu0 0
    %3358 = vmatprep.subr.bf16.mxu0 0
    %3359 = vmatpush1.bf16.msra.mxu0 0
    %3360 = vmatprep.subr.bf16.mxu0 0
    %3361 = vmatpush1.bf16.msra.mxu0 0
    %3362 = vmatprep.subr.bf16.mxu0 0
    %3363 = vmatpush1.bf16.msra.mxu0 0
    %3364 = vmatprep.subr.bf16.mxu0 0
    %3365 = vmatpush1.bf16.msra.mxu0 0
    %3366 = vmatprep.subr.bf16.mxu0 0
    %3367 = vmatpush1.bf16.msra.mxu0 0
    %3368 = vmatprep.subr.bf16.mxu0 0
    %3369 = vmatpush1.bf16.msra.mxu0 0
    %3370 = vmatprep.subr.bf16.mxu0 0
    %3371 = vmatpush1.bf16.msra.mxu0 0
    %3372 = vmatprep.mubr.bf16.mxu0 0
    %3373 = vmatmul.mubr.bf16.gmra.mrb[0].mxu0 %v3264
    %v3374 = vpop.f32.mrb[0].mxu0
    %v3375 = vadd.f32 %v3291, %v3374
    %v3376 = vpop.f32.mrb[0].mxu0
    %v3377 = vpop.f32.mrb[0].mxu0
    %v3378 = vadd.f32 %v3291, %v3377
    %v3379 = vpop.f32.mrb[0].mxu0
    %3380 = vmatprep.mubr.bf16.mxu0 0
    %3381 = vmatmul.mubr.bf16.gmra.mrb[0].mxu0 %v3265
    %v3382 = vpop.f32.mrb[0].mxu0
    %v3383 = vadd.f32 %v3291, %v3382
    %v3384 = vpop.f32.mrb[0].mxu0
    %v3385 = vpop.f32.mrb[0].mxu0
    %v3386 = vadd.f32 %v3291, %v3385
    %v3387 = vpop.f32.mrb[0].mxu0
    %3388 = vmatprep.mubr.bf16.mxu0 0
    %3389 = vmatmul.mubr.bf16.gmra.mrb[0].mxu0 %v3266
    %v3390 = vpop.f32.mrb[0].mxu0
    %v3391 = vadd.f32 %v3291, %v3390
    %v3392 = vpop.f32.mrb[0].mxu0
    %v3393 = vpop.f32.mrb[0].mxu0
    %v3394 = vadd.f32 %v3291, %v3393
    %v3395 = vpop.f32.mrb[0].mxu0
    %3396 = vmatprep.mubr.bf16.mxu0 0
    %3397 = vmatmul.mubr.bf16.gmra.mrb[0].mxu0 %v3267
    %v3398 = vpop.f32.mrb[0].mxu0
    %v3399 = vadd.f32 %v3291, %v3398
    %v3400 = vpop.f32.mrb[0].mxu0
    %v3401 = vpop.f32.mrb[0].mxu0
    %v3402 = vadd.f32 %v3291, %v3401
    %v3403 = vpop.f32.mrb[0].mxu0
    %3404 = vmatprep.mubr.bf16.mxu0 0
    %3405 = vmatmul.mubr.bf16.gmra.mrb[0].mxu0 %v3268
    %v3406 = vpop.f32.mrb[0].mxu0
    %v3407 = vadd.f32 %v3291, %v3406
    %v3408 = vpop.f32.mrb[0].mxu0
    %v3409 = vpop.f32.mrb[0].mxu0
    %v3410 = vadd.f32 %v3291, %v3409
    %v3411 = vpop.f32.mrb[0].mxu0
    %3412 = vmatprep.mubr.bf16.mxu0 0
    %3413 = vmatmul.mubr.bf16.gmra.mrb[0].mxu0 %v3269
    %v3414 = vpop.f32.mrb[0].mxu0
    %v3415 = vadd.f32 %v3291, %v3414
    %v3416 = vpop.f32.mrb[0].mxu0
    %v3417 = vpop.f32.mrb[0].mxu0
    %v3418 = vadd.f32 %v3291, %v3417
    %v3419 = vpop.f32.mrb[0].mxu0
    %3420 = vmatprep.mubr.bf16.mxu0 0
    %3421 = vmatmul.mubr.bf16.gmra.mrb[0].mxu0 %v3270
    %v3422 = vpop.f32.mrb[0].mxu0
    %v3423 = vadd.f32 %v3291, %v3422
    %v3424 = vpop.f32.mrb[0].mxu0
    %v3425 = vpop.f32.mrb[0].mxu0
    %v3426 = vadd.f32 %v3291, %v3425
    %v3427 = vpop.f32.mrb[0].mxu0
    %3428 = vmatprep.mubr.bf16.mxu0 0
    %3429 = vmatmul.mubr.bf16.gmra.mrb[0].mxu0 %v3271
    %v3430 = vpop.f32.mrb[0].mxu0
    %v3431 = vadd.f32 %v3291, %v3430
    %v3432 = vpop.f32.mrb[0].mxu0
    %v3433 = vpop.f32.mrb[0].mxu0
    %v3434 = vadd.f32 %v3291, %v3433
    %v3435 = vpop.f32.mrb[0].mxu0
    %3436 = vdwg.mxu0
    %v3437 = vadd.f32 %v103, %v3375
    %v3438 = vadd.f32 %v104, %v3378
    %v3439 = vadd.f32 %v105, %v3383
    %v3440 = vadd.f32 %v106, %v3386
    %v3441 = vadd.f32 %v107, %v3391
    %v3442 = vadd.f32 %v108, %v3394
    %v3443 = vadd.f32 %v109, %v3399
    %v3444 = vadd.f32 %v110, %v3402
    %v3445 = vadd.f32 %v111, %v3407
    %v3446 = vadd.f32 %v112, %v3410
    %v3447 = vadd.f32 %v113, %v3415
    %v3448 = vadd.f32 %v114, %v3418
    %v3449 = vadd.f32 %v115, %v3423
    %v3450 = vadd.f32 %v116, %v3426
    %v3451 = vadd.f32 %v117, %v3431
    %v3452 = vadd.f32 %v118, %v3434
    %3453 = vadd.xlane.f32.xlu0 %v3437
    %v3454 = vpop.xlane.xlu0 %3453
    %3455 = vadd.xlane.f32.xlu0 %v3438
    %v3456 = vpop.xlane.xlu0 %3455
    %3457 = vadd.xlane.f32.xlu0 %v3439
    %v3458 = vpop.xlane.xlu0 %3457
    %3459 = vadd.xlane.f32.xlu0 %v3440
    %v3460 = vpop.xlane.xlu0 %3459
    %3461 = vadd.xlane.f32.xlu0 %v3441
    %v3462 = vpop.xlane.xlu0 %3461
    %3463 = vadd.xlane.f32.xlu0 %v3442
    %v3464 = vpop.xlane.xlu0 %3463
    %3465 = vadd.xlane.f32.xlu0 %v3443
    %v3466 = vpop.xlane.xlu0 %3465
    %3467 = vadd.xlane.f32.xlu0 %v3444
    %v3468 = vpop.xlane.xlu0 %3467
    %3469 = vadd.xlane.f32.xlu0 %v3445
    %v3470 = vpop.xlane.xlu0 %3469
    %3471 = vadd.xlane.f32.xlu0 %v3446
    %v3472 = vpop.xlane.xlu0 %3471
    %3473 = vadd.xlane.f32.xlu0 %v3447
    %v3474 = vpop.xlane.xlu0 %3473
    %3475 = vadd.xlane.f32.xlu0 %v3448
    %v3476 = vpop.xlane.xlu0 %3475
    %3477 = vadd.xlane.f32.xlu0 %v3449
    %v3478 = vpop.xlane.xlu0 %3477
    %3479 = vadd.xlane.f32.xlu0 %v3450
    %v3480 = vpop.xlane.xlu0 %3479
    %3481 = vadd.xlane.f32.xlu0 %v3451
    %v3482 = vpop.xlane.xlu0 %3481
    %3483 = vadd.xlane.f32.xlu0 %v3452
    %v3484 = vpop.xlane.xlu0 %3483
    %v3485 = vmul.f32 %v3454, %v151
    %v3486 = vmul.f32 %v3456, %v151
    %v3487 = vmul.f32 %v3458, %v151
    %v3488 = vmul.f32 %v3460, %v151
    %v3489 = vmul.f32 %v3462, %v151
    %v3490 = vmul.f32 %v3464, %v151
    %v3491 = vmul.f32 %v3466, %v151
    %v3492 = vmul.f32 %v3468, %v151
    %v3493 = vmul.f32 %v3470, %v151
    %v3494 = vmul.f32 %v3472, %v151
    %v3495 = vmul.f32 %v3474, %v151
    %v3496 = vmul.f32 %v3476, %v151
    %v3497 = vmul.f32 %v3478, %v151
    %v3498 = vmul.f32 %v3480, %v151
    %v3499 = vmul.f32 %v3482, %v151
    %v3500 = vmul.f32 %v3484, %v151
    %v3501 = vsub.f32 %v3437, %v3485
    %v3502 = vsub.f32 %v3438, %v3486
    %v3503 = vsub.f32 %v3439, %v3487
    %v3504 = vsub.f32 %v3440, %v3488
    %v3505 = vsub.f32 %v3441, %v3489
    %v3506 = vsub.f32 %v3442, %v3490
    %v3507 = vsub.f32 %v3443, %v3491
    %v3508 = vsub.f32 %v3444, %v3492
    %v3509 = vsub.f32 %v3445, %v3493
    %v3510 = vsub.f32 %v3446, %v3494
    %v3511 = vsub.f32 %v3447, %v3495
    %v3512 = vsub.f32 %v3448, %v3496
    %v3513 = vsub.f32 %v3449, %v3497
    %v3514 = vsub.f32 %v3450, %v3498
    %v3515 = vsub.f32 %v3451, %v3499
    %v3516 = vsub.f32 %v3452, %v3500
    %v3517 = vmul.f32 %v3501, %v3501
    %v3518 = vmul.f32 %v3502, %v3502
    %v3519 = vmul.f32 %v3503, %v3503
    %v3520 = vmul.f32 %v3504, %v3504
    %v3521 = vmul.f32 %v3505, %v3505
    %v3522 = vmul.f32 %v3506, %v3506
    %v3523 = vmul.f32 %v3507, %v3507
    %v3524 = vmul.f32 %v3508, %v3508
    %v3525 = vmul.f32 %v3509, %v3509
    %v3526 = vmul.f32 %v3510, %v3510
    %v3527 = vmul.f32 %v3511, %v3511
    %v3528 = vmul.f32 %v3512, %v3512
    %v3529 = vmul.f32 %v3513, %v3513
    %v3530 = vmul.f32 %v3514, %v3514
    %v3531 = vmul.f32 %v3515, %v3515
    %v3532 = vmul.f32 %v3516, %v3516
    %3533 = vadd.xlane.f32.xlu0 %v3517
    %v3534 = vpop.xlane.xlu0 %3533
    %3535 = vadd.xlane.f32.xlu0 %v3518
    %v3536 = vpop.xlane.xlu0 %3535
    %3537 = vadd.xlane.f32.xlu0 %v3519
    %v3538 = vpop.xlane.xlu0 %3537
    %3539 = vadd.xlane.f32.xlu0 %v3520
    %v3540 = vpop.xlane.xlu0 %3539
    %3541 = vadd.xlane.f32.xlu0 %v3521
    %v3542 = vpop.xlane.xlu0 %3541
    %3543 = vadd.xlane.f32.xlu0 %v3522
    %v3544 = vpop.xlane.xlu0 %3543
    %3545 = vadd.xlane.f32.xlu0 %v3523
    %v3546 = vpop.xlane.xlu0 %3545
    %3547 = vadd.xlane.f32.xlu0 %v3524
    %v3548 = vpop.xlane.xlu0 %3547
    %3549 = vadd.xlane.f32.xlu0 %v3525
    %v3550 = vpop.xlane.xlu0 %3549
    %3551 = vadd.xlane.f32.xlu0 %v3526
    %v3552 = vpop.xlane.xlu0 %3551
    %3553 = vadd.xlane.f32.xlu0 %v3527
    %v3554 = vpop.xlane.xlu0 %3553
    %3555 = vadd.xlane.f32.xlu0 %v3528
    %v3556 = vpop.xlane.xlu0 %3555
    %3557 = vadd.xlane.f32.xlu0 %v3529
    %v3558 = vpop.xlane.xlu0 %3557
    %3559 = vadd.xlane.f32.xlu0 %v3530
    %v3560 = vpop.xlane.xlu0 %3559
    %3561 = vadd.xlane.f32.xlu0 %v3531
    %v3562 = vpop.xlane.xlu0 %3561
    %3563 = vadd.xlane.f32.xlu0 %v3532
    %v3564 = vpop.xlane.xlu0 %3563
    %v3565 = vmul.f32 %v3534, %v151
    %v3566 = vmul.f32 %v3536, %v151
    %v3567 = vmul.f32 %v3538, %v151
    %v3568 = vmul.f32 %v3540, %v151
    %v3569 = vmul.f32 %v3542, %v151
    %v3570 = vmul.f32 %v3544, %v151
    %v3571 = vmul.f32 %v3546, %v151
    %v3572 = vmul.f32 %v3548, %v151
    %v3573 = vmul.f32 %v3550, %v151
    %v3574 = vmul.f32 %v3552, %v151
    %v3575 = vmul.f32 %v3554, %v151
    %v3576 = vmul.f32 %v3556, %v151
    %v3577 = vmul.f32 %v3558, %v151
    %v3578 = vmul.f32 %v3560, %v151
    %v3579 = vmul.f32 %v3562, %v151
    %v3580 = vmul.f32 %v3564, %v151
    %v3581 = vadd.f32 %v3565, 1e-05
    %v3582 = vadd.f32 %v3566, 1e-05
    %v3583 = vadd.f32 %v3567, 1e-05
    %v3584 = vadd.f32 %v3568, 1e-05
    %v3585 = vadd.f32 %v3569, 1e-05
    %v3586 = vadd.f32 %v3570, 1e-05
    %v3587 = vadd.f32 %v3571, 1e-05
    %v3588 = vadd.f32 %v3572, 1e-05
    %v3589 = vadd.f32 %v3573, 1e-05
    %v3590 = vadd.f32 %v3574, 1e-05
    %v3591 = vadd.f32 %v3575, 1e-05
    %v3592 = vadd.f32 %v3576, 1e-05
    %v3593 = vadd.f32 %v3577, 1e-05
    %v3594 = vadd.f32 %v3578, 1e-05
    %v3595 = vadd.f32 %v3579, 1e-05
    %v3596 = vadd.f32 %v3580, 1e-05
    %v3597 = vrsqrt.pop %v3581
    %v3598 = vrsqrt.pop %v3582
    %v3599 = vrsqrt.pop %v3583
    %v3600 = vrsqrt.pop %v3584
    %v3601 = vrsqrt.pop %v3585
    %v3602 = vrsqrt.pop %v3586
    %v3603 = vrsqrt.pop %v3587
    %v3604 = vrsqrt.pop %v3588
    %v3605 = vrsqrt.pop %v3589
    %v3606 = vrsqrt.pop %v3590
    %v3607 = vrsqrt.pop %v3591
    %v3608 = vrsqrt.pop %v3592
    %v3609 = vrsqrt.pop %v3593
    %v3610 = vrsqrt.pop %v3594
    %v3611 = vrsqrt.pop %v3595
    %v3612 = vrsqrt.pop %v3596
    %v3613 = vmul.f32 %v3501, %v3597
    %v3614 = vmul.f32 %v3502, %v3598
    %v3615 = vmul.f32 %v3503, %v3599
    %v3616 = vmul.f32 %v3504, %v3600
    %v3617 = vmul.f32 %v3505, %v3601
    %v3618 = vmul.f32 %v3506, %v3602
    %v3619 = vmul.f32 %v3507, %v3603
    %v3620 = vmul.f32 %v3508, %v3604
    %v3621 = vmul.f32 %v3509, %v3605
    %v3622 = vmul.f32 %v3510, %v3606
    %v3623 = vmul.f32 %v3511, %v3607
    %v3624 = vmul.f32 %v3512, %v3608
    %v3625 = vmul.f32 %v3513, %v3609
    %v3626 = vmul.f32 %v3514, %v3610
    %v3627 = vmul.f32 %v3515, %v3611
    %v3628 = vmul.f32 %v3516, %v3612
    %v3629 = vlaneseq
    %v3630 = vshrl.u32 %v3629, 7
    %v3631 = vsub.s32 0, %v3630
    %v3632 = vrot.slane %v98, %v3631
    %v3633 = vmul.f32 %v3613, %v3632
    %v3634 = vmul.f32 %v3614, %v3632
    %v3635 = vmul.f32 %v3615, %v3632
    %v3636 = vmul.f32 %v3616, %v3632
    %v3637 = vmul.f32 %v3617, %v3632
    %v3638 = vmul.f32 %v3618, %v3632
    %v3639 = vmul.f32 %v3619, %v3632
    %v3640 = vmul.f32 %v3620, %v3632
    %v3641 = vmul.f32 %v3621, %v3632
    %v3642 = vmul.f32 %v3622, %v3632
    %v3643 = vmul.f32 %v3623, %v3632
    %v3644 = vmul.f32 %v3624, %v3632
    %v3645 = vmul.f32 %v3625, %v3632
    %v3646 = vmul.f32 %v3626, %v3632
    %v3647 = vmul.f32 %v3627, %v3632
    %v3648 = vmul.f32 %v3628, %v3632
    %v3649 = vlaneseq
    %v3650 = vshrl.u32 %v3649, 7
    %v3651 = vsub.s32 0, %v3650
    %v3652 = vrot.slane %v99, %v3651
    %v3653 = vadd.f32 %v3633, %v3652
    %v3654 = vadd.f32 %v3634, %v3652
    %v3655 = vadd.f32 %v3635, %v3652
    %v3656 = vadd.f32 %v3636, %v3652
    %v3657 = vadd.f32 %v3637, %v3652
    %v3658 = vadd.f32 %v3638, %v3652
    %v3659 = vadd.f32 %v3639, %v3652
    %v3660 = vadd.f32 %v3640, %v3652
    %v3661 = vadd.f32 %v3641, %v3652
    %v3662 = vadd.f32 %v3642, %v3652
    %v3663 = vadd.f32 %v3643, %v3652
    %v3664 = vadd.f32 %v3644, %v3652
    %v3665 = vadd.f32 %v3645, %v3652
    %v3666 = vadd.f32 %v3646, %v3652
    %v3667 = vadd.f32 %v3647, %v3652
    %v3668 = vadd.f32 %v3648, %v3652
    %v3669 = vpack.c.bf16 %v3654, %v3653
    %v3670 = vpack.c.bf16 %v3656, %v3655
    %v3671 = vpack.c.bf16 %v3658, %v3657
    %v3672 = vpack.c.bf16 %v3660, %v3659
    %v3673 = vpack.c.bf16 %v3662, %v3661
    %v3674 = vpack.c.bf16 %v3664, %v3663
    %v3675 = vpack.c.bf16 %v3666, %v3665
    %v3676 = vpack.c.bf16 %v3668, %v3667
    %v3677 = vld [vmem:[#allocation8] sm:$0xff]
    %v3678 = vld [vmem:[#allocation8 + $0x8] sm:$0xff]
    %v3679 = vld [vmem:[#allocation8 + $0x10] sm:$0xff]
    %v3680 = vld [vmem:[#allocation8 + $0x18] sm:$0xff]
    %v3681 = vld [vmem:[#allocation8 + $0x20] sm:$0xff]
    %v3682 = vld [vmem:[#allocation8 + $0x28] sm:$0xff]
    %v3683 = vld [vmem:[#allocation8 + $0x30] sm:$0xff]
    %v3684 = vld [vmem:[#allocation8 + $0x38] sm:$0xff]
    %v3685 = vld [vmem:[#allocation8 + $0x40] sm:$0xff]
    %v3686 = vld [vmem:[#allocation8 + $0x48] sm:$0xff]
    %v3687 = vld [vmem:[#allocation8 + $0x50] sm:$0xff]
    %v3688 = vld [vmem:[#allocation8 + $0x58] sm:$0xff]
    %v3689 = vld [vmem:[#allocation8 + $0x60] sm:$0xff]
    %v3690 = vld [vmem:[#allocation8 + $0x68] sm:$0xff]
    %v3691 = vld [vmem:[#allocation8 + $0x70] sm:$0xff]
    %v3692 = vld [vmem:[#allocation8 + $0x78] sm:$0xff]
    %v3693 = vld [vmem:[#allocation8 + $0x80] sm:$0xff]
    %v3694 = vld [vmem:[#allocation8 + $0x88] sm:$0xff]
    %v3695 = vld [vmem:[#allocation8 + $0x90] sm:$0xff]
    %v3696 = vld [vmem:[#allocation8 + $0x98] sm:$0xff]
    %v3697 = vld [vmem:[#allocation8 + $0xa0] sm:$0xff]
    %v3698 = vld [vmem:[#allocation8 + $0xa8] sm:$0xff]
    %v3699 = vld [vmem:[#allocation8 + $0xb0] sm:$0xff]
    %v3700 = vld [vmem:[#allocation8 + $0xb8] sm:$0xff]
    %v3701 = vld [vmem:[#allocation8 + $0xc0] sm:$0xff]
    %v3702 = vld [vmem:[#allocation8 + $0xc8] sm:$0xff]
    %v3703 = vld [vmem:[#allocation8 + $0xd0] sm:$0xff]
    %v3704 = vld [vmem:[#allocation8 + $0xd8] sm:$0xff]
    %v3705 = vld [vmem:[#allocation8 + $0xe0] sm:$0xff]
    %v3706 = vld [vmem:[#allocation8 + $0xe8] sm:$0xff]
    %v3707 = vld [vmem:[#allocation8 + $0xf0] sm:$0xff]
    %v3708 = vld [vmem:[#allocation8 + $0xf8] sm:$0xff]
    %v3710 = vlaneseq
    %v3711 = vshrl.u32 %v3710, 7
    %v3712 = vsub.s32 0, %v3711
    %v3713 = vrot.slane %v102, %v3712
    %v3714 = vlaneseq
    %v3715 = vshrl.u32 %v3714, 7
    %v3716 = vsub.s32 1, %v3715
    %v3717 = vrot.slane %v102, %v3716
    %v3718 = vlaneseq
    %v3719 = vshrl.u32 %v3718, 7
    %v3720 = vsub.s32 2, %v3719
    %v3721 = vrot.slane %v102, %v3720
    %v3722 = vlaneseq
    %v3723 = vshrl.u32 %v3722, 7
    %v3724 = vsub.s32 3, %v3723
    %v3725 = vrot.slane %v102, %v3724
    %v3762 = vunpack.c.l.b16 %v3677
    %v3763 = vunpack.c.h.b16 %v3677
    %v3764 = vunpack.c.l.b16 %v3678
    %v3765 = vunpack.c.h.b16 %v3678
    %v3766 = vunpack.c.l.b16 %v3679
    %v3767 = vunpack.c.h.b16 %v3679
    %v3768 = vunpack.c.l.b16 %v3680
    %v3769 = vunpack.c.h.b16 %v3680
    %v3770 = vunpack.c.l.b16 %v3681
    %v3771 = vunpack.c.h.b16 %v3681
    %v3772 = vunpack.c.l.b16 %v3682
    %v3773 = vunpack.c.h.b16 %v3682
    %v3774 = vunpack.c.l.b16 %v3683
    %v3775 = vunpack.c.h.b16 %v3683
    %v3776 = vunpack.c.l.b16 %v3684
    %v3777 = vunpack.c.h.b16 %v3684
    %v3778 = vunpack.c.l.b16 %v3685
    %v3779 = vunpack.c.h.b16 %v3685
    %v3780 = vunpack.c.l.b16 %v3686
    %v3781 = vunpack.c.h.b16 %v3686
    %v3782 = vunpack.c.l.b16 %v3687
    %v3783 = vunpack.c.h.b16 %v3687
    %v3784 = vunpack.c.l.b16 %v3688
    %v3785 = vunpack.c.h.b16 %v3688
    %v3786 = vunpack.c.l.b16 %v3689
    %v3787 = vunpack.c.h.b16 %v3689
    %v3788 = vunpack.c.l.b16 %v3690
    %v3789 = vunpack.c.h.b16 %v3690
    %v3790 = vunpack.c.l.b16 %v3691
    %v3791 = vunpack.c.h.b16 %v3691
    %v3792 = vunpack.c.l.b16 %v3692
    %v3793 = vunpack.c.h.b16 %v3692
    %v3794 = vunpack.c.l.b16 %v3693
    %v3795 = vunpack.c.h.b16 %v3693
    %v3796 = vunpack.c.l.b16 %v3694
    %v3797 = vunpack.c.h.b16 %v3694
    %v3798 = vunpack.c.l.b16 %v3695
    %v3799 = vunpack.c.h.b16 %v3695
    %v3800 = vunpack.c.l.b16 %v3696
    %v3801 = vunpack.c.h.b16 %v3696
    %v3802 = vunpack.c.l.b16 %v3697
    %v3803 = vunpack.c.h.b16 %v3697
    %v3804 = vunpack.c.l.b16 %v3698
    %v3805 = vunpack.c.h.b16 %v3698
    %v3806 = vunpack.c.l.b16 %v3699
    %v3807 = vunpack.c.h.b16 %v3699
    %v3808 = vunpack.c.l.b16 %v3700
    %v3809 = vunpack.c.h.b16 %v3700
    %v3810 = vunpack.c.l.b16 %v3701
    %v3811 = vunpack.c.h.b16 %v3701
    %v3812 = vunpack.c.l.b16 %v3702
    %v3813 = vunpack.c.h.b16 %v3702
    %v3814 = vunpack.c.l.b16 %v3703
    %v3815 = vunpack.c.h.b16 %v3703
    %v3816 = vunpack.c.l.b16 %v3704
    %v3817 = vunpack.c.h.b16 %v3704
    %v3818 = vunpack.c.l.b16 %v3705
    %v3819 = vunpack.c.h.b16 %v3705
    %v3820 = vunpack.c.l.b16 %v3706
    %v3821 = vunpack.c.h.b16 %v3706
    %v3822 = vunpack.c.l.b16 %v3707
    %v3823 = vunpack.c.h.b16 %v3707
    %v3824 = vunpack.c.l.b16 %v3708
    %v3825 = vunpack.c.h.b16 %v3708
    %v3826 = vpack.c.b16 %v3766, %v3762
    %v3827 = vpack.c.b16 %v3767, %v3763
    %v3828 = vpack.c.b16 %v3768, %v3764
    %v3829 = vpack.c.b16 %v3769, %v3765
    %v3830 = vpack.c.b16 %v3774, %v3770
    %v3831 = vpack.c.b16 %v3775, %v3771
    %v3832 = vpack.c.b16 %v3776, %v3772
    %v3833 = vpack.c.b16 %v3777, %v3773
    %v3834 = vpack.c.b16 %v3782, %v3778
    %v3835 = vpack.c.b16 %v3783, %v3779
    %v3836 = vpack.c.b16 %v3784, %v3780
    %v3837 = vpack.c.b16 %v3785, %v3781
    %v3838 = vpack.c.b16 %v3790, %v3786
    %v3839 = vpack.c.b16 %v3791, %v3787
    %v3840 = vpack.c.b16 %v3792, %v3788
    %v3841 = vpack.c.b16 %v3793, %v3789
    %v3842 = vpack.c.b16 %v3798, %v3794
    %v3843 = vpack.c.b16 %v3799, %v3795
    %v3844 = vpack.c.b16 %v3800, %v3796
    %v3845 = vpack.c.b16 %v3801, %v3797
    %v3846 = vpack.c.b16 %v3806, %v3802
    %v3847 = vpack.c.b16 %v3807, %v3803
    %v3848 = vpack.c.b16 %v3808, %v3804
    %v3849 = vpack.c.b16 %v3809, %v3805
    %v3850 = vpack.c.b16 %v3814, %v3810
    %v3851 = vpack.c.b16 %v3815, %v3811
    %v3852 = vpack.c.b16 %v3816, %v3812
    %v3853 = vpack.c.b16 %v3817, %v3813
    %v3854 = vpack.c.b16 %v3822, %v3818
    %v3855 = vpack.c.b16 %v3823, %v3819
    %v3856 = vpack.c.b16 %v3824, %v3820
    %v3857 = vpack.c.b16 %v3825, %v3821
    %3890 = vmatprep.subr.bf16.mxu0 %v3827
    %3891 = vmatpush1.bf16.msra.mxu0 %v3826
    %3892 = vmatprep.subr.bf16.mxu0 %v3831
    %3893 = vmatpush1.bf16.msra.mxu0 %v3830
    %3894 = vmatprep.subr.bf16.mxu0 %v3835
    %3895 = vmatpush1.bf16.msra.mxu0 %v3834
    %3896 = vmatprep.subr.bf16.mxu0 %v3839
    %3897 = vmatpush1.bf16.msra.mxu0 %v3838
    %3898 = vmatprep.subr.bf16.mxu0 %v3843
    %3899 = vmatpush1.bf16.msra.mxu0 %v3842
    %3900 = vmatprep.subr.bf16.mxu0 %v3847
    %3901 = vmatpush1.bf16.msra.mxu0 %v3846
    %3902 = vmatprep.subr.bf16.mxu0 %v3851
    %3903 = vmatpush1.bf16.msra.mxu0 %v3850
    %3904 = vmatprep.subr.bf16.mxu0 %v3855
    %3905 = vmatpush1.bf16.msra.mxu0 %v3854
    %3906 = vmatprep.subr.bf16.mxu0 0
    %3907 = vmatpush1.bf16.msra.mxu0 0
    %3908 = vmatprep.subr.bf16.mxu0 0
    %3909 = vmatpush1.bf16.msra.mxu0 0
    %3910 = vmatprep.subr.bf16.mxu0 0
    %3911 = vmatpush1.bf16.msra.mxu0 0
    %3912 = vmatprep.subr.bf16.mxu0 0
    %3913 = vmatpush1.bf16.msra.mxu0 0
    %3914 = vmatprep.subr.bf16.mxu0 0
    %3915 = vmatpush1.bf16.msra.mxu0 0
    %3916 = vmatprep.subr.bf16.mxu0 0
    %3917 = vmatpush1.bf16.msra.mxu0 0
    %3918 = vmatprep.subr.bf16.mxu0 0
    %3919 = vmatpush1.bf16.msra.mxu0 0
    %3920 = vmatprep.subr.bf16.mxu0 0
    %3921 = vmatpush1.bf16.msra.mxu0 0
    %3922 = vmatprep.mubr.bf16.mxu0 0
    %3923 = vmatmul.mubr.bf16.gmra.mrb[0].mxu0 %v3669
    %v3924 = vpop.f32.mrb[0].mxu0
    %v3925 = vadd.f32 %v3713, %v3924
    %v3926 = vpop.f32.mrb[0].mxu0
    %v3927 = vadd.f32 %v3717, %v3926
    %v3928 = vpop.f32.mrb[0].mxu0
    %v3929 = vadd.f32 %v3713, %v3928
    %v3930 = vpop.f32.mrb[0].mxu0
    %v3931 = vadd.f32 %v3717, %v3930
    %3932 = vmatprep.mubr.bf16.mxu0 0
    %3933 = vmatmul.mubr.bf16.gmra.mrb[0].mxu0 %v3670
    %v3934 = vpop.f32.mrb[0].mxu0
    %v3935 = vadd.f32 %v3713, %v3934
    %v3936 = vpop.f32.mrb[0].mxu0
    %v3937 = vadd.f32 %v3717, %v3936
    %v3938 = vpop.f32.mrb[0].mxu0
    %v3939 = vadd.f32 %v3713, %v3938
    %v3940 = vpop.f32.mrb[0].mxu0
    %v3941 = vadd.f32 %v3717, %v3940
    %3942 = vmatprep.mubr.bf16.mxu0 0
    %3943 = vmatmul.mubr.bf16.gmra.mrb[0].mxu0 %v3671
    %v3944 = vpop.f32.mrb[0].mxu0
    %v3945 = vadd.f32 %v3713, %v3944
    %v3946 = vpop.f32.mrb[0].mxu0
    %v3947 = vadd.f32 %v3717, %v3946
    %v3948 = vpop.f32.mrb[0].mxu0
    %v3949 = vadd.f32 %v3713, %v3948
    %v3950 = vpop.f32.mrb[0].mxu0
    %v3951 = vadd.f32 %v3717, %v3950
    %3952 = vmatprep.mubr.bf16.mxu0 0
    %3953 = vmatmul.mubr.bf16.gmra.mrb[0].mxu0 %v3672
    %v3954 = vpop.f32.mrb[0].mxu0
    %v3955 = vadd.f32 %v3713, %v3954
    %v3956 = vpop.f32.mrb[0].mxu0
    %v3957 = vadd.f32 %v3717, %v3956
    %v3958 = vpop.f32.mrb[0].mxu0
    %v3959 = vadd.f32 %v3713, %v3958
    %v3960 = vpop.f32.mrb[0].mxu0
    %v3961 = vadd.f32 %v3717, %v3960
    %3962 = vmatprep.mubr.bf16.mxu0 0
    %3963 = vmatmul.mubr.bf16.gmra.mrb[0].mxu0 %v3673
    %v3964 = vpop.f32.mrb[0].mxu0
    %v3965 = vadd.f32 %v3713, %v3964
    %v3966 = vpop.f32.mrb[0].mxu0
    %v3967 = vadd.f32 %v3717, %v3966
    %v3968 = vpop.f32.mrb[0].mxu0
    %v3969 = vadd.f32 %v3713, %v3968
    %v3970 = vpop.f32.mrb[0].mxu0
    %v3971 = vadd.f32 %v3717, %v3970
    %3972 = vmatprep.mubr.bf16.mxu0 0
    %3973 = vmatmul.mubr.bf16.gmra.mrb[0].mxu0 %v3674
    %v3974 = vpop.f32.mrb[0].mxu0
    %v3975 = vadd.f32 %v3713, %v3974
    %v3976 = vpop.f32.mrb[0].mxu0
    %v3977 = vadd.f32 %v3717, %v3976
    %v3978 = vpop.f32.mrb[0].mxu0
    %v3979 = vadd.f32 %v3713, %v3978
    %v3980 = vpop.f32.mrb[0].mxu0
    %v3981 = vadd.f32 %v3717, %v3980
    %3982 = vmatprep.mubr.bf16.mxu0 0
    %3983 = vmatmul.mubr.bf16.gmra.mrb[0].mxu0 %v3675
    %v3984 = vpop.f32.mrb[0].mxu0
    %v3985 = vadd.f32 %v3713, %v3984
    %v3986 = vpop.f32.mrb[0].mxu0
    %v3987 = vadd.f32 %v3717, %v3986
    %v3988 = vpop.f32.mrb[0].mxu0
    %v3989 = vadd.f32 %v3713, %v3988
    %v3990 = vpop.f32.mrb[0].mxu0
    %v3991 = vadd.f32 %v3717, %v3990
    %3992 = vmatprep.mubr.bf16.mxu0 0
    %3993 = vmatmul.mubr.bf16.gmra.mrb[0].mxu0 %v3676
    %v3994 = vpop.f32.mrb[0].mxu0
    %v3995 = vadd.f32 %v3713, %v3994
    %v3996 = vpop.f32.mrb[0].mxu0
    %v3997 = vadd.f32 %v3717, %v3996
    %v3998 = vpop.f32.mrb[0].mxu0
    %v3999 = vadd.f32 %v3713, %v3998
    %v4000 = vpop.f32.mrb[0].mxu0
    %v4001 = vadd.f32 %v3717, %v4000
    %4002 = vdwg.mxu0
    %4003 = vmatprep.subr.bf16.mxu0 %v3829
    %4004 = vmatpush1.bf16.msra.mxu0 %v3828
    %4005 = vmatprep.subr.bf16.mxu0 %v3833
    %4006 = vmatpush1.bf16.msra.mxu0 %v3832
    %4007 = vmatprep.subr.bf16.mxu0 %v3837
    %4008 = vmatpush1.bf16.msra.mxu0 %v3836
    %4009 = vmatprep.subr.bf16.mxu0 %v3841
    %4010 = vmatpush1.bf16.msra.mxu0 %v3840
    %4011 = vmatprep.subr.bf16.mxu0 %v3845
    %4012 = vmatpush1.bf16.msra.mxu0 %v3844
    %4013 = vmatprep.subr.bf16.mxu0 %v3849
    %4014 = vmatpush1.bf16.msra.mxu0 %v3848
    %4015 = vmatprep.subr.bf16.mxu0 %v3853
    %4016 = vmatpush1.bf16.msra.mxu0 %v3852
    %4017 = vmatprep.subr.bf16.mxu0 %v3857
    %4018 = vmatpush1.bf16.msra.mxu0 %v3856
    %4019 = vmatprep.subr.bf16.mxu0 0
    %4020 = vmatpush1.bf16.msra.mxu0 0
    %4021 = vmatprep.subr.bf16.mxu0 0
    %4022 = vmatpush1.bf16.msra.mxu0 0
    %4023 = vmatprep.subr.bf16.mxu0 0
    %4024 = vmatpush1.bf16.msra.mxu0 0
    %4025 = vmatprep.subr.bf16.mxu0 0
    %4026 = vmatpush1.bf16.msra.mxu0 0
    %4027 = vmatprep.subr.bf16.mxu0 0
    %4028 = vmatpush1.bf16.msra.mxu0 0
    %4029 = vmatprep.subr.bf16.mxu0 0
    %4030 = vmatpush1.bf16.msra.mxu0 0
    %4031 = vmatprep.subr.bf16.mxu0 0
    %4032 = vmatpush1.bf16.msra.mxu0 0
    %4033 = vmatprep.subr.bf16.mxu0 0
    %4034 = vmatpush1.bf16.msra.mxu0 0
    %4035 = vmatprep.mubr.bf16.mxu0 0
    %4036 = vmatmul.mubr.bf16.gmra.mrb[0].mxu0 %v3669
    %v4037 = vpop.f32.mrb[0].mxu0
    %v4038 = vadd.f32 %v3721, %v4037
    %v4039 = vpop.f32.mrb[0].mxu0
    %v4040 = vadd.f32 %v3725, %v4039
    %v4041 = vpop.f32.mrb[0].mxu0
    %v4042 = vadd.f32 %v3721, %v4041
    %v4043 = vpop.f32.mrb[0].mxu0
    %v4044 = vadd.f32 %v3725, %v4043
    %4045 = vmatprep.mubr.bf16.mxu0 0
    %4046 = vmatmul.mubr.bf16.gmra.mrb[0].mxu0 %v3670
    %v4047 = vpop.f32.mrb[0].mxu0
    %v4048 = vadd.f32 %v3721, %v4047
    %v4049 = vpop.f32.mrb[0].mxu0
    %v4050 = vadd.f32 %v3725, %v4049
    %v4051 = vpop.f32.mrb[0].mxu0
    %v4052 = vadd.f32 %v3721, %v4051
    %v4053 = vpop.f32.mrb[0].mxu0
    %v4054 = vadd.f32 %v3725, %v4053
    %4055 = vmatprep.mubr.bf16.mxu0 0
    %4056 = vmatmul.mubr.bf16.gmra.mrb[0].mxu0 %v3671
    %v4057 = vpop.f32.mrb[0].mxu0
    %v4058 = vadd.f32 %v3721, %v4057
    %v4059 = vpop.f32.mrb[0].mxu0
    %v4060 = vadd.f32 %v3725, %v4059
    %v4061 = vpop.f32.mrb[0].mxu0
    %v4062 = vadd.f32 %v3721, %v4061
    %v4063 = vpop.f32.mrb[0].mxu0
    %v4064 = vadd.f32 %v3725, %v4063
    %4065 = vmatprep.mubr.bf16.mxu0 0
    %4066 = vmatmul.mubr.bf16.gmra.mrb[0].mxu0 %v3672
    %v4067 = vpop.f32.mrb[0].mxu0
    %v4068 = vadd.f32 %v3721, %v4067
    %v4069 = vpop.f32.mrb[0].mxu0
    %v4070 = vadd.f32 %v3725, %v4069
    %v4071 = vpop.f32.mrb[0].mxu0
    %v4072 = vadd.f32 %v3721, %v4071
    %v4073 = vpop.f32.mrb[0].mxu0
    %v4074 = vadd.f32 %v3725, %v4073
    %4075 = vmatprep.mubr.bf16.mxu0 0
    %4076 = vmatmul.mubr.bf16.gmra.mrb[0].mxu0 %v3673
    %v4077 = vpop.f32.mrb[0].mxu0
    %v4078 = vadd.f32 %v3721, %v4077
    %v4079 = vpop.f32.mrb[0].mxu0
    %v4080 = vadd.f32 %v3725, %v4079
    %v4081 = vpop.f32.mrb[0].mxu0
    %v4082 = vadd.f32 %v3721, %v4081
    %v4083 = vpop.f32.mrb[0].mxu0
    %v4084 = vadd.f32 %v3725, %v4083
    %4085 = vmatprep.mubr.bf16.mxu0 0
    %4086 = vmatmul.mubr.bf16.gmra.mrb[0].mxu0 %v3674
    %v4087 = vpop.f32.mrb[0].mxu0
    %v4088 = vadd.f32 %v3721, %v4087
    %v4089 = vpop.f32.mrb[0].mxu0
    %v4090 = vadd.f32 %v3725, %v4089
    %v4091 = vpop.f32.mrb[0].mxu0
    %v4092 = vadd.f32 %v3721, %v4091
    %v4093 = vpop.f32.mrb[0].mxu0
    %v4094 = vadd.f32 %v3725, %v4093
    %4095 = vmatprep.mubr.bf16.mxu0 0
    %4096 = vmatmul.mubr.bf16.gmra.mrb[0].mxu0 %v3675
    %v4097 = vpop.f32.mrb[0].mxu0
    %v4098 = vadd.f32 %v3721, %v4097
    %v4099 = vpop.f32.mrb[0].mxu0
    %v4100 = vadd.f32 %v3725, %v4099
    %v4101 = vpop.f32.mrb[0].mxu0
    %v4102 = vadd.f32 %v3721, %v4101
    %v4103 = vpop.f32.mrb[0].mxu0
    %v4104 = vadd.f32 %v3725, %v4103
    %4105 = vmatprep.mubr.bf16.mxu0 0
    %4106 = vmatmul.mubr.bf16.gmra.mrb[0].mxu0 %v3676
    %v4107 = vpop.f32.mrb[0].mxu0
    %v4108 = vadd.f32 %v3721, %v4107
    %v4109 = vpop.f32.mrb[0].mxu0
    %v4110 = vadd.f32 %v3725, %v4109
    %v4111 = vpop.f32.mrb[0].mxu0
    %v4112 = vadd.f32 %v3721, %v4111
    %v4113 = vpop.f32.mrb[0].mxu0
    %v4114 = vadd.f32 %v3725, %v4113
    %4115 = vdwg.mxu0
    %v4116 = vmax.f32 %v3925, 0.0
    %v4117 = vmax.f32 %v3927, 0.0
    %v4118 = vmax.f32 %v4038, 0.0
    %v4119 = vmax.f32 %v4040, 0.0
    %v4120 = vmax.f32 %v3929, 0.0
    %v4121 = vmax.f32 %v3931, 0.0
    %v4122 = vmax.f32 %v4042, 0.0
    %v4123 = vmax.f32 %v4044, 0.0
    %v4124 = vmax.f32 %v3935, 0.0
    %v4125 = vmax.f32 %v3937, 0.0
    %v4126 = vmax.f32 %v4048, 0.0
    %v4127 = vmax.f32 %v4050, 0.0
    %v4128 = vmax.f32 %v3939, 0.0
    %v4129 = vmax.f32 %v3941, 0.0
    %v4130 = vmax.f32 %v4052, 0.0
    %v4131 = vmax.f32 %v4054, 0.0
    %v4132 = vmax.f32 %v3945, 0.0
    %v4133 = vmax.f32 %v3947, 0.0
    %v4134 = vmax.f32 %v4058, 0.0
    %v4135 = vmax.f32 %v4060, 0.0
    %v4136 = vmax.f32 %v3949, 0.0
    %v4137 = vmax.f32 %v3951, 0.0
    %v4138 = vmax.f32 %v4062, 0.0
    %v4139 = vmax.f32 %v4064, 0.0
    %v4140 = vmax.f32 %v3955, 0.0
    %v4141 = vmax.f32 %v3957, 0.0
    %v4142 = vmax.f32 %v4068, 0.0
    %v4143 = vmax.f32 %v4070, 0.0
    %v4144 = vmax.f32 %v3959, 0.0
    %v4145 = vmax.f32 %v3961, 0.0
    %v4146 = vmax.f32 %v4072, 0.0
    %v4147 = vmax.f32 %v4074, 0.0
    %v4148 = vmax.f32 %v3965, 0.0
    %v4149 = vmax.f32 %v3967, 0.0
    %v4150 = vmax.f32 %v4078, 0.0
    %v4151 = vmax.f32 %v4080, 0.0
    %v4152 = vmax.f32 %v3969, 0.0
    %v4153 = vmax.f32 %v3971, 0.0
    %v4154 = vmax.f32 %v4082, 0.0
    %v4155 = vmax.f32 %v4084, 0.0
    %v4156 = vmax.f32 %v3975, 0.0
    %v4157 = vmax.f32 %v3977, 0.0
    %v4158 = vmax.f32 %v4088, 0.0
    %v4159 = vmax.f32 %v4090, 0.0
    %v4160 = vmax.f32 %v3979, 0.0
    %v4161 = vmax.f32 %v3981, 0.0
    %v4162 = vmax.f32 %v4092, 0.0
    %v4163 = vmax.f32 %v4094, 0.0
    %v4164 = vmax.f32 %v3985, 0.0
    %v4165 = vmax.f32 %v3987, 0.0
    %v4166 = vmax.f32 %v4098, 0.0
    %v4167 = vmax.f32 %v4100, 0.0
    %v4168 = vmax.f32 %v3989, 0.0
    %v4169 = vmax.f32 %v3991, 0.0
    %v4170 = vmax.f32 %v4102, 0.0
    %v4171 = vmax.f32 %v4104, 0.0
    %v4172 = vmax.f32 %v3995, 0.0
    %v4173 = vmax.f32 %v3997, 0.0
    %v4174 = vmax.f32 %v4108, 0.0
    %v4175 = vmax.f32 %v4110, 0.0
    %v4176 = vmax.f32 %v3999, 0.0
    %v4177 = vmax.f32 %v4001, 0.0
    %v4178 = vmax.f32 %v4112, 0.0
    %v4179 = vmax.f32 %v4114, 0.0
    %v4180 = vpack.c.bf16 %v4120, %v4116
    %v4181 = vpack.c.bf16 %v4121, %v4117
    %v4182 = vpack.c.bf16 %v4122, %v4118
    %v4183 = vpack.c.bf16 %v4123, %v4119
    %v4184 = vpack.c.bf16 %v4128, %v4124
    %v4185 = vpack.c.bf16 %v4129, %v4125
    %v4186 = vpack.c.bf16 %v4130, %v4126
    %v4187 = vpack.c.bf16 %v4131, %v4127
    %v4188 = vpack.c.bf16 %v4136, %v4132
    %v4189 = vpack.c.bf16 %v4137, %v4133
    %v4190 = vpack.c.bf16 %v4138, %v4134
    %v4191 = vpack.c.bf16 %v4139, %v4135
    %v4192 = vpack.c.bf16 %v4144, %v4140
    %v4193 = vpack.c.bf16 %v4145, %v4141
    %v4194 = vpack.c.bf16 %v4146, %v4142
    %v4195 = vpack.c.bf16 %v4147, %v4143
    %v4196 = vpack.c.bf16 %v4152, %v4148
    %v4197 = vpack.c.bf16 %v4153, %v4149
    %v4198 = vpack.c.bf16 %v4154, %v4150
    %v4199 = vpack.c.bf16 %v4155, %v4151
    %v4200 = vpack.c.bf16 %v4160, %v4156
    %v4201 = vpack.c.bf16 %v4161, %v4157
    %v4202 = vpack.c.bf16 %v4162, %v4158
    %v4203 = vpack.c.bf16 %v4163, %v4159
    %v4204 = vpack.c.bf16 %v4168, %v4164
    %v4205 = vpack.c.bf16 %v4169, %v4165
    %v4206 = vpack.c.bf16 %v4170, %v4166
    %v4207 = vpack.c.bf16 %v4171, %v4167
    %v4208 = vpack.c.bf16 %v4176, %v4172
    %v4209 = vpack.c.bf16 %v4177, %v4173
    %v4210 = vpack.c.bf16 %v4178, %v4174
    %v4211 = vpack.c.bf16 %v4179, %v4175
    %v4212 = vld [vmem:[#allocation10] sm:$0xf]
    %v4213 = vld [vmem:[#allocation10 + $0x4] sm:$0xf]
    %v4214 = vld [vmem:[#allocation10 + $0x8] sm:$0xf]
    %v4215 = vld [vmem:[#allocation10 + $0xc] sm:$0xf]
    %v4216 = vld [vmem:[#allocation10 + $0x10] sm:$0xf]
    %v4217 = vld [vmem:[#allocation10 + $0x14] sm:$0xf]
    %v4218 = vld [vmem:[#allocation10 + $0x18] sm:$0xf]
    %v4219 = vld [vmem:[#allocation10 + $0x1c] sm:$0xf]
    %v4220 = vld [vmem:[#allocation10 + $0x20] sm:$0xf]
    %v4221 = vld [vmem:[#allocation10 + $0x24] sm:$0xf]
    %v4222 = vld [vmem:[#allocation10 + $0x28] sm:$0xf]
    %v4223 = vld [vmem:[#allocation10 + $0x2c] sm:$0xf]
    %v4224 = vld [vmem:[#allocation10 + $0x30] sm:$0xf]
    %v4225 = vld [vmem:[#allocation10 + $0x34] sm:$0xf]
    %v4226 = vld [vmem:[#allocation10 + $0x38] sm:$0xf]
    %v4227 = vld [vmem:[#allocation10 + $0x3c] sm:$0xf]
    %v4228 = vld [vmem:[#allocation10 + $0x40] sm:$0xf]
    %v4229 = vld [vmem:[#allocation10 + $0x44] sm:$0xf]
    %v4230 = vld [vmem:[#allocation10 + $0x48] sm:$0xf]
    %v4231 = vld [vmem:[#allocation10 + $0x4c] sm:$0xf]
    %v4232 = vld [vmem:[#allocation10 + $0x50] sm:$0xf]
    %v4233 = vld [vmem:[#allocation10 + $0x54] sm:$0xf]
    %v4234 = vld [vmem:[#allocation10 + $0x58] sm:$0xf]
    %v4235 = vld [vmem:[#allocation10 + $0x5c] sm:$0xf]
    %v4236 = vld [vmem:[#allocation10 + $0x60] sm:$0xf]
    %v4237 = vld [vmem:[#allocation10 + $0x64] sm:$0xf]
    %v4238 = vld [vmem:[#allocation10 + $0x68] sm:$0xf]
    %v4239 = vld [vmem:[#allocation10 + $0x6c] sm:$0xf]
    %v4240 = vld [vmem:[#allocation10 + $0x70] sm:$0xf]
    %v4241 = vld [vmem:[#allocation10 + $0x74] sm:$0xf]
    %v4242 = vld [vmem:[#allocation10 + $0x78] sm:$0xf]
    %v4243 = vld [vmem:[#allocation10 + $0x7c] sm:$0xf]
    %v4244 = vld [vmem:[#allocation10 + $0x80] sm:$0xf]
    %v4245 = vld [vmem:[#allocation10 + $0x84] sm:$0xf]
    %v4246 = vld [vmem:[#allocation10 + $0x88] sm:$0xf]
    %v4247 = vld [vmem:[#allocation10 + $0x8c] sm:$0xf]
    %v4248 = vld [vmem:[#allocation10 + $0x90] sm:$0xf]
    %v4249 = vld [vmem:[#allocation10 + $0x94] sm:$0xf]
    %v4250 = vld [vmem:[#allocation10 + $0x98] sm:$0xf]
    %v4251 = vld [vmem:[#allocation10 + $0x9c] sm:$0xf]
    %v4252 = vld [vmem:[#allocation10 + $0xa0] sm:$0xf]
    %v4253 = vld [vmem:[#allocation10 + $0xa4] sm:$0xf]
    %v4254 = vld [vmem:[#allocation10 + $0xa8] sm:$0xf]
    %v4255 = vld [vmem:[#allocation10 + $0xac] sm:$0xf]
    %v4256 = vld [vmem:[#allocation10 + $0xb0] sm:$0xf]
    %v4257 = vld [vmem:[#allocation10 + $0xb4] sm:$0xf]
    %v4258 = vld [vmem:[#allocation10 + $0xb8] sm:$0xf]
    %v4259 = vld [vmem:[#allocation10 + $0xbc] sm:$0xf]
    %v4260 = vld [vmem:[#allocation10 + $0xc0] sm:$0xf]
    %v4261 = vld [vmem:[#allocation10 + $0xc4] sm:$0xf]
    %v4262 = vld [vmem:[#allocation10 + $0xc8] sm:$0xf]
    %v4263 = vld [vmem:[#allocation10 + $0xcc] sm:$0xf]
    %v4264 = vld [vmem:[#allocation10 + $0xd0] sm:$0xf]
    %v4265 = vld [vmem:[#allocation10 + $0xd4] sm:$0xf]
    %v4266 = vld [vmem:[#allocation10 + $0xd8] sm:$0xf]
    %v4267 = vld [vmem:[#allocation10 + $0xdc] sm:$0xf]
    %v4268 = vld [vmem:[#allocation10 + $0xe0] sm:$0xf]
    %v4269 = vld [vmem:[#allocation10 + $0xe4] sm:$0xf]
    %v4270 = vld [vmem:[#allocation10 + $0xe8] sm:$0xf]
    %v4271 = vld [vmem:[#allocation10 + $0xec] sm:$0xf]
    %v4272 = vld [vmem:[#allocation10 + $0xf0] sm:$0xf]
    %v4273 = vld [vmem:[#allocation10 + $0xf4] sm:$0xf]
    %v4274 = vld [vmem:[#allocation10 + $0xf8] sm:$0xf]
    %v4275 = vld [vmem:[#allocation10 + $0xfc] sm:$0xf]
    %v4276 = vlaneseq
    %v4277 = vshrl.u32 %v4276, 7
    %v4278 = vsub.s32 0, %v4277
    %v4279 = vrot.slane %v101, %v4278
    %v4344 = vunpack.c.l.b16 %v4212
    %v4345 = vunpack.c.l.b16 %v4213
    %v4346 = vunpack.c.l.b16 %v4214
    %v4347 = vunpack.c.l.b16 %v4215
    %v4348 = vunpack.c.l.b16 %v4216
    %v4349 = vunpack.c.l.b16 %v4217
    %v4350 = vunpack.c.l.b16 %v4218
    %v4351 = vunpack.c.l.b16 %v4219
    %v4352 = vunpack.c.l.b16 %v4220
    %v4353 = vunpack.c.l.b16 %v4221
    %v4354 = vunpack.c.l.b16 %v4222
    %v4355 = vunpack.c.l.b16 %v4223
    %v4356 = vunpack.c.l.b16 %v4224
    %v4357 = vunpack.c.l.b16 %v4225
    %v4358 = vunpack.c.l.b16 %v4226
    %v4359 = vunpack.c.l.b16 %v4227
    %v4360 = vunpack.c.l.b16 %v4228
    %v4361 = vunpack.c.l.b16 %v4229
    %v4362 = vunpack.c.l.b16 %v4230
    %v4363 = vunpack.c.l.b16 %v4231
    %v4364 = vunpack.c.l.b16 %v4232
    %v4365 = vunpack.c.l.b16 %v4233
    %v4366 = vunpack.c.l.b16 %v4234
    %v4367 = vunpack.c.l.b16 %v4235
    %v4368 = vunpack.c.l.b16 %v4236
    %v4369 = vunpack.c.l.b16 %v4237
    %v4370 = vunpack.c.l.b16 %v4238
    %v4371 = vunpack.c.l.b16 %v4239
    %v4372 = vunpack.c.l.b16 %v4240
    %v4373 = vunpack.c.l.b16 %v4241
    %v4374 = vunpack.c.l.b16 %v4242
    %v4375 = vunpack.c.l.b16 %v4243
    %v4376 = vunpack.c.l.b16 %v4244
    %v4377 = vunpack.c.l.b16 %v4245
    %v4378 = vunpack.c.l.b16 %v4246
    %v4379 = vunpack.c.l.b16 %v4247
    %v4380 = vunpack.c.l.b16 %v4248
    %v4381 = vunpack.c.l.b16 %v4249
    %v4382 = vunpack.c.l.b16 %v4250
    %v4383 = vunpack.c.l.b16 %v4251
    %v4384 = vunpack.c.l.b16 %v4252
    %v4385 = vunpack.c.l.b16 %v4253
    %v4386 = vunpack.c.l.b16 %v4254
    %v4387 = vunpack.c.l.b16 %v4255
    %v4388 = vunpack.c.l.b16 %v4256
    %v4389 = vunpack.c.l.b16 %v4257
    %v4390 = vunpack.c.l.b16 %v4258
    %v4391 = vunpack.c.l.b16 %v4259
    %v4392 = vunpack.c.l.b16 %v4260
    %v4393 = vunpack.c.l.b16 %v4261
    %v4394 = vunpack.c.l.b16 %v4262
    %v4395 = vunpack.c.l.b16 %v4263
    %v4396 = vunpack.c.l.b16 %v4264
    %v4397 = vunpack.c.l.b16 %v4265
    %v4398 = vunpack.c.l.b16 %v4266
    %v4399 = vunpack.c.l.b16 %v4267
    %v4400 = vunpack.c.l.b16 %v4268
    %v4401 = vunpack.c.l.b16 %v4269
    %v4402 = vunpack.c.l.b16 %v4270
    %v4403 = vunpack.c.l.b16 %v4271
    %v4404 = vunpack.c.l.b16 %v4272
    %v4405 = vunpack.c.l.b16 %v4273
    %v4406 = vunpack.c.l.b16 %v4274
    %v4407 = vunpack.c.l.b16 %v4275
    %v4408 = vpack.c.b16 %v4345, %v4344
    %v4409 = vpack.c.b16 %v4347, %v4346
    %v4410 = vpack.c.b16 %v4349, %v4348
    %v4411 = vpack.c.b16 %v4351, %v4350
    %v4412 = vpack.c.b16 %v4353, %v4352
    %v4413 = vpack.c.b16 %v4355, %v4354
    %v4414 = vpack.c.b16 %v4357, %v4356
    %v4415 = vpack.c.b16 %v4359, %v4358
    %v4416 = vpack.c.b16 %v4361, %v4360
    %v4417 = vpack.c.b16 %v4363, %v4362
    %v4418 = vpack.c.b16 %v4365, %v4364
    %v4419 = vpack.c.b16 %v4367, %v4366
    %v4420 = vpack.c.b16 %v4369, %v4368
    %v4421 = vpack.c.b16 %v4371, %v4370
    %v4422 = vpack.c.b16 %v4373, %v4372
    %v4423 = vpack.c.b16 %v4375, %v4374
    %v4424 = vpack.c.b16 %v4377, %v4376
    %v4425 = vpack.c.b16 %v4379, %v4378
    %v4426 = vpack.c.b16 %v4381, %v4380
    %v4427 = vpack.c.b16 %v4383, %v4382
    %v4428 = vpack.c.b16 %v4385, %v4384
    %v4429 = vpack.c.b16 %v4387, %v4386
    %v4430 = vpack.c.b16 %v4389, %v4388
    %v4431 = vpack.c.b16 %v4391, %v4390
    %v4432 = vpack.c.b16 %v4393, %v4392
    %v4433 = vpack.c.b16 %v4395, %v4394
    %v4434 = vpack.c.b16 %v4397, %v4396
    %v4435 = vpack.c.b16 %v4399, %v4398
    %v4436 = vpack.c.b16 %v4401, %v4400
    %v4437 = vpack.c.b16 %v4403, %v4402
    %v4438 = vpack.c.b16 %v4405, %v4404
    %v4439 = vpack.c.b16 %v4407, %v4406
    %4472 = vmatprep.subr.bf16.mxu0 0
    %4473 = vmatpush1.bf16.msra.mxu0 %v4408
    %4474 = vmatprep.subr.bf16.mxu0 0
    %4475 = vmatpush1.bf16.msra.mxu0 %v4409
    %4476 = vmatprep.subr.bf16.mxu0 0
    %4477 = vmatpush1.bf16.msra.mxu0 %v4410
    %4478 = vmatprep.subr.bf16.mxu0 0
    %4479 = vmatpush1.bf16.msra.mxu0 %v4411
    %4480 = vmatprep.subr.bf16.mxu0 0
    %4481 = vmatpush1.bf16.msra.mxu0 %v4412
    %4482 = vmatprep.subr.bf16.mxu0 0
    %4483 = vmatpush1.bf16.msra.mxu0 %v4413
    %4484 = vmatprep.subr.bf16.mxu0 0
    %4485 = vmatpush1.bf16.msra.mxu0 %v4414
    %4486 = vmatprep.subr.bf16.mxu0 0
    %4487 = vmatpush1.bf16.msra.mxu0 %v4415
    %4488 = vmatprep.subr.bf16.mxu0 0
    %4489 = vmatpush1.bf16.msra.mxu0 %v4416
    %4490 = vmatprep.subr.bf16.mxu0 0
    %4491 = vmatpush1.bf16.msra.mxu0 %v4417
    %4492 = vmatprep.subr.bf16.mxu0 0
    %4493 = vmatpush1.bf16.msra.mxu0 %v4418
    %4494 = vmatprep.subr.bf16.mxu0 0
    %4495 = vmatpush1.bf16.msra.mxu0 %v4419
    %4496 = vmatprep.subr.bf16.mxu0 0
    %4497 = vmatpush1.bf16.msra.mxu0 %v4420
    %4498 = vmatprep.subr.bf16.mxu0 0
    %4499 = vmatpush1.bf16.msra.mxu0 %v4421
    %4500 = vmatprep.subr.bf16.mxu0 0
    %4501 = vmatpush1.bf16.msra.mxu0 %v4422
    %4502 = vmatprep.subr.bf16.mxu0 0
    %4503 = vmatpush1.bf16.msra.mxu0 %v4423
    %4504 = vmatprep.mubr.bf16.mxu0 %v4181
    %4505 = vmatmul.mubr.bf16.gmra.mrb[0].mxu0 %v4180
    %v4506 = vpop.f32.mrb[0].mxu0
    %v4507 = vadd.f32 %v4279, %v4506
    %v4508 = vpop.f32.mrb[0].mxu0
    %v4509 = vpop.f32.mrb[0].mxu0
    %v4510 = vadd.f32 %v4279, %v4509
    %v4511 = vpop.f32.mrb[0].mxu0
    %4512 = vmatprep.mubr.bf16.mxu0 %v4185
    %4513 = vmatmul.mubr.bf16.gmra.mrb[0].mxu0 %v4184
    %v4514 = vpop.f32.mrb[0].mxu0
    %v4515 = vadd.f32 %v4279, %v4514
    %v4516 = vpop.f32.mrb[0].mxu0
    %v4517 = vpop.f32.mrb[0].mxu0
    %v4518 = vadd.f32 %v4279, %v4517
    %v4519 = vpop.f32.mrb[0].mxu0
    %4520 = vmatprep.mubr.bf16.mxu0 %v4189
    %4521 = vmatmul.mubr.bf16.gmra.mrb[0].mxu0 %v4188
    %v4522 = vpop.f32.mrb[0].mxu0
    %v4523 = vadd.f32 %v4279, %v4522
    %v4524 = vpop.f32.mrb[0].mxu0
    %v4525 = vpop.f32.mrb[0].mxu0
    %v4526 = vadd.f32 %v4279, %v4525
    %v4527 = vpop.f32.mrb[0].mxu0
    %4528 = vmatprep.mubr.bf16.mxu0 %v4193
    %4529 = vmatmul.mubr.bf16.gmra.mrb[0].mxu0 %v4192
    %v4530 = vpop.f32.mrb[0].mxu0
    %v4531 = vadd.f32 %v4279, %v4530
    %v4532 = vpop.f32.mrb[0].mxu0
    %v4533 = vpop.f32.mrb[0].mxu0
    %v4534 = vadd.f32 %v4279, %v4533
    %v4535 = vpop.f32.mrb[0].mxu0
    %4536 = vmatprep.mubr.bf16.mxu0 %v4197
    %4537 = vmatmul.mubr.bf16.gmra.mrb[0].mxu0 %v4196
    %v4538 = vpop.f32.mrb[0].mxu0
    %v4539 = vadd.f32 %v4279, %v4538
    %v4540 = vpop.f32.mrb[0].mxu0
    %v4541 = vpop.f32.mrb[0].mxu0
    %v4542 = vadd.f32 %v4279, %v4541
    %v4543 = vpop.f32.mrb[0].mxu0
    %4544 = vmatprep.mubr.bf16.mxu0 %v4201
    %4545 = vmatmul.mubr.bf16.gmra.mrb[0].mxu0 %v4200
    %v4546 = vpop.f32.mrb[0].mxu0
    %v4547 = vadd.f32 %v4279, %v4546
    %v4548 = vpop.f32.mrb[0].mxu0
    %v4549 = vpop.f32.mrb[0].mxu0
    %v4550 = vadd.f32 %v4279, %v4549
    %v4551 = vpop.f32.mrb[0].mxu0
    %4552 = vmatprep.mubr.bf16.mxu0 %v4205
    %4553 = vmatmul.mubr.bf16.gmra.mrb[0].mxu0 %v4204
    %v4554 = vpop.f32.mrb[0].mxu0
    %v4555 = vadd.f32 %v4279, %v4554
    %v4556 = vpop.f32.mrb[0].mxu0
    %v4557 = vpop.f32.mrb[0].mxu0
    %v4558 = vadd.f32 %v4279, %v4557
    %v4559 = vpop.f32.mrb[0].mxu0
    %4560 = vmatprep.mubr.bf16.mxu0 %v4209
    %4561 = vmatmul.mubr.bf16.gmra.mrb[0].mxu0 %v4208
    %v4562 = vpop.f32.mrb[0].mxu0
    %v4563 = vadd.f32 %v4279, %v4562
    %v4564 = vpop.f32.mrb[0].mxu0
    %v4565 = vpop.f32.mrb[0].mxu0
    %v4566 = vadd.f32 %v4279, %v4565
    %v4567 = vpop.f32.mrb[0].mxu0
    %4568 = vdwg.mxu0
    %4569 = vmatprep.subr.bf16.mxu0 0
    %4570 = vmatpush1.bf16.msra.mxu0 %v4424
    %4571 = vmatprep.subr.bf16.mxu0 0
    %4572 = vmatpush1.bf16.msra.mxu0 %v4425
    %4573 = vmatprep.subr.bf16.mxu0 0
    %4574 = vmatpush1.bf16.msra.mxu0 %v4426
    %4575 = vmatprep.subr.bf16.mxu0 0
    %4576 = vmatpush1.bf16.msra.mxu0 %v4427
    %4577 = vmatprep.subr.bf16.mxu0 0
    %4578 = vmatpush1.bf16.msra.mxu0 %v4428
    %4579 = vmatprep.subr.bf16.mxu0 0
    %4580 = vmatpush1.bf16.msra.mxu0 %v4429
    %4581 = vmatprep.subr.bf16.mxu0 0
    %4582 = vmatpush1.bf16.msra.mxu0 %v4430
    %4583 = vmatprep.subr.bf16.mxu0 0
    %4584 = vmatpush1.bf16.msra.mxu0 %v4431
    %4585 = vmatprep.subr.bf16.mxu0 0
    %4586 = vmatpush1.bf16.msra.mxu0 %v4432
    %4587 = vmatprep.subr.bf16.mxu0 0
    %4588 = vmatpush1.bf16.msra.mxu0 %v4433
    %4589 = vmatprep.subr.bf16.mxu0 0
    %4590 = vmatpush1.bf16.msra.mxu0 %v4434
    %4591 = vmatprep.subr.bf16.mxu0 0
    %4592 = vmatpush1.bf16.msra.mxu0 %v4435
    %4593 = vmatprep.subr.bf16.mxu0 0
    %4594 = vmatpush1.bf16.msra.mxu0 %v4436
    %4595 = vmatprep.subr.bf16.mxu0 0
    %4596 = vmatpush1.bf16.msra.mxu0 %v4437
    %4597 = vmatprep.subr.bf16.mxu0 0
    %4598 = vmatpush1.bf16.msra.mxu0 %v4438
    %4599 = vmatprep.subr.bf16.mxu0 0
    %4600 = vmatpush1.bf16.msra.mxu0 %v4439
    %4601 = vmatprep.mubr.bf16.mxu0 %v4183
    %4602 = vmatmul.mubr.bf16.gmra.mrb[0].mxu0 %v4182
    %v4603 = vpop.f32.mrb[0].mxu0
    %v4604 = vadd.f32 %v4507, %v4603
    %v4605 = vpop.f32.mrb[0].mxu0
    %v4606 = vpop.f32.mrb[0].mxu0
    %v4607 = vadd.f32 %v4510, %v4606
    %v4608 = vpop.f32.mrb[0].mxu0
    %4609 = vmatprep.mubr.bf16.mxu0 %v4187
    %4610 = vmatmul.mubr.bf16.gmra.mrb[0].mxu0 %v4186
    %v4611 = vpop.f32.mrb[0].mxu0
    %v4612 = vadd.f32 %v4515, %v4611
    %v4613 = vpop.f32.mrb[0].mxu0
    %v4614 = vpop.f32.mrb[0].mxu0
    %v4615 = vadd.f32 %v4518, %v4614
    %v4616 = vpop.f32.mrb[0].mxu0
    %4617 = vmatprep.mubr.bf16.mxu0 %v4191
    %4618 = vmatmul.mubr.bf16.gmra.mrb[0].mxu0 %v4190
    %v4619 = vpop.f32.mrb[0].mxu0
    %v4620 = vadd.f32 %v4523, %v4619
    %v4621 = vpop.f32.mrb[0].mxu0
    %v4622 = vpop.f32.mrb[0].mxu0
    %v4623 = vadd.f32 %v4526, %v4622
    %v4624 = vpop.f32.mrb[0].mxu0
    %4625 = vmatprep.mubr.bf16.mxu0 %v4195
    %4626 = vmatmul.mubr.bf16.gmra.mrb[0].mxu0 %v4194
    %v4627 = vpop.f32.mrb[0].mxu0
    %v4628 = vadd.f32 %v4531, %v4627
    %v4629 = vpop.f32.mrb[0].mxu0
    %v4630 = vpop.f32.mrb[0].mxu0
    %v4631 = vadd.f32 %v4534, %v4630
    %v4632 = vpop.f32.mrb[0].mxu0
    %4633 = vmatprep.mubr.bf16.mxu0 %v4199
    %4634 = vmatmul.mubr.bf16.gmra.mrb[0].mxu0 %v4198
    %v4635 = vpop.f32.mrb[0].mxu0
    %v4636 = vadd.f32 %v4539, %v4635
    %v4637 = vpop.f32.mrb[0].mxu0
    %v4638 = vpop.f32.mrb[0].mxu0
    %v4639 = vadd.f32 %v4542, %v4638
    %v4640 = vpop.f32.mrb[0].mxu0
    %4641 = vmatprep.mubr.bf16.mxu0 %v4203
    %4642 = vmatmul.mubr.bf16.gmra.mrb[0].mxu0 %v4202
    %v4643 = vpop.f32.mrb[0].mxu0
    %v4644 = vadd.f32 %v4547, %v4643
    %v4645 = vpop.f32.mrb[0].mxu0
    %v4646 = vpop.f32.mrb[0].mxu0
    %v4647 = vadd.f32 %v4550, %v4646
    %v4648 = vpop.f32.mrb[0].mxu0
    %4649 = vmatprep.mubr.bf16.mxu0 %v4207
    %4650 = vmatmul.mubr.bf16.gmra.mrb[0].mxu0 %v4206
    %v4651 = vpop.f32.mrb[0].mxu0
    %v4652 = vadd.f32 %v4555, %v4651
    %v4653 = vpop.f32.mrb[0].mxu0
    %v4654 = vpop.f32.mrb[0].mxu0
    %v4655 = vadd.f32 %v4558, %v4654
    %v4656 = vpop.f32.mrb[0].mxu0
    %4657 = vmatprep.mubr.bf16.mxu0 %v4211
    %4658 = vmatmul.mubr.bf16.gmra.mrb[0].mxu0 %v4210
    %v4659 = vpop.f32.mrb[0].mxu0
    %v4660 = vadd.f32 %v4563, %v4659
    %v4661 = vpop.f32.mrb[0].mxu0
    %v4662 = vpop.f32.mrb[0].mxu0
    %v4663 = vadd.f32 %v4566, %v4662
    %v4664 = vpop.f32.mrb[0].mxu0
    %4665 = vdwg.mxu0
    %v4666 = vmax.f32 %v4604, 0.0
    %v4667 = vmax.f32 %v4607, 0.0
    %v4668 = vmax.f32 %v4612, 0.0
    %v4669 = vmax.f32 %v4615, 0.0
    %v4670 = vmax.f32 %v4620, 0.0
    %v4671 = vmax.f32 %v4623, 0.0
    %v4672 = vmax.f32 %v4628, 0.0
    %v4673 = vmax.f32 %v4631, 0.0
    %v4674 = vmax.f32 %v4636, 0.0
    %v4675 = vmax.f32 %v4639, 0.0
    %v4676 = vmax.f32 %v4644, 0.0
    %v4677 = vmax.f32 %v4647, 0.0
    %v4678 = vmax.f32 %v4652, 0.0
    %v4679 = vmax.f32 %v4655, 0.0
    %v4680 = vmax.f32 %v4660, 0.0
    %v4681 = vmax.f32 %v4663, 0.0
    %v4682 = vadd.f32 %v3437, %v4666
    %v4683 = vadd.f32 %v3438, %v4667
    %v4684 = vadd.f32 %v3439, %v4668
    %v4685 = vadd.f32 %v3440, %v4669
    %v4686 = vadd.f32 %v3441, %v4670
    %v4687 = vadd.f32 %v3442, %v4671
    %v4688 = vadd.f32 %v3443, %v4672
    %v4689 = vadd.f32 %v3444, %v4673
    %v4690 = vadd.f32 %v3445, %v4674
    %v4691 = vadd.f32 %v3446, %v4675
    %v4692 = vadd.f32 %v3447, %v4676
    %v4693 = vadd.f32 %v3448, %v4677
    %v4694 = vadd.f32 %v3449, %v4678
    %v4695 = vadd.f32 %v3450, %v4679
    %v4696 = vadd.f32 %v3451, %v4680
    %v4697 = vadd.f32 %v3452, %v4681
    %4698 = vst [vmem:[#allocation11] sm:$0xff] %v4682
    %4699 = vst [vmem:[#allocation11 + $0x8] sm:$0xff] %v4683
    %4700 = vst [vmem:[#allocation11 + $0x10] sm:$0xff] %v4684
    %4701 = vst [vmem:[#allocation11 + $0x18] sm:$0xff] %v4685
    %4702 = vst [vmem:[#allocation11 + $0x20] sm:$0xff] %v4686
    %4703 = vst [vmem:[#allocation11 + $0x28] sm:$0xff] %v4687
    %4704 = vst [vmem:[#allocation11 + $0x30] sm:$0xff] %v4688
    %4705 = vst [vmem:[#allocation11 + $0x38] sm:$0xff] %v4689
    %4706 = vst [vmem:[#allocation11 + $0x40] sm:$0xff] %v4690
    %4707 = vst [vmem:[#allocation11 + $0x48] sm:$0xff] %v4691
    %4708 = vst [vmem:[#allocation11 + $0x50] sm:$0xff] %v4692
    %4709 = vst [vmem:[#allocation11 + $0x58] sm:$0xff] %v4693
    %4710 = vst [vmem:[#allocation11 + $0x60] sm:$0xff] %v4694
    %4711 = vst [vmem:[#allocation11 + $0x68] sm:$0xff] %v4695
    %4712 = vst [vmem:[#allocation11 + $0x70] sm:$0xff] %v4696
    %4713 = vst [vmem:[#allocation11 + $0x78] sm:$0xff] %v4697
    // Predicated region
    $region50: #{tpu_custom_call.1} parent=1 // pred_check
      _
    $region51: #{tpu_custom_call.1} parent=1 // pred_check_branch
      %4715 = sbr.rel (0) target = $region53
    $region52: #{tpu_custom_call.1} parent=1 // pred_region
      %s4717 = ssub.s32 2048, 2048
      %4718 = vsyncadd [#allocation4], %s4717
      %s4719 = sshll.u32 [#allocation11], 4
      %s4720 = int_to_ptr.vmem [resolvable:$true] %s4719
      %4725 = dma.vmem_to_hbm [thread:$0]  %s4720, 2048, %s7, [#allocation4], 128, 128, 8
    $region53: #{tpu_custom_call.1} parent=1 // pred_fallthru
      _
    // Predicated region
    $region54: #{tpu_custom_call.1} parent=1 // pred_check
      _
    $region55: #{tpu_custom_call.1} parent=1 // pred_check_branch
      %4727 = sbr.rel (0) target = $region57
    $region56: #{tpu_custom_call.1} parent=1 // pred_region
      %4728 = dma.done [#allocation4], 2048
    $region57: #{tpu_custom_call.1} parent=1 // pred_fallthru
      _
    %4729 = vsyncpa [#allocation3], 1
    %4730 = vsyncpa [#allocation6], 1
    %4731 = vsyncpa [#allocation9], 1
    %4732 = vsyncpa [#allocation4], 1

</llo_original>
